<compile_context>
chip_gen: v6e
topology: v6e:2x2x1
jax: 0.10.0
libtpu: 0.0.40
codegen_flags: <defaults>
</compile_context>

<pallas_src>
import math
from functools import partial

import jax
import jax.numpy as jnp
from jax.experimental import pallas as pl
from jax.experimental.pallas import tpu as pltpu

MATMUL_DTYPE = jnp.bfloat16       # MXU-native operand dtype; accumulation is f32


# ------------------------ generation-aware sizing --------------------------- #

def _detect_vmem_bytes():
    try:
        info = pltpu.get_tpu_info()
        v = getattr(info, "vmem_capacity_bytes", None)
        if v:
            return int(v)
    except Exception:
        pass
    return 64 * 1024 * 1024       # conservative (v7x-class) default


_VMEM_PHYS = _detect_vmem_bytes()
if _VMEM_PHYS <= 64 * 1024 * 1024:   # v7x-class TensorCore: 64 MiB VMEM
    _VMEM_LIMIT = 48 * 1024 * 1024
    _ROW_CAP, _COL_CAP, _SEQ_CAP = 256, 256, 256
else:                                # v5e / v6e: 128 MiB VMEM
    _VMEM_LIMIT = 96 * 1024 * 1024
    _ROW_CAP, _COL_CAP, _SEQ_CAP = 512, 512, 512


def _cparams(semantics):
    return pltpu.CompilerParams(dimension_semantics=semantics,
                                vmem_limit_bytes=_VMEM_LIMIT)


def _row_tile(m, cap=None):
    """Sublane (row) tile: a multiple of 8 dividing m (or m itself); prefer
    >=2 blocks so the 'parallel' row axis can shard across v7x's two cores."""
    cap = _ROW_CAP if cap is None else cap
    if m <= cap:
        if m >= 16 and m % 16 == 0:
            return m // 2
        return m
    t = cap - cap % 8
    while t > 8 and m % t:
        t -= 8
    return t if (t > 0 and m % t == 0) else m


def _col_tile(n, cap=None):
    """Lane (column) tile: prefer multiples of 256 (v6e/v7x MXU width), fall
    back to multiples of 128, else the full dim."""
    cap = _COL_CAP if cap is None else cap
    if n <= cap:
        return n
    for t in range(cap - cap % 256, 0, -256):
        if n % t == 0:
            return t
    for t in range(cap - cap % 128, 0, -128):
        if n % t == 0:
            return t
    return n


def _seq_tile(length, cap=None):
    cap = _SEQ_CAP if cap is None else cap
    if length <= cap:
        return length
    t = cap - cap % 8
    while t > 8 and length % t:
        t -= 8
    return t if (t > 0 and length % t == 0) else length


# --------------- fused RMSNorm + matmul (+ bias), cached xn ------------------ #

def _norm_matmul_kernel(x_ref, wn_ref, w_ref, o_ref, xn_ref, *, eps):
    @pl.when(pl.program_id(1) == 0)
    def _():
        x = x_ref[...]
        ms = jnp.mean(x * x, axis=-1, keepdims=True)        # f32 statistics
        xn_ref[...] = (x * jax.lax.rsqrt(ms + eps) * wn_ref[...]).astype(MATMUL_DTYPE)
    o_ref[...] = jnp.dot(xn_ref[...], w_ref[...],
                         preferred_element_type=jnp.float32).astype(o_ref.dtype)


def _norm_matmul_bias_kernel(x_ref, wn_ref, w_ref, b_ref, o_ref, xn_ref, *, eps):
    @pl.when(pl.program_id(1) == 0)
    def _():
        x = x_ref[...]
        ms = jnp.mean(x * x, axis=-1, keepdims=True)
        xn_ref[...] = (x * jax.lax.rsqrt(ms + eps) * wn_ref[...]).astype(MATMUL_DTYPE)
    acc = jnp.dot(xn_ref[...], w_ref[...], preferred_element_type=jnp.float32)
    o_ref[...] = (acc + b_ref[...]).astype(o_ref.dtype)


def norm_matmul(x, w_norm, w, bias=None, eps=1e-6, out_dtype=jnp.float32):
    """RMSNorm(x)*w_norm @ w [+ bias].  x:(M,K) f32, w:(K,N) bf16 -> (M,N).
    The normalized row tile is computed once (column tile 0, axis 'arbitrary')
    and cached in bf16 VMEM scratch, then reused for every streamed weight
    column tile (vocab head streams the (K, vocab) weight)."""
    M, K = x.shape
    N = w.shape[1]
    tm, tn = _row_tile(M), _col_tile(N)
    in_specs = [pl.BlockSpec((tm, K), lambda i, j: (i, 0)),
                pl.BlockSpec((1, K), lambda i, j: (0, 0)),
                pl.BlockSpec((K, tn), lambda i, j: (0, j))]
    args = [x, w_norm.reshape(1, K), w]
    if bias is None:
        kernel = partial(_norm_matmul_kernel, eps=eps)
    else:
        kernel = partial(_norm_matmul_bias_kernel, eps=eps)
        in_specs.append(pl.BlockSpec((1, tn), lambda i, j: (0, j)))
        args.append(bias.reshape(1, N))
    return pl.pallas_call(
        kernel,
        out_shape=jax.ShapeDtypeStruct((M, N), out_dtype),
        grid=(M // tm, N // tn),
        in_specs=in_specs,
        out_specs=pl.BlockSpec((tm, tn), lambda i, j: (i, j)),
        scratch_shapes=[pltpu.VMEM((tm, K), MATMUL_DTYPE)],
        compiler_params=_cparams(("parallel", "arbitrary")),
    )(*args)


# ---------------- fused RMSNorm + QKV projection (head grid) ---------------- #

def _norm_qkv_kernel(x_ref, wn_ref, w_ref, q_ref, k_ref, v_ref, xn_ref, *, eps):
    @pl.when(pl.program_id(1) == 0)
    def _():
        x = x_ref[...]
        ms = jnp.mean(x * x, axis=-1, keepdims=True)
        xn_ref[...] = (x * jax.lax.rsqrt(ms + eps) * wn_ref[...]).astype(MATMUL_DTYPE)
    dh = q_ref.shape[-1]
    qkv = jnp.dot(xn_ref[...], w_ref[0], preferred_element_type=jnp.float32)
    q_ref[0] = qkv[:, :dh].astype(q_ref.dtype)              # direct per-head stores
    k_ref[0] = qkv[:, dh:2 * dh].astype(k_ref.dtype)
    v_ref[0] = qkv[:, 2 * dh:].astype(v_ref.dtype)


def norm_qkv(x, w_norm, wqkv, eps=1e-6):
    """Fused RMSNorm + QKV projection with a head grid axis.
    x:(M,D) f32, wqkv:(H,D,3*dh) bf16 (q/k columns pre-de-interleaved per head)
    -> q, k, v each (H, M, dh) bf16 (head-major, lane-dense dh)."""
    M, D = x.shape
    H, _, three_dh = wqkv.shape
    dh = three_dh // 3
    tm = _row_tile(M)
    out_sds = jax.ShapeDtypeStruct((H, M, dh), MATMUL_DTYPE)
    out_spec = pl.BlockSpec((1, tm, dh), lambda i, h: (h, i, 0))
    return pl.pallas_call(
        partial(_norm_qkv_kernel, eps=eps),
        out_shape=(out_sds, out_sds, out_sds),
        grid=(M // tm, H),
        in_specs=[pl.BlockSpec((tm, D), lambda i, h: (i, 0)),
                  pl.BlockSpec((1, D), lambda i, h: (0, 0)),
                  pl.BlockSpec((1, D, three_dh), lambda i, h: (h, 0, 0))],
        out_specs=(out_spec, out_spec, out_spec),
        scratch_shapes=[pltpu.VMEM((tm, D), MATMUL_DTYPE)],
        compiler_params=_cparams(("parallel", "arbitrary")),
    )(x, w_norm.reshape(1, D), wqkv)


# --------- flash-style attention: RoPE + additive triu(ones,1) + softmax ----- #

def _flash_attn_kernel(q_ref, k_ref, v_ref, cq_ref, sq_ref, ck_ref, sk_ref,
                       o_ref, m_sc, l_sc, acc_sc, *, inv_scale):
    ki = pl.program_id(3)

    @pl.when(ki == 0)
    def _():
        m_sc[...] = jnp.full_like(m_sc[...], -jnp.inf)
        l_sc[...] = jnp.zeros_like(l_sc[...])
        acc_sc[...] = jnp.zeros_like(acc_sc[...])

    half = cq_ref.shape[-1]
    # 1/scale folded into q: a (tq, dh) VPU multiply instead of (tq, tk).
    q = q_ref[0, 0].astype(jnp.float32) * inv_scale
    k = k_ref[0, 0].astype(jnp.float32)
    cq, sq = cq_ref[...], sq_ref[...]
    ck, sk = ck_ref[...], sk_ref[...]

    # RoPE in de-interleaved (evens|odds) per-head layout (W_q/W_k columns were
    # permuted on the host); ONE full-depth QK^T contraction (d_head deep).
    qe, qo = q[:, :half], q[:, half:]
    ke, ko = k[:, :half], k[:, half:]
    qr = jnp.concatenate([qe * cq - qo * sq, qe * sq + qo * cq], axis=-1)
    kr = jnp.concatenate([ke * ck - ko * sk, ke * sk + ko * ck], axis=-1)

    s = jax.lax.dot_general(qr.astype(MATMUL_DTYPE), kr.astype(MATMUL_DTYPE),
                            (((1,), (1,)), ((), ())),
                            preferred_element_type=jnp.float32)      # (tq, tk)

    # The reference ADDS torch.triu(ones, 1): +1.0 strictly above the diagonal.
    tq, tk = s.shape
    row = pl.program_id(2) * tq + jax.lax.broadcasted_iota(jnp.int32, (tq, tk), 0)
    col = ki * tk + jax.lax.broadcasted_iota(jnp.int32, (tq, tk), 1)
    s = s + (col > row).astype(jnp.float32)

    # Online softmax with f32 running max / sum.
    m_prev = m_sc[...]
    m_new = jnp.maximum(m_prev, jnp.max(s, axis=-1, keepdims=True))
    alpha = jnp.exp(m_prev - m_new)
    p = jnp.exp(s - m_new)
    l_sc[...] = alpha * l_sc[...] + jnp.sum(p, axis=-1, keepdims=True)
    acc_sc[...] = alpha * acc_sc[...] + jnp.dot(
        p.astype(MATMUL_DTYPE), v_ref[0, 0], preferred_element_type=jnp.float32)
    m_sc[...] = m_new

    @pl.when(ki == pl.num_programs(3) - 1)
    def _():
        o_ref[0, 0] = (acc_sc[...] *
                       pl.reciprocal(l_sc[...], approx=True)).astype(o_ref.dtype)


def attention(q, k, v, cos, sin, inv_scale):
    """q/k/v: (H, B, L, dh) bf16; cos/sin: (L, dh//2) f32 -> (H, B, L, dh) bf16."""
    H, B, L, dh = q.shape
    half = cos.shape[-1]
    tq = _seq_tile(L)
    tk = _seq_tile(L)
    grid = (B, H, L // tq, L // tk)
    return pl.pallas_call(
        partial(_flash_attn_kernel, inv_scale=inv_scale),
        out_shape=jax.ShapeDtypeStruct((H, B, L, dh), MATMUL_DTYPE),
        grid=grid,
        in_specs=[
            pl.BlockSpec((1, 1, tq, dh), lambda b, h, qi, ki: (h, b, qi, 0)),
            pl.BlockSpec((1, 1, tk, dh), lambda b, h, qi, ki: (h, b, ki, 0)),
            pl.BlockSpec((1, 1, tk, dh), lambda b, h, qi, ki: (h, b, ki, 0)),
            pl.BlockSpec((tq, half), lambda b, h, qi, ki: (qi, 0)),
            pl.BlockSpec((tq, half), lambda b, h, qi, ki: (qi, 0)),
            pl.BlockSpec((tk, half), lambda b, h, qi, ki: (ki, 0)),
            pl.BlockSpec((tk, half), lambda b, h, qi, ki: (ki, 0)),
        ],
        out_specs=pl.BlockSpec((1, 1, tq, dh), lambda b, h, qi, ki: (h, b, qi, 0)),
        scratch_shapes=[pltpu.VMEM((tq, 1), jnp.float32),
                        pltpu.VMEM((tq, 1), jnp.float32),
                        pltpu.VMEM((tq, dh), jnp.float32)],
        compiler_params=_cparams(("parallel", "parallel", "parallel", "arbitrary")),
    )(q, k, v, cos, sin, cos, sin)


# ------------- W_o projection: head-axis reduction + fused residual ---------- #

def _wo_residual_kernel(a_ref, w_ref, r_ref, o_ref, acc_ref):
    h = pl.program_id(1)

    @pl.when(h == 0)
    def _():
        acc_ref[...] = jnp.zeros_like(acc_ref[...])

    acc_ref[...] += jnp.dot(a_ref[0], w_ref[0], preferred_element_type=jnp.float32)

    @pl.when(h == pl.num_programs(1) - 1)
    def _():
        o_ref[...] = (acc_ref[...] + r_ref[...]).astype(o_ref.dtype)


def wo_residual(attn, wo, residual):
    """(sum_h attn_h @ Wo_h) + residual.  attn:(H,M,dh) bf16, wo:(H,dh,D) bf16,
    residual:(M,D) f32 -> (M,D) f32.  Reducing over the head grid axis keeps
    the whole layer transpose-free."""
    H, M, dh = attn.shape
    D = wo.shape[-1]
    tm = _row_tile(M)
    return pl.pallas_call(
        _wo_residual_kernel,
        out_shape=jax.ShapeDtypeStruct((M, D), jnp.float32),
        grid=(M // tm, H),
        in_specs=[pl.BlockSpec((1, tm, dh), lambda i, h: (h, i, 0)),
                  pl.BlockSpec((1, dh, D), lambda i, h: (h, 0, 0)),
                  pl.BlockSpec((tm, D), lambda i, h: (i, 0))],
        out_specs=pl.BlockSpec((tm, D), lambda i, h: (i, 0)),
        scratch_shapes=[pltpu.VMEM((tm, D), jnp.float32)],
        compiler_params=_cparams(("parallel", "arbitrary")),
    )(attn, wo, residual)


# ------------- fused RMSNorm + SwiGLU + residual (FFN), cached xn ------------ #

def _norm_swiglu_res_kernel(x_ref, wn_ref, w1_ref, w3_ref, w2_ref, o_ref,
                            xn_ref, acc_ref, *, eps):
    j = pl.program_id(1)

    @pl.when(j == 0)
    def _():
        x = x_ref[...]
        ms = jnp.mean(x * x, axis=-1, keepdims=True)
        xn_ref[...] = (x * jax.lax.rsqrt(ms + eps) * wn_ref[...]).astype(MATMUL_DTYPE)
        acc_ref[...] = jnp.zeros_like(acc_ref[...])

    xn = xn_ref[...]
    g = jnp.dot(xn, w1_ref[...], preferred_element_type=jnp.float32)
    u = jnp.dot(xn, w3_ref[...], preferred_element_type=jnp.float32)
    hidden = (g * jax.nn.sigmoid(g) * u).astype(MATMUL_DTYPE)      # SiLU(gate)*up
    acc_ref[...] += jnp.dot(hidden, w2_ref[...], preferred_element_type=jnp.float32)

    @pl.when(j == pl.num_programs(1) - 1)
    def _():
        o_ref[...] = (acc_ref[...] + x_ref[...]).astype(o_ref.dtype)   # residual


def norm_swiglu_residual(x, w_norm, w1, w3, w2, eps=1e-6):
    """x + SwiGLU(RMSNorm(x)); hidden dim tiled ('arbitrary'), normalized
    activations cached in bf16 scratch, f32 VMEM accumulator."""
    M, D = x.shape
    Hd = w1.shape[1]
    tm, th = _row_tile(M), _col_tile(Hd)
    return pl.pallas_call(
        partial(_norm_swiglu_res_kernel, eps=eps),
        out_shape=jax.ShapeDtypeStruct((M, D), jnp.float32),
        grid=(M // tm, Hd // th),
        in_specs=[pl.BlockSpec((tm, D), lambda i, j: (i, 0)),
                  pl.BlockSpec((1, D), lambda i, j: (0, 0)),
                  pl.BlockSpec((D, th), lambda i, j: (0, j)),
                  pl.BlockSpec((D, th), lambda i, j: (0, j)),
                  pl.BlockSpec((th, D), lambda i, j: (j, 0))],
        out_specs=pl.BlockSpec((tm, D), lambda i, j: (i, 0)),
        scratch_shapes=[pltpu.VMEM((tm, D), MATMUL_DTYPE),
                        pltpu.VMEM((tm, D), jnp.float32)],
        compiler_params=_cparams(("parallel", "arbitrary")),
    )(x, w_norm.reshape(1, D), w1, w3, w2)


# ------------------------------ params / buffers ----------------------------- #

def make_rope_tables(max_length, d_head):
    half = d_head // 2
    inv = 1.0 / (100000.0 ** (2.0 * jnp.arange(half, dtype=jnp.float32) / d_head))
    ang = jnp.outer(jnp.arange(max_length, dtype=jnp.float32), inv)
    return jnp.cos(ang), jnp.sin(ang)          # each (max_length, d_head//2)


def _stack_qkv_heads(wq, wk, wv, n_heads):
    """(D,D) q/k/v weights -> (H, D, 3*dh); q/k output columns permuted to the
    per-head de-interleaved (evens|odds) order consumed by in-kernel RoPE.
    q.k is invariant to a permutation shared by q and k; v is left untouched so
    the attention output column order still matches W_o's input order."""
    D = wq.shape[0]
    dh = D // n_heads
    perm = jnp.concatenate([jnp.arange(0, dh, 2), jnp.arange(1, dh, 2)])

    def per_head(w, permute):
        w = w.reshape(D, n_heads, dh)
        if permute:
            w = w[:, :, perm]
        return jnp.transpose(w, (1, 0, 2))     # (H, D, dh)

    return jnp.concatenate([per_head(wq, True), per_head(wk, True),
                            per_head(wv, False)], axis=-1)          # (H, D, 3*dh)


def init_params(key, d_model, n_heads, n_layers, vocab_size, d_hidden,
                padding_token=0):
    def w(k, shape, scale=0.02):
        return scale * jax.random.normal(k, shape, jnp.float32)

    dh = d_model // n_heads
    keys = jax.random.split(key, 2 + n_layers)
    emb = w(keys[0], (vocab_size, d_model), 1.0)
    emb = emb.at[padding_token].set(0.0)       # nn.Embedding padding_idx row
    layers = []
    for li in range(n_layers):
        lk = jax.random.split(keys[2 + li], 7)
        wq = w(lk[0], (d_model, d_model))
        wk = w(lk[1], (d_model, d_model))
        wv = w(lk[2], (d_model, d_model))
        wo = w(lk[3], (d_model, d_model)).reshape(n_heads, dh, d_model)
        layers.append(dict(
            attn_norm=jnp.ones((d_model,), jnp.float32),
            wqkv=_stack_qkv_heads(wq, wk, wv, n_heads).astype(MATMUL_DTYPE),
            wo=wo.astype(MATMUL_DTYPE),
            ffn_norm=jnp.ones((d_model,), jnp.float32),
            w1=w(lk[4], (d_model, d_hidden)).astype(MATMUL_DTYPE),
            w3=w(lk[5], (d_model, d_hidden)).astype(MATMUL_DTYPE),
            w2=w(lk[6], (d_hidden, d_model)).astype(MATMUL_DTYPE),
        ))
    hk = jax.random.split(keys[1], 2)
    return dict(
        emb=emb,
        layers=layers,
        head_norm=jnp.ones((d_model,), jnp.float32),
        head_w=w(hk[0], (d_model, vocab_size)).astype(MATMUL_DTYPE),
        head_b=jnp.zeros((vocab_size,), jnp.float32),
    )


# --------------------------------- forward ----------------------------------- #

def transformer_forward(params, tokens, cos, sin, *, n_heads, norm_eps=1e-6):
    B, L = tokens.shape
    D = params["emb"].shape[1]
    dh = D // n_heads
    inv_scale = 1.0 / math.sqrt(D / n_heads)

    cos_l, sin_l = cos[:L], sin[:L]
    x = params["emb"][tokens].reshape(B * L, D)    # embedding gather stays in XLA

    for lp in params["layers"]:
        # RMSNorm fused into the QKV projection; head-major bf16 (H, B*L, dh) outs
        q, k, v = norm_qkv(x, lp["attn_norm"], lp["wqkv"], eps=norm_eps)
        # flash-style attention: RoPE + additive triu(ones,1) + online softmax
        attn = attention(q.reshape(n_heads, B, L, dh),
                         k.reshape(n_heads, B, L, dh),
                         v.reshape(n_heads, B, L, dh),
                         cos_l, sin_l, inv_scale)
        # W_o as a head-axis reduction with the residual add fused in
        x = wo_residual(attn.reshape(n_heads, B * L, dh), lp["wo"], x)
        # RMSNorm + SwiGLU (hidden-dim tiled, cached xn, f32 acc) + residual
        x = norm_swiglu_residual(x, lp["ffn_norm"], lp["w1"], lp["w3"],
                                 lp["w2"], eps=norm_eps)

    # head: RMSNorm -> Linear(d_model, vocab) with bias, vocab (N) tiled
    logits = norm_matmul(x, params["head_norm"], params["head_w"],
                         bias=params["head_b"], eps=norm_eps)
    return logits.reshape(B, L, -1)


# ----------------------------------- main ------------------------------------ #

if __name__ == "__main__":
    d_model, n_heads, n_layers = 32, 4, 2
    vocab_size, max_length, d_hidden = 64, 16, 64
    B, L = 2, 8

    key = jax.random.PRNGKey(0)
    pkey, tkey = jax.random.split(key)
    params = init_params(pkey, d_model, n_heads, n_layers, vocab_size, d_hidden)
    cos, sin = make_rope_tables(max_length, d_model // n_heads)
    tokens = jax.random.randint(tkey, (B, L), 0, vocab_size, dtype=jnp.int32)

    fwd = jax.jit(partial(transformer_forward, n_heads=n_heads))
    logits = jax.block_until_ready(fwd(params, tokens, cos, sin))

    assert logits.shape == (B, L, vocab_size)
    assert bool(jnp.all(jnp.isfinite(logits)))
    print("KERNEL_OK")
</pallas_src>

<mosaic_0001>
module attributes {stable_mosaic.version = 11 : i64} {
  func.func @_wo_residual_kernel(%arg0: i32, %arg1: i32, %arg2: memref<1x8x8xbf16, #tpu.memory_space<vmem>>, %arg3: memref<1x8x32xbf16, #tpu.memory_space<vmem>>, %arg4: memref<8x32xf32, #tpu.memory_space<vmem>>, %arg5: memref<8x32xf32, #tpu.memory_space<vmem>>, %arg6: memref<8x32xf32, #tpu.memory_space<vmem>>) attributes {dimension_semantics = [#tpu.dimension_semantics<parallel>, #tpu.dimension_semantics<arbitrary>], iteration_bounds = array<i64: 2, 4>, scalar_prefetch = 0 : i64, scratch_operands = 1 : i64, tpu.core_type = #tpu.core_type<tc>, window_params = [{transform_indices = @transform_0, window_bounds = array<i64: 1, 8, 8>}, {transform_indices = @transform_1, window_bounds = array<i64: 1, 8, 32>}, {transform_indices = @transform_2, window_bounds = array<i64: 8, 32>}, {transform_indices = @transform_3, window_bounds = array<i64: 8, 32>}]} {
    %c0_i32 = arith.constant 0 : i32
    %0 = arith.cmpi eq, %arg1, %c0_i32 : i32
    %1 = arith.extui %0 : i1 to i32
    %c0_i32_0 = arith.constant 0 : i32
    %2 = arith.cmpi ne, %1, %c0_i32_0 : i32
    scf.if %2 {
      %cst_11 = arith.constant 0.000000e+00 : f32
      %14 = vector.broadcast %cst_11 : f32 to vector<8x32xf32>
      %c0_12 = arith.constant 0 : index
      %c0_13 = arith.constant 0 : index
      %15 = vector.load %arg6[%c0_12, %c0_13] : memref<8x32xf32, #tpu.memory_space<vmem>>, vector<8x32xf32>
      tpu.vector_store %arg6[%c0_12, %c0_13], %14 {strides = array<i32>} : memref<8x32xf32, #tpu.memory_space<vmem>>, vector<8x32xf32>,
    } else {
    }
    %c0 = arith.constant 0 : index
    %c0_1 = arith.constant 0 : index
    %3 = vector.load %arg6[%c0, %c0_1] : memref<8x32xf32, #tpu.memory_space<vmem>>, vector<8x32xf32>
    %c0_2 = arith.constant 0 : index
    %c0_3 = arith.constant 0 : index
    %c0_4 = arith.constant 0 : index
    %4 = vector.load %arg2[%c0_2, %c0_3, %c0_4] : memref<1x8x8xbf16, #tpu.memory_space<vmem>>, vector<1x8x8xbf16>
    %5 = vector.shape_cast %4 : vector<1x8x8xbf16> to vector<8x8xbf16>
    %c0_5 = arith.constant 0 : index
    %c0_6 = arith.constant 0 : index
    %c0_7 = arith.constant 0 : index
    %6 = vector.load %arg3[%c0_5, %c0_6, %c0_7] : memref<1x8x32xbf16, #tpu.memory_space<vmem>>, vector<1x8x32xbf16>
    %7 = vector.shape_cast %6 : vector<1x8x32xbf16> to vector<8x32xbf16>
    %cst = arith.constant dense<0.000000e+00> : vector<8x32xf32>
    %8 = tpu.matmul %5, %7, %cst {dimension_numbers = #tpu.dot_dimension_numbers<[1], [0], [0], [1], [0, 0, 1, 1], [], []>} : vector<8x8xbf16>, vector<8x32xbf16>, vector<8x32xf32> -> vector<8x32xf32>
    %9 = arith.addf %3, %8 : vector<8x32xf32>
    %c0_8 = arith.constant 0 : index
    %c0_9 = arith.constant 0 : index
    %10 = vector.load %arg6[%c0_8, %c0_9] : memref<8x32xf32, #tpu.memory_space<vmem>>, vector<8x32xf32>
    tpu.vector_store %arg6[%c0_8, %c0_9], %9 {strides = array<i32>} : memref<8x32xf32, #tpu.memory_space<vmem>>, vector<8x32xf32>,
    %c3_i32 = arith.constant 3 : i32
    %11 = arith.cmpi eq, %arg1, %c3_i32 : i32
    %12 = arith.extui %11 : i1 to i32
    %c0_i32_10 = arith.constant 0 : i32
    %13 = arith.cmpi ne, %12, %c0_i32_10 : i32
    scf.if %13 {
      %c0_11 = arith.constant 0 : index
      %c0_12 = arith.constant 0 : index
      %14 = vector.load %arg6[%c0_11, %c0_12] : memref<8x32xf32, #tpu.memory_space<vmem>>, vector<8x32xf32>
      %c0_13 = arith.constant 0 : index
      %c0_14 = arith.constant 0 : index
      %15 = vector.load %arg4[%c0_13, %c0_14] : memref<8x32xf32, #tpu.memory_space<vmem>>, vector<8x32xf32>
      %16 = arith.addf %14, %15 : vector<8x32xf32>
      %c0_15 = arith.constant 0 : index
      %c0_16 = arith.constant 0 : index
      %17 = vector.load %arg5[%c0_15, %c0_16] : memref<8x32xf32, #tpu.memory_space<vmem>>, vector<8x32xf32>
      tpu.vector_store %arg5[%c0_15, %c0_16], %16 {strides = array<i32>} : memref<8x32xf32, #tpu.memory_space<vmem>>, vector<8x32xf32>,
    } else {
    }
    return
  }
  func.func @transform_0(%arg0: i32, %arg1: i32) -> (i32, i32, i32) {
    %c0_i32 = arith.constant 0 : i32
    %c0_i32_0 = arith.constant 0 : i32
    return %arg1, %arg0, %c0_i32 : i32, i32, i32
  }
  func.func @transform_1(%arg0: i32, %arg1: i32) -> (i32, i32, i32) {
    %c0_i32 = arith.constant 0 : i32
    %c0_i32_0 = arith.constant 0 : i32
    %c0_i32_1 = arith.constant 0 : i32
    return %arg1, %c0_i32, %c0_i32_0 : i32, i32, i32
  }
  func.func @transform_2(%arg0: i32, %arg1: i32) -> (i32, i32) {
    %c0_i32 = arith.constant 0 : i32
    %c0_i32_0 = arith.constant 0 : i32
    return %arg0, %c0_i32 : i32, i32
  }
  func.func @transform_3(%arg0: i32, %arg1: i32) -> (i32, i32) {
    %c0_i32 = arith.constant 0 : i32
    %c0_i32_0 = arith.constant 0 : i32
    return %arg0, %c0_i32 : i32, i32
  }
}

module attributes {stable_mosaic.version = 11 : i64} {
  func.func @_norm_qkv_kernel(%arg0: i32, %arg1: i32, %arg2: memref<8x32xf32, #tpu.memory_space<vmem>>, %arg3: memref<1x32xf32, #tpu.memory_space<vmem>>, %arg4: memref<1x32x24xbf16, #tpu.memory_space<vmem>>, %arg5: memref<1x8x8xbf16, #tpu.memory_space<vmem>>, %arg6: memref<1x8x8xbf16, #tpu.memory_space<vmem>>, %arg7: memref<1x8x8xbf16, #tpu.memory_space<vmem>>, %arg8: memref<8x32xbf16, #tpu.memory_space<vmem>>) attributes {dimension_semantics = [#tpu.dimension_semantics<parallel>, #tpu.dimension_semantics<arbitrary>], iteration_bounds = array<i64: 2, 4>, scalar_prefetch = 0 : i64, scratch_operands = 1 : i64, tpu.core_type = #tpu.core_type<tc>, window_params = [{transform_indices = @transform_0, window_bounds = array<i64: 8, 32>}, {pipeline_mode = #tpu.pipeline_mode<synchronous>, transform_indices = @transform_1, window_bounds = array<i64: 1, 32>}, {transform_indices = @transform_2, window_bounds = array<i64: 1, 32, 24>}, {transform_indices = @transform_3, window_bounds = array<i64: 1, 8, 8>}, {transform_indices = @transform_4, window_bounds = array<i64: 1, 8, 8>}, {transform_indices = @transform_5, window_bounds = array<i64: 1, 8, 8>}]} {
    %c0_i32 = arith.constant 0 : i32
    %0 = arith.cmpi eq, %arg1, %c0_i32 : i32
    %1 = arith.extui %0 : i1 to i32
    %c0_i32_0 = arith.constant 0 : i32
    %2 = arith.cmpi ne, %1, %c0_i32_0 : i32
    scf.if %2 {
      %c0_14 = arith.constant 0 : index
      %c0_15 = arith.constant 0 : index
      %22 = vector.load %arg2[%c0_14, %c0_15] : memref<8x32xf32, #tpu.memory_space<vmem>>, vector<8x32xf32>
      %23 = arith.mulf %22, %22 : vector<8x32xf32>
      %cst_16 = arith.constant dense<0.000000e+00> : vector<8xf32>
      %24 = vector.multi_reduction <add>, %23, %cst_16 [1] : vector<8x32xf32> to vector<8xf32>
      %25 = vector.shape_cast %24 : vector<8xf32> to vector<8x1xf32>
      %cst_17 = arith.constant 3.200000e+01 : f32
      %26 = vector.broadcast %cst_17 : f32 to vector<8x1xf32>
      %27 = arith.divf %25, %26 : vector<8x1xf32>
      %cst_18 = arith.constant 9.99999997E-7 : f32
      %28 = vector.broadcast %cst_18 : f32 to vector<8x1xf32>
      %29 = arith.addf %27, %28 : vector<8x1xf32>
      %30 = math.rsqrt %29 : vector<8x1xf32>
      %31 = vector.broadcast %30 : vector<8x1xf32> to vector<8x32xf32>
      %32 = arith.mulf %22, %31 : vector<8x32xf32>
      %c0_19 = arith.constant 0 : index
      %c0_20 = arith.constant 0 : index
      %33 = vector.load %arg3[%c0_19, %c0_20] : memref<1x32xf32, #tpu.memory_space<vmem>>, vector<1x32xf32>
      %34 = vector.broadcast %33 : vector<1x32xf32> to vector<8x32xf32>
      %35 = arith.mulf %32, %34 : vector<8x32xf32>
      %36 = arith.truncf %35 : vector<8x32xf32> to vector<8x32xbf16>
      %c0_21 = arith.constant 0 : index
      %c0_22 = arith.constant 0 : index
      %37 = vector.load %arg8[%c0_21, %c0_22] : memref<8x32xbf16, #tpu.memory_space<vmem>>, vector<8x32xbf16>
      tpu.vector_store %arg8[%c0_21, %c0_22], %36 {strides = array<i32>} : memref<8x32xbf16, #tpu.memory_space<vmem>>, vector<8x32xbf16>,
    } else {
    }
    %c0 = arith.constant 0 : index
    %c0_1 = arith.constant 0 : index
    %3 = vector.load %arg8[%c0, %c0_1] : memref<8x32xbf16, #tpu.memory_space<vmem>>, vector<8x32xbf16>
    %c0_2 = arith.constant 0 : index
    %c0_3 = arith.constant 0 : index
    %c0_4 = arith.constant 0 : index
    %4 = vector.load %arg4[%c0_2, %c0_3, %c0_4] : memref<1x32x24xbf16, #tpu.memory_space<vmem>>, vector<1x32x24xbf16>
    %5 = vector.shape_cast %4 : vector<1x32x24xbf16> to vector<32x24xbf16>
    %cst = arith.constant dense<0.000000e+00> : vector<8x24xf32>
    %6 = tpu.matmul %3, %5, %cst {dimension_numbers = #tpu.dot_dimension_numbers<[1], [0], [0], [1], [0, 0, 1, 1], [], []>} : vector<8x32xbf16>, vector<32x24xbf16>, vector<8x24xf32> -> vector<8x24xf32>
    %7 = vector.extract_strided_slice %6 {offsets = [0, 0], sizes = [8, 8], strides = [1, 1]} : vector<8x24xf32> to vector<8x8xf32>
    %8 = arith.truncf %7 : vector<8x8xf32> to vector<8x8xbf16>
    %c0_5 = arith.constant 0 : index
    %c0_6 = arith.constant 0 : index
    %c0_7 = arith.constant 0 : index
    %9 = vector.load %arg5[%c0_5, %c0_6, %c0_7] : memref<1x8x8xbf16, #tpu.memory_space<vmem>>, vector<1x8x8xbf16>
    %10 = vector.shape_cast %9 : vector<1x8x8xbf16> to vector<8x8xbf16>
    %11 = vector.shape_cast %8 : vector<8x8xbf16> to vector<1x8x8xbf16>
    tpu.vector_store %arg5[%c0_5, %c0_6, %c0_7], %11 {strides = array<i32>} : memref<1x8x8xbf16, #tpu.memory_space<vmem>>, vector<1x8x8xbf16>,
    %12 = vector.extract_strided_slice %6 {offsets = [0, 8], sizes = [8, 8], strides = [1, 1]} : vector<8x24xf32> to vector<8x8xf32>
    %13 = arith.truncf %12 : vector<8x8xf32> to vector<8x8xbf16>
    %c0_8 = arith.constant 0 : index
    %c0_9 = arith.constant 0 : index
    %c0_10 = arith.constant 0 : index
    %14 = vector.load %arg6[%c0_8, %c0_9, %c0_10] : memref<1x8x8xbf16, #tpu.memory_space<vmem>>, vector<1x8x8xbf16>
    %15 = vector.shape_cast %14 : vector<1x8x8xbf16> to vector<8x8xbf16>
    %16 = vector.shape_cast %13 : vector<8x8xbf16> to vector<1x8x8xbf16>
    tpu.vector_store %arg6[%c0_8, %c0_9, %c0_10], %16 {strides = array<i32>} : memref<1x8x8xbf16, #tpu.memory_space<vmem>>, vector<1x8x8xbf16>,
    %17 = vector.extract_strided_slice %6 {offsets = [0, 16], sizes = [8, 8], strides = [1, 1]} : vector<8x24xf32> to vector<8x8xf32>
    %18 = arith.truncf %17 : vector<8x8xf32> to vector<8x8xbf16>
    %c0_11 = arith.constant 0 : index
    %c0_12 = arith.constant 0 : index
    %c0_13 = arith.constant 0 : index
    %19 = vector.load %arg7[%c0_11, %c0_12, %c0_13] : memref<1x8x8xbf16, #tpu.memory_space<vmem>>, vector<1x8x8xbf16>
    %20 = vector.shape_cast %19 : vector<1x8x8xbf16> to vector<8x8xbf16>
    %21 = vector.shape_cast %18 : vector<8x8xbf16> to vector<1x8x8xbf16>
    tpu.vector_store %arg7[%c0_11, %c0_12, %c0_13], %21 {strides = array<i32>} : memref<1x8x8xbf16, #tpu.memory_space<vmem>>, vector<1x8x8xbf16>,
    return
  }
  func.func @transform_0(%arg0: i32, %arg1: i32) -> (i32, i32) {
    %c0_i32 = arith.constant 0 : i32
    %c0_i32_0 = arith.constant 0 : i32
    return %arg0, %c0_i32 : i32, i32
  }
  func.func @transform_1(%arg0: i32, %arg1: i32) -> (i32, i32) {
    %c0_i32 = arith.constant 0 : i32
    %c0_i32_0 = arith.constant 0 : i32
    %c0_i32_1 = arith.constant 0 : i32
    return %c0_i32, %c0_i32_0 : i32, i32
  }
  func.func @transform_2(%arg0: i32, %arg1: i32) -> (i32, i32, i32) {
    %c0_i32 = arith.constant 0 : i32
    %c0_i32_0 = arith.constant 0 : i32
    %c0_i32_1 = arith.constant 0 : i32
    return %arg1, %c0_i32, %c0_i32_0 : i32, i32, i32
  }
  func.func @transform_3(%arg0: i32, %arg1: i32) -> (i32, i32, i32) {
    %c0_i32 = arith.constant 0 : i32
    %c0_i32_0 = arith.constant 0 : i32
    return %arg1, %arg0, %c0_i32 : i32, i32, i32
  }
  func.func @transform_4(%arg0: i32, %arg1: i32) -> (i32, i32, i32) {
    %c0_i32 = arith.constant 0 : i32
    %c0_i32_0 = arith.constant 0 : i32
    return %arg1, %arg0, %c0_i32 : i32, i32, i32
  }
  func.func @transform_5(%arg0: i32, %arg1: i32) -> (i32, i32, i32) {
    %c0_i32 = arith.constant 0 : i32
    %c0_i32_0 = arith.constant 0 : i32
    return %arg1, %arg0, %c0_i32 : i32, i32, i32
  }
}

module attributes {stable_mosaic.version = 11 : i64} {
  func.func @_flash_attn_kernel(%arg0: i32, %arg1: i32, %arg2: i32, %arg3: i32, %arg4: memref<1x1x8x8xbf16, #tpu.memory_space<vmem>>, %arg5: memref<1x1x8x8xbf16, #tpu.memory_space<vmem>>, %arg6: memref<1x1x8x8xbf16, #tpu.memory_space<vmem>>, %arg7: memref<8x4xf32, #tpu.memory_space<vmem>>, %arg8: memref<8x4xf32, #tpu.memory_space<vmem>>, %arg9: memref<8x4xf32, #tpu.memory_space<vmem>>, %arg10: memref<8x4xf32, #tpu.memory_space<vmem>>, %arg11: memref<1x1x8x8xbf16, #tpu.memory_space<vmem>>, %arg12: memref<8x1xf32, #tpu.memory_space<vmem>>, %arg13: memref<8x1xf32, #tpu.memory_space<vmem>>, %arg14: memref<8x8xf32, #tpu.memory_space<vmem>>) attributes {dimension_semantics = [#tpu.dimension_semantics<parallel>, #tpu.dimension_semantics<parallel>, #tpu.dimension_semantics<parallel>, #tpu.dimension_semantics<arbitrary>], iteration_bounds = array<i64: 2, 4, 1, 1>, scalar_prefetch = 0 : i64, scratch_operands = 3 : i64, tpu.core_type = #tpu.core_type<tc>, window_params = [{transform_indices = @transform_0, window_bounds = array<i64: 1, 1, 8, 8>}, {transform_indices = @transform_1, window_bounds = array<i64: 1, 1, 8, 8>}, {transform_indices = @transform_2, window_bounds = array<i64: 1, 1, 8, 8>}, {transform_indices = @transform_3, window_bounds = array<i64: 8, 4>}, {transform_indices = @transform_4, window_bounds = array<i64: 8, 4>}, {transform_indices = @transform_5, window_bounds = array<i64: 8, 4>}, {transform_indices = @transform_6, window_bounds = array<i64: 8, 4>}, {transform_indices = @transform_7, window_bounds = array<i64: 1, 1, 8, 8>}]} {
    %c0_i32 = arith.constant 0 : i32
    %0 = arith.cmpi eq, %arg3, %c0_i32 : i32
    %1 = arith.extui %0 : i1 to i32
    %c0_i32_0 = arith.constant 0 : i32
    %2 = arith.cmpi ne, %1, %c0_i32_0 : i32
    scf.if %2 {
      %cst_39 = arith.constant 0xFF800000 : f32
      %76 = vector.broadcast %cst_39 : f32 to vector<8x1xf32>
      %c0_40 = arith.constant 0 : index
      %c0_41 = arith.constant 0 : index
      %77 = vector.load %arg12[%c0_40, %c0_41] : memref<8x1xf32, #tpu.memory_space<vmem>>, vector<8x1xf32>
      tpu.vector_store %arg12[%c0_40, %c0_41], %76 {strides = array<i32>} : memref<8x1xf32, #tpu.memory_space<vmem>>, vector<8x1xf32>,
      %cst_42 = arith.constant 0.000000e+00 : f32
      %78 = vector.broadcast %cst_42 : f32 to vector<8x1xf32>
      %c0_43 = arith.constant 0 : index
      %c0_44 = arith.constant 0 : index
      %79 = vector.load %arg13[%c0_43, %c0_44] : memref<8x1xf32, #tpu.memory_space<vmem>>, vector<8x1xf32>
      tpu.vector_store %arg13[%c0_43, %c0_44], %78 {strides = array<i32>} : memref<8x1xf32, #tpu.memory_space<vmem>>, vector<8x1xf32>,
      %cst_45 = arith.constant 0.000000e+00 : f32
      %80 = vector.broadcast %cst_45 : f32 to vector<8x8xf32>
      %c0_46 = arith.constant 0 : index
      %c0_47 = arith.constant 0 : index
      %81 = vector.load %arg14[%c0_46, %c0_47] : memref<8x8xf32, #tpu.memory_space<vmem>>, vector<8x8xf32>
      tpu.vector_store %arg14[%c0_46, %c0_47], %80 {strides = array<i32>} : memref<8x8xf32, #tpu.memory_space<vmem>>, vector<8x8xf32>,
    } else {
    }
    %c0 = arith.constant 0 : index
    %c0_1 = arith.constant 0 : index
    %c0_2 = arith.constant 0 : index
    %c0_3 = arith.constant 0 : index
    %3 = vector.load %arg4[%c0, %c0_1, %c0_2, %c0_3] : memref<1x1x8x8xbf16, #tpu.memory_space<vmem>>, vector<1x1x8x8xbf16>
    %4 = vector.shape_cast %3 : vector<1x1x8x8xbf16> to vector<8x8xbf16>
    %5 = arith.extf %4 : vector<8x8xbf16> to vector<8x8xf32>
    %cst = arith.constant 0.353553385 : f32
    %6 = vector.broadcast %cst : f32 to vector<8x8xf32>
    %7 = arith.mulf %5, %6 : vector<8x8xf32>
    %c0_4 = arith.constant 0 : index
    %c0_5 = arith.constant 0 : index
    %c0_6 = arith.constant 0 : index
    %c0_7 = arith.constant 0 : index
    %8 = vector.load %arg5[%c0_4, %c0_5, %c0_6, %c0_7] : memref<1x1x8x8xbf16, #tpu.memory_space<vmem>>, vector<1x1x8x8xbf16>
    %9 = vector.shape_cast %8 : vector<1x1x8x8xbf16> to vector<8x8xbf16>
    %10 = arith.extf %9 : vector<8x8xbf16> to vector<8x8xf32>
    %c0_8 = arith.constant 0 : index
    %c0_9 = arith.constant 0 : index
    %11 = vector.load %arg7[%c0_8, %c0_9] : memref<8x4xf32, #tpu.memory_space<vmem>>, vector<8x4xf32>
    %c0_10 = arith.constant 0 : index
    %c0_11 = arith.constant 0 : index
    %12 = vector.load %arg8[%c0_10, %c0_11] : memref<8x4xf32, #tpu.memory_space<vmem>>, vector<8x4xf32>
    %c0_12 = arith.constant 0 : index
    %c0_13 = arith.constant 0 : index
    %13 = vector.load %arg9[%c0_12, %c0_13] : memref<8x4xf32, #tpu.memory_space<vmem>>, vector<8x4xf32>
    %c0_14 = arith.constant 0 : index
    %c0_15 = arith.constant 0 : index
    %14 = vector.load %arg10[%c0_14, %c0_15] : memref<8x4xf32, #tpu.memory_space<vmem>>, vector<8x4xf32>
    %15 = vector.extract_strided_slice %7 {offsets = [0, 0], sizes = [8, 4], strides = [1, 1]} : vector<8x8xf32> to vector<8x4xf32>
    %16 = vector.extract_strided_slice %7 {offsets = [0, 4], sizes = [8, 4], strides = [1, 1]} : vector<8x8xf32> to vector<8x4xf32>
    %17 = vector.extract_strided_slice %10 {offsets = [0, 0], sizes = [8, 4], strides = [1, 1]} : vector<8x8xf32> to vector<8x4xf32>
    %18 = vector.extract_strided_slice %10 {offsets = [0, 4], sizes = [8, 4], strides = [1, 1]} : vector<8x8xf32> to vector<8x4xf32>
    %19 = arith.mulf %15, %11 : vector<8x4xf32>
    %20 = arith.mulf %16, %12 : vector<8x4xf32>
    %21 = arith.subf %19, %20 : vector<8x4xf32>
    %22 = arith.mulf %15, %12 : vector<8x4xf32>
    %23 = arith.mulf %16, %11 : vector<8x4xf32>
    %24 = arith.addf %22, %23 : vector<8x4xf32>
    %25 = tpu.concatenate %21, %24 in 1 : vector<8x4xf32>, vector<8x4xf32> -> vector<8x8xf32>
    %26 = arith.mulf %17, %13 : vector<8x4xf32>
    %27 = arith.mulf %18, %14 : vector<8x4xf32>
    %28 = arith.subf %26, %27 : vector<8x4xf32>
    %29 = arith.mulf %17, %14 : vector<8x4xf32>
    %30 = arith.mulf %18, %13 : vector<8x4xf32>
    %31 = arith.addf %29, %30 : vector<8x4xf32>
    %32 = tpu.concatenate %28, %31 in 1 : vector<8x4xf32>, vector<8x4xf32> -> vector<8x8xf32>
    %33 = arith.truncf %25 : vector<8x8xf32> to vector<8x8xbf16>
    %34 = arith.truncf %32 : vector<8x8xf32> to vector<8x8xbf16>
    %cst_16 = arith.constant dense<0.000000e+00> : vector<8x8xf32>
    %35 = tpu.matmul %33, %34, %cst_16 {dimension_numbers = #tpu.dot_dimension_numbers<[1], [1], [0], [0], [0, 0, 1, 0], [], []>} : vector<8x8xbf16>, vector<8x8xbf16>, vector<8x8xf32> -> vector<8x8xf32>
    %c8_i32 = arith.constant 8 : i32
    %36 = arith.muli %arg2, %c8_i32 : i32
    %37 = tpu.iota {dimensions = array<i32: 0>} : vector<8x8xi32>
    %38 = vector.broadcast %36 : i32 to vector<8x8xi32>
    %39 = arith.addi %38, %37 : vector<8x8xi32>
    %c8_i32_17 = arith.constant 8 : i32
    %40 = arith.muli %arg3, %c8_i32_17 : i32
    %41 = tpu.iota {dimensions = array<i32: 1>} : vector<8x8xi32>
    %42 = vector.broadcast %40 : i32 to vector<8x8xi32>
    %43 = arith.addi %42, %41 : vector<8x8xi32>
    %44 = arith.cmpi sgt, %43, %39 : vector<8x8xi32>
    %45 = arith.extui %44 : vector<8x8xi1> to vector<8x8xi32>
    %46 = arith.sitofp %45 : vector<8x8xi32> to vector<8x8xf32>
    %47 = arith.addf %35, %46 : vector<8x8xf32>
    %c0_18 = arith.constant 0 : index
    %c0_19 = arith.constant 0 : index
    %48 = vector.load %arg12[%c0_18, %c0_19] : memref<8x1xf32, #tpu.memory_space<vmem>>, vector<8x1xf32>
    %cst_20 = arith.constant dense<0xFF800000> : vector<8xf32>
    %49 = vector.multi_reduction <maximumf>, %47, %cst_20 [1] : vector<8x8xf32> to vector<8xf32>
    %50 = vector.shape_cast %49 : vector<8xf32> to vector<8x1xf32>
    %51 = arith.maximumf %48, %50 : vector<8x1xf32>
    %52 = arith.subf %48, %51 : vector<8x1xf32>
    %53 = math.exp %52 : vector<8x1xf32>
    %54 = vector.broadcast %51 : vector<8x1xf32> to vector<8x8xf32>
    %55 = arith.subf %47, %54 : vector<8x8xf32>
    %56 = math.exp %55 : vector<8x8xf32>
    %c0_21 = arith.constant 0 : index
    %c0_22 = arith.constant 0 : index
    %57 = vector.load %arg13[%c0_21, %c0_22] : memref<8x1xf32, #tpu.memory_space<vmem>>, vector<8x1xf32>
    %58 = arith.mulf %53, %57 : vector<8x1xf32>
    %cst_23 = arith.constant dense<0.000000e+00> : vector<8xf32>
    %59 = vector.multi_reduction <add>, %56, %cst_23 [1] : vector<8x8xf32> to vector<8xf32>
    %60 = vector.shape_cast %59 : vector<8xf32> to vector<8x1xf32>
    %61 = arith.addf %58, %60 : vector<8x1xf32>
    %c0_24 = arith.constant 0 : index
    %c0_25 = arith.constant 0 : index
    %62 = vector.load %arg13[%c0_24, %c0_25] : memref<8x1xf32, #tpu.memory_space<vmem>>, vector<8x1xf32>
    tpu.vector_store %arg13[%c0_24, %c0_25], %61 {strides = array<i32>} : memref<8x1xf32, #tpu.memory_space<vmem>>, vector<8x1xf32>,
    %c0_26 = arith.constant 0 : index
    %c0_27 = arith.constant 0 : index
    %63 = vector.load %arg14[%c0_26, %c0_27] : memref<8x8xf32, #tpu.memory_space<vmem>>, vector<8x8xf32>
    %64 = vector.broadcast %53 : vector<8x1xf32> to vector<8x8xf32>
    %65 = arith.mulf %64, %63 : vector<8x8xf32>
    %66 = arith.truncf %56 : vector<8x8xf32> to vector<8x8xbf16>
    %c0_28 = arith.constant 0 : index
    %c0_29 = arith.constant 0 : index
    %c0_30 = arith.constant 0 : index
    %c0_31 = arith.constant 0 : index
    %67 = vector.load %arg6[%c0_28, %c0_29, %c0_30, %c0_31] : memref<1x1x8x8xbf16, #tpu.memory_space<vmem>>, vector<1x1x8x8xbf16>
    %68 = vector.shape_cast %67 : vector<1x1x8x8xbf16> to vector<8x8xbf16>
    %cst_32 = arith.constant dense<0.000000e+00> : vector<8x8xf32>
    %69 = tpu.matmul %66, %68, %cst_32 {dimension_numbers = #tpu.dot_dimension_numbers<[1], [0], [0], [1], [0, 0, 1, 1], [], []>} : vector<8x8xbf16>, vector<8x8xbf16>, vector<8x8xf32> -> vector<8x8xf32>
    %70 = arith.addf %65, %69 : vector<8x8xf32>
    %c0_33 = arith.constant 0 : index
    %c0_34 = arith.constant 0 : index
    %71 = vector.load %arg14[%c0_33, %c0_34] : memref<8x8xf32, #tpu.memory_space<vmem>>, vector<8x8xf32>
    tpu.vector_store %arg14[%c0_33, %c0_34], %70 {strides = array<i32>} : memref<8x8xf32, #tpu.memory_space<vmem>>, vector<8x8xf32>,
    %c0_35 = arith.constant 0 : index
    %c0_36 = arith.constant 0 : index
    %72 = vector.load %arg12[%c0_35, %c0_36] : memref<8x1xf32, #tpu.memory_space<vmem>>, vector<8x1xf32>
    tpu.vector_store %arg12[%c0_35, %c0_36], %51 {strides = array<i32>} : memref<8x1xf32, #tpu.memory_space<vmem>>, vector<8x1xf32>,
    %c0_i32_37 = arith.constant 0 : i32
    %73 = arith.cmpi eq, %arg3, %c0_i32_37 : i32
    %74 = arith.extui %73 : i1 to i32
    %c0_i32_38 = arith.constant 0 : i32
    %75 = arith.cmpi ne, %74, %c0_i32_38 : i32
    scf.if %75 {
      %c0_39 = arith.constant 0 : index
      %c0_40 = arith.constant 0 : index
      %76 = vector.load %arg14[%c0_39, %c0_40] : memref<8x8xf32, #tpu.memory_space<vmem>>, vector<8x8xf32>
      %c0_41 = arith.constant 0 : index
      %c0_42 = arith.constant 0 : index
      %77 = vector.load %arg13[%c0_41, %c0_42] : memref<8x1xf32, #tpu.memory_space<vmem>>, vector<8x1xf32>
      %78 = tpu.reciprocal %77 {approx = true} : vector<8x1xf32> -> vector<8x1xf32>
      %79 = vector.broadcast %78 : vector<8x1xf32> to vector<8x8xf32>
      %80 = arith.mulf %76, %79 : vector<8x8xf32>
      %81 = arith.truncf %80 : vector<8x8xf32> to vector<8x8xbf16>
      %c0_43 = arith.constant 0 : index
      %c0_44 = arith.constant 0 : index
      %c0_45 = arith.constant 0 : index
      %c0_46 = arith.constant 0 : index
      %82 = vector.load %arg11[%c0_43, %c0_44, %c0_45, %c0_46] : memref<1x1x8x8xbf16, #tpu.memory_space<vmem>>, vector<1x1x8x8xbf16>
      %83 = vector.shape_cast %82 : vector<1x1x8x8xbf16> to vector<8x8xbf16>
      %84 = vector.shape_cast %81 : vector<8x8xbf16> to vector<1x1x8x8xbf16>
      tpu.vector_store %arg11[%c0_43, %c0_44, %c0_45, %c0_46], %84 {strides = array<i32>} : memref<1x1x8x8xbf16, #tpu.memory_space<vmem>>, vector<1x1x8x8xbf16>,
    } else {
    }
    return
  }
  func.func @transform_0(%arg0: i32, %arg1: i32, %arg2: i32, %arg3: i32) -> (i32, i32, i32, i32) {
    %c0_i32 = arith.constant 0 : i32
    %c0_i32_0 = arith.constant 0 : i32
    return %arg1, %arg0, %arg2, %c0_i32 : i32, i32, i32, i32
  }
  func.func @transform_1(%arg0: i32, %arg1: i32, %arg2: i32, %arg3: i32) -> (i32, i32, i32, i32) {
    %c0_i32 = arith.constant 0 : i32
    %c0_i32_0 = arith.constant 0 : i32
    return %arg1, %arg0, %arg3, %c0_i32 : i32, i32, i32, i32
  }
  func.func @transform_2(%arg0: i32, %arg1: i32, %arg2: i32, %arg3: i32) -> (i32, i32, i32, i32) {
    %c0_i32 = arith.constant 0 : i32
    %c0_i32_0 = arith.constant 0 : i32
    return %arg1, %arg0, %arg3, %c0_i32 : i32, i32, i32, i32
  }
  func.func @transform_3(%arg0: i32, %arg1: i32, %arg2: i32, %arg3: i32) -> (i32, i32) {
    %c0_i32 = arith.constant 0 : i32
    %c0_i32_0 = arith.constant 0 : i32
    return %arg2, %c0_i32 : i32, i32
  }
  func.func @transform_4(%arg0: i32, %arg1: i32, %arg2: i32, %arg3: i32) -> (i32, i32) {
    %c0_i32 = arith.constant 0 : i32
    %c0_i32_0 = arith.constant 0 : i32
    return %arg2, %c0_i32 : i32, i32
  }
  func.func @transform_5(%arg0: i32, %arg1: i32, %arg2: i32, %arg3: i32) -> (i32, i32) {
    %c0_i32 = arith.constant 0 : i32
    %c0_i32_0 = arith.constant 0 : i32
    return %arg3, %c0_i32 : i32, i32
  }
  func.func @transform_6(%arg0: i32, %arg1: i32, %arg2: i32, %arg3: i32) -> (i32, i32) {
    %c0_i32 = arith.constant 0 : i32
    %c0_i32_0 = arith.constant 0 : i32
    return %arg3, %c0_i32 : i32, i32
  }
  func.func @transform_7(%arg0: i32, %arg1: i32, %arg2: i32, %arg3: i32) -> (i32, i32, i32, i32) {
    %c0_i32 = arith.constant 0 : i32
    %c0_i32_0 = arith.constant 0 : i32
    return %arg1, %arg0, %arg2, %c0_i32 : i32, i32, i32, i32
  }
}

module attributes {stable_mosaic.version = 11 : i64} {
  func.func @_norm_swiglu_res_kernel(%arg0: i32, %arg1: i32, %arg2: memref<8x32xf32, #tpu.memory_space<vmem>>, %arg3: memref<1x32xf32, #tpu.memory_space<vmem>>, %arg4: memref<32x64xbf16, #tpu.memory_space<vmem>>, %arg5: memref<32x64xbf16, #tpu.memory_space<vmem>>, %arg6: memref<64x32xbf16, #tpu.memory_space<vmem>>, %arg7: memref<8x32xf32, #tpu.memory_space<vmem>>, %arg8: memref<8x32xbf16, #tpu.memory_space<vmem>>, %arg9: memref<8x32xf32, #tpu.memory_space<vmem>>) attributes {dimension_semantics = [#tpu.dimension_semantics<parallel>, #tpu.dimension_semantics<arbitrary>], iteration_bounds = array<i64: 2, 1>, scalar_prefetch = 0 : i64, scratch_operands = 2 : i64, tpu.core_type = #tpu.core_type<tc>, window_params = [{transform_indices = @transform_0, window_bounds = array<i64: 8, 32>}, {pipeline_mode = #tpu.pipeline_mode<synchronous>, transform_indices = @transform_1, window_bounds = array<i64: 1, 32>}, {transform_indices = @transform_2, window_bounds = array<i64: 32, 64>}, {transform_indices = @transform_3, window_bounds = array<i64: 32, 64>}, {transform_indices = @transform_4, window_bounds = array<i64: 64, 32>}, {transform_indices = @transform_5, window_bounds = array<i64: 8, 32>}]} {
    %c0_i32 = arith.constant 0 : i32
    %0 = arith.cmpi eq, %arg1, %c0_i32 : i32
    %1 = arith.extui %0 : i1 to i32
    %c0_i32_0 = arith.constant 0 : i32
    %2 = arith.cmpi ne, %1, %c0_i32_0 : i32
    scf.if %2 {
      %c0_17 = arith.constant 0 : index
      %c0_18 = arith.constant 0 : index
      %24 = vector.load %arg2[%c0_17, %c0_18] : memref<8x32xf32, #tpu.memory_space<vmem>>, vector<8x32xf32>
      %25 = arith.mulf %24, %24 : vector<8x32xf32>
      %cst_19 = arith.constant dense<0.000000e+00> : vector<8xf32>
      %26 = vector.multi_reduction <add>, %25, %cst_19 [1] : vector<8x32xf32> to vector<8xf32>
      %27 = vector.shape_cast %26 : vector<8xf32> to vector<8x1xf32>
      %cst_20 = arith.constant 3.200000e+01 : f32
      %28 = vector.broadcast %cst_20 : f32 to vector<8x1xf32>
      %29 = arith.divf %27, %28 : vector<8x1xf32>
      %cst_21 = arith.constant 9.99999997E-7 : f32
      %30 = vector.broadcast %cst_21 : f32 to vector<8x1xf32>
      %31 = arith.addf %29, %30 : vector<8x1xf32>
      %32 = math.rsqrt %31 : vector<8x1xf32>
      %33 = vector.broadcast %32 : vector<8x1xf32> to vector<8x32xf32>
      %34 = arith.mulf %24, %33 : vector<8x32xf32>
      %c0_22 = arith.constant 0 : index
      %c0_23 = arith.constant 0 : index
      %35 = vector.load %arg3[%c0_22, %c0_23] : memref<1x32xf32, #tpu.memory_space<vmem>>, vector<1x32xf32>
      %36 = vector.broadcast %35 : vector<1x32xf32> to vector<8x32xf32>
      %37 = arith.mulf %34, %36 : vector<8x32xf32>
      %38 = arith.truncf %37 : vector<8x32xf32> to vector<8x32xbf16>
      %c0_24 = arith.constant 0 : index
      %c0_25 = arith.constant 0 : index
      %39 = vector.load %arg8[%c0_24, %c0_25] : memref<8x32xbf16, #tpu.memory_space<vmem>>, vector<8x32xbf16>
      tpu.vector_store %arg8[%c0_24, %c0_25], %38 {strides = array<i32>} : memref<8x32xbf16, #tpu.memory_space<vmem>>, vector<8x32xbf16>,
      %cst_26 = arith.constant 0.000000e+00 : f32
      %40 = vector.broadcast %cst_26 : f32 to vector<8x32xf32>
      %c0_27 = arith.constant 0 : index
      %c0_28 = arith.constant 0 : index
      %41 = vector.load %arg9[%c0_27, %c0_28] : memref<8x32xf32, #tpu.memory_space<vmem>>, vector<8x32xf32>
      tpu.vector_store %arg9[%c0_27, %c0_28], %40 {strides = array<i32>} : memref<8x32xf32, #tpu.memory_space<vmem>>, vector<8x32xf32>,
    } else {
    }
    %c0 = arith.constant 0 : index
    %c0_1 = arith.constant 0 : index
    %3 = vector.load %arg8[%c0, %c0_1] : memref<8x32xbf16, #tpu.memory_space<vmem>>, vector<8x32xbf16>
    %c0_2 = arith.constant 0 : index
    %c0_3 = arith.constant 0 : index
    %4 = vector.load %arg4[%c0_2, %c0_3] : memref<32x64xbf16, #tpu.memory_space<vmem>>, vector<32x64xbf16>
    %cst = arith.constant dense<0.000000e+00> : vector<8x64xf32>
    %5 = tpu.matmul %3, %4, %cst {dimension_numbers = #tpu.dot_dimension_numbers<[1], [0], [0], [1], [0, 0, 1, 1], [], []>} : vector<8x32xbf16>, vector<32x64xbf16>, vector<8x64xf32> -> vector<8x64xf32>
    %c0_4 = arith.constant 0 : index
    %c0_5 = arith.constant 0 : index
    %6 = vector.load %arg5[%c0_4, %c0_5] : memref<32x64xbf16, #tpu.memory_space<vmem>>, vector<32x64xbf16>
    %cst_6 = arith.constant dense<0.000000e+00> : vector<8x64xf32>
    %7 = tpu.matmul %3, %6, %cst_6 {dimension_numbers = #tpu.dot_dimension_numbers<[1], [0], [0], [1], [0, 0, 1, 1], [], []>} : vector<8x32xbf16>, vector<32x64xbf16>, vector<8x64xf32> -> vector<8x64xf32>
    %8 = arith.negf %5 : vector<8x64xf32>
    %9 = math.exp %8 : vector<8x64xf32>
    %cst_7 = arith.constant 1.000000e+00 : f32
    %10 = vector.broadcast %cst_7 : f32 to vector<8x64xf32>
    %11 = arith.addf %10, %9 : vector<8x64xf32>
    %12 = arith.divf %10, %11 : vector<8x64xf32>
    %13 = arith.mulf %5, %12 : vector<8x64xf32>
    %14 = arith.mulf %13, %7 : vector<8x64xf32>
    %15 = arith.truncf %14 : vector<8x64xf32> to vector<8x64xbf16>
    %c0_8 = arith.constant 0 : index
    %c0_9 = arith.constant 0 : index
    %16 = vector.load %arg9[%c0_8, %c0_9] : memref<8x32xf32, #tpu.memory_space<vmem>>, vector<8x32xf32>
    %c0_10 = arith.constant 0 : index
    %c0_11 = arith.constant 0 : index
    %17 = vector.load %arg6[%c0_10, %c0_11] : memref<64x32xbf16, #tpu.memory_space<vmem>>, vector<64x32xbf16>
    %cst_12 = arith.constant dense<0.000000e+00> : vector<8x32xf32>
    %18 = tpu.matmul %15, %17, %cst_12 {dimension_numbers = #tpu.dot_dimension_numbers<[1], [0], [0], [1], [0, 0, 1, 1], [], []>} : vector<8x64xbf16>, vector<64x32xbf16>, vector<8x32xf32> -> vector<8x32xf32>
    %19 = arith.addf %16, %18 : vector<8x32xf32>
    %c0_13 = arith.constant 0 : index
    %c0_14 = arith.constant 0 : index
    %20 = vector.load %arg9[%c0_13, %c0_14] : memref<8x32xf32, #tpu.memory_space<vmem>>, vector<8x32xf32>
    tpu.vector_store %arg9[%c0_13, %c0_14], %19 {strides = array<i32>} : memref<8x32xf32, #tpu.memory_space<vmem>>, vector<8x32xf32>,
    %c0_i32_15 = arith.constant 0 : i32
    %21 = arith.cmpi eq, %arg1, %c0_i32_15 : i32
    %22 = arith.extui %21 : i1 to i32
    %c0_i32_16 = arith.constant 0 : i32
    %23 = arith.cmpi ne, %22, %c0_i32_16 : i32
    scf.if %23 {
      %c0_17 = arith.constant 0 : index
      %c0_18 = arith.constant 0 : index
      %24 = vector.load %arg9[%c0_17, %c0_18] : memref<8x32xf32, #tpu.memory_space<vmem>>, vector<8x32xf32>
      %c0_19 = arith.constant 0 : index
      %c0_20 = arith.constant 0 : index
      %25 = vector.load %arg2[%c0_19, %c0_20] : memref<8x32xf32, #tpu.memory_space<vmem>>, vector<8x32xf32>
      %26 = arith.addf %24, %25 : vector<8x32xf32>
      %c0_21 = arith.constant 0 : index
      %c0_22 = arith.constant 0 : index
      %27 = vector.load %arg7[%c0_21, %c0_22] : memref<8x32xf32, #tpu.memory_space<vmem>>, vector<8x32xf32>
      tpu.vector_store %arg7[%c0_21, %c0_22], %26 {strides = array<i32>} : memref<8x32xf32, #tpu.memory_space<vmem>>, vector<8x32xf32>,
    } else {
    }
    return
  }
  func.func @transform_0(%arg0: i32, %arg1: i32) -> (i32, i32) {
    %c0_i32 = arith.constant 0 : i32
    %c0_i32_0 = arith.constant 0 : i32
    return %arg0, %c0_i32 : i32, i32
  }
  func.func @transform_1(%arg0: i32, %arg1: i32) -> (i32, i32) {
    %c0_i32 = arith.constant 0 : i32
    %c0_i32_0 = arith.constant 0 : i32
    %c0_i32_1 = arith.constant 0 : i32
    return %c0_i32, %c0_i32_0 : i32, i32
  }
  func.func @transform_2(%arg0: i32, %arg1: i32) -> (i32, i32) {
    %c0_i32 = arith.constant 0 : i32
    %c0_i32_0 = arith.constant 0 : i32
    return %c0_i32, %arg1 : i32, i32
  }
  func.func @transform_3(%arg0: i32, %arg1: i32) -> (i32, i32) {
    %c0_i32 = arith.constant 0 : i32
    %c0_i32_0 = arith.constant 0 : i32
    return %c0_i32, %arg1 : i32, i32
  }
  func.func @transform_4(%arg0: i32, %arg1: i32) -> (i32, i32) {
    %c0_i32 = arith.constant 0 : i32
    %c0_i32_0 = arith.constant 0 : i32
    return %arg1, %c0_i32 : i32, i32
  }
  func.func @transform_5(%arg0: i32, %arg1: i32) -> (i32, i32) {
    %c0_i32 = arith.constant 0 : i32
    %c0_i32_0 = arith.constant 0 : i32
    return %arg0, %c0_i32 : i32, i32
  }
}

module attributes {stable_mosaic.version = 11 : i64} {
  func.func @_norm_matmul_bias_kernel(%arg0: i32, %arg1: i32, %arg2: memref<8x32xf32, #tpu.memory_space<vmem>>, %arg3: memref<1x32xf32, #tpu.memory_space<vmem>>, %arg4: memref<32x64xbf16, #tpu.memory_space<vmem>>, %arg5: memref<1x64xf32, #tpu.memory_space<vmem>>, %arg6: memref<8x64xf32, #tpu.memory_space<vmem>>, %arg7: memref<8x32xbf16, #tpu.memory_space<vmem>>) attributes {dimension_semantics = [#tpu.dimension_semantics<parallel>, #tpu.dimension_semantics<arbitrary>], iteration_bounds = array<i64: 2, 1>, scalar_prefetch = 0 : i64, scratch_operands = 1 : i64, tpu.core_type = #tpu.core_type<tc>, window_params = [{transform_indices = @transform_0, window_bounds = array<i64: 8, 32>}, {pipeline_mode = #tpu.pipeline_mode<synchronous>, transform_indices = @transform_1, window_bounds = array<i64: 1, 32>}, {transform_indices = @transform_2, window_bounds = array<i64: 32, 64>}, {transform_indices = @transform_3, window_bounds = array<i64: 1, 64>}, {transform_indices = @transform_4, window_bounds = array<i64: 8, 64>}]} {
    %c0_i32 = arith.constant 0 : i32
    %0 = arith.cmpi eq, %arg1, %c0_i32 : i32
    %1 = arith.extui %0 : i1 to i32
    %c0_i32_0 = arith.constant 0 : i32
    %2 = arith.cmpi ne, %1, %c0_i32_0 : i32
    scf.if %2 {
      %c0_8 = arith.constant 0 : index
      %c0_9 = arith.constant 0 : index
      %10 = vector.load %arg2[%c0_8, %c0_9] : memref<8x32xf32, #tpu.memory_space<vmem>>, vector<8x32xf32>
      %11 = arith.mulf %10, %10 : vector<8x32xf32>
      %cst_10 = arith.constant dense<0.000000e+00> : vector<8xf32>
      %12 = vector.multi_reduction <add>, %11, %cst_10 [1] : vector<8x32xf32> to vector<8xf32>
      %13 = vector.shape_cast %12 : vector<8xf32> to vector<8x1xf32>
      %cst_11 = arith.constant 3.200000e+01 : f32
      %14 = vector.broadcast %cst_11 : f32 to vector<8x1xf32>
      %15 = arith.divf %13, %14 : vector<8x1xf32>
      %cst_12 = arith.constant 9.99999997E-7 : f32
      %16 = vector.broadcast %cst_12 : f32 to vector<8x1xf32>
      %17 = arith.addf %15, %16 : vector<8x1xf32>
      %18 = math.rsqrt %17 : vector<8x1xf32>
      %19 = vector.broadcast %18 : vector<8x1xf32> to vector<8x32xf32>
      %20 = arith.mulf %10, %19 : vector<8x32xf32>
      %c0_13 = arith.constant 0 : index
      %c0_14 = arith.constant 0 : index
      %21 = vector.load %arg3[%c0_13, %c0_14] : memref<1x32xf32, #tpu.memory_space<vmem>>, vector<1x32xf32>
      %22 = vector.broadcast %21 : vector<1x32xf32> to vector<8x32xf32>
      %23 = arith.mulf %20, %22 : vector<8x32xf32>
      %24 = arith.truncf %23 : vector<8x32xf32> to vector<8x32xbf16>
      %c0_15 = arith.constant 0 : index
      %c0_16 = arith.constant 0 : index
      %25 = vector.load %arg7[%c0_15, %c0_16] : memref<8x32xbf16, #tpu.memory_space<vmem>>, vector<8x32xbf16>
      tpu.vector_store %arg7[%c0_15, %c0_16], %24 {strides = array<i32>} : memref<8x32xbf16, #tpu.memory_space<vmem>>, vector<8x32xbf16>,
    } else {
    }
    %c0 = arith.constant 0 : index
    %c0_1 = arith.constant 0 : index
    %3 = vector.load %arg7[%c0, %c0_1] : memref<8x32xbf16, #tpu.memory_space<vmem>>, vector<8x32xbf16>
    %c0_2 = arith.constant 0 : index
    %c0_3 = arith.constant 0 : index
    %4 = vector.load %arg4[%c0_2, %c0_3] : memref<32x64xbf16, #tpu.memory_space<vmem>>, vector<32x64xbf16>
    %cst = arith.constant dense<0.000000e+00> : vector<8x64xf32>
    %5 = tpu.matmul %3, %4, %cst {dimension_numbers = #tpu.dot_dimension_numbers<[1], [0], [0], [1], [0, 0, 1, 1], [], []>} : vector<8x32xbf16>, vector<32x64xbf16>, vector<8x64xf32> -> vector<8x64xf32>
    %c0_4 = arith.constant 0 : index
    %c0_5 = arith.constant 0 : index
    %6 = vector.load %arg5[%c0_4, %c0_5] : memref<1x64xf32, #tpu.memory_space<vmem>>, vector<1x64xf32>
    %7 = vector.broadcast %6 : vector<1x64xf32> to vector<8x64xf32>
    %8 = arith.addf %5, %7 : vector<8x64xf32>
    %c0_6 = arith.constant 0 : index
    %c0_7 = arith.constant 0 : index
    %9 = vector.load %arg6[%c0_6, %c0_7] : memref<8x64xf32, #tpu.memory_space<vmem>>, vector<8x64xf32>
    tpu.vector_store %arg6[%c0_6, %c0_7], %8 {strides = array<i32>} : memref<8x64xf32, #tpu.memory_space<vmem>>, vector<8x64xf32>,
    return
  }
  func.func @transform_0(%arg0: i32, %arg1: i32) -> (i32, i32) {
    %c0_i32 = arith.constant 0 : i32
    %c0_i32_0 = arith.constant 0 : i32
    return %arg0, %c0_i32 : i32, i32
  }
  func.func @transform_1(%arg0: i32, %arg1: i32) -> (i32, i32) {
    %c0_i32 = arith.constant 0 : i32
    %c0_i32_0 = arith.constant 0 : i32
    %c0_i32_1 = arith.constant 0 : i32
    return %c0_i32, %c0_i32_0 : i32, i32
  }
  func.func @transform_2(%arg0: i32, %arg1: i32) -> (i32, i32) {
    %c0_i32 = arith.constant 0 : i32
    %c0_i32_0 = arith.constant 0 : i32
    return %c0_i32, %arg1 : i32, i32
  }
  func.func @transform_3(%arg0: i32, %arg1: i32) -> (i32, i32) {
    %c0_i32 = arith.constant 0 : i32
    %c0_i32_0 = arith.constant 0 : i32
    return %c0_i32, %arg1 : i32, i32
  }
  func.func @transform_4(%arg0: i32, %arg1: i32) -> (i32, i32) {
    %c0_i32 = arith.constant 0 : i32
    return %arg0, %arg1 : i32, i32
  }
}

</mosaic_0001>

<llo_original>
// kernel: transformer_forward.11
$region0: #{transformer_forward.11}
  #allocation0 [shape = 'u32[]', space=smem, size = 0x4, offset = 0x4, fixed_abs, tag = 'smem constant byte address 0x4 - core index']
  #allocation1 [shape = 'u32[144,128]{1,0:T(1,128)}', space=vmem, size = 0x12000, scoped, tag = 'internal scratch']
  #allocation2 [shape = 'f32[8,32]{1,0:T(8,128)}', space=vmem, size = 0x1000, scoped, tag = 'scratch operand']
  %s0 = inlined_call_operand.vmem [shape: bf16[4,16,8], index: 0, kind: input, shape index: {}]
  %s1 = inlined_call_operand.vmem [shape: bf16[4,8,32], index: 1, kind: input, shape index: {}]
  %s2 = inlined_call_operand.vmem [shape: f32[16,32], index: 2, kind: input, shape index: {}]
  %s3 = inlined_call_operand.vmem [shape: f32[16,32], index: 3, kind: output, shape index: {}]
  %s4 = sld [smem:[#allocation0]]
  $region53: #{transformer_forward.11} parent=0
    _
  %s6 = ssub.s32 1, %s4
  %s7 = scalar_select 0, %s6, %s4
  loop: start=0, step=1, limit=10
  $region2: #{transformer_forward.11} parent=0 // loop_pre_header
    _
  $region3: #{transformer_forward.11} parent=0 // loop_header
    %s9 = sphi 0, %s13
    %p10 = scmp.ge.s32.totalorder %s9, 10
    %s16 = sphi 0, %s28
    %s17 = sphi 0, %s24
    %s18 = sphi 0, %s16
    %s19 = sphi 0, %s17
    %s20 = sphi 0, %s18
    %s21 = sphi 0, %s19
    %s33 = sphi 0, %s35
    %s36 = sphi 0, %s33
    %s37 = sphi 0, %s36
    %s53 = sphi 0, %s37
    %s59 = sphi 0, %s61
    %s62 = sphi 0, %s59
    %s63 = sphi 0, %s62
    %s79 = sphi 0, %s63
    %s85 = sphi 0, %s87
    %s88 = sphi 0, %s85
    %s89 = sphi 0, %s88
    %s105 = sphi 0, %s89
    %s111 = sphi 0, %s113
    %s114 = sphi 0, %s111
    %s115 = sphi 0, %s114
    %s131 = sphi 0, %s115
  $region4: #{transformer_forward.11} parent=0 // loop_header_branch
    %12 = sbr.rel (%p10) target = $region8
  $region5: #{transformer_forward.11} parent=0 // loop_body
    %s14 = ssub.s32 %s9, 1
    %s15 = ssub.s32 %s9, 2
    %s22 = sadd.s32 1, %s17
    %p23 = scmp.ge.s32.totalorder %s22, 4
    %s24 = scalar_select %p23, 0, %s22
    %s25 = sadd.s32 1, %s16
    %s26 = scalar_select %p23, %s25, %s16
    %p27 = scmp.ge.s32.totalorder %s26, 2
    %s28 = scalar_select %p27, 0, %s26
    %s29 = ssub.s32 %s17, %s24
    %s30 = ssub.s32 %s16, %s28
    %s31 = sor.u32 %s29, %s30
    %p32 = scmp.eq.s32.totalorder %s31, 0
    %s34 = sadd.s32 %s33, 1
    %s35 = scalar_select %p32, %s33, %s34
    %p38 = pneg %p32
    %p39 = scmp.eq.s32.totalorder %s9, 7
    %p40 = por %p38, %p39
    %p41 = scmp.ne.s32.totalorder %s33, %s36
    %p42 = scmp.eq.s32.totalorder %s9, 0
    %p43 = por %p41, %p42
    %p44 = scmp.ne.s32.totalorder %s33, %s36
    %p45 = scmp.eq.s32.totalorder %s14, 7
    %p46 = por %p44, %p45
    %p47 = scmp.ne.s32.totalorder %s36, %s37
    %p48 = scmp.eq.s32.totalorder %s14, 0
    %p49 = por %p47, %p48
    %p50 = scmp.ne.s32.totalorder %s36, %s37
    %p51 = scmp.eq.s32.totalorder %s15, 7
    %p52 = por %p50, %p51
    %p54 = scmp.ne.s32.totalorder %s37, %s53
    %p55 = scmp.eq.s32.totalorder %s15, 0
    %p56 = por %p54, %p55
    %s57 = ssub.s32 %s17, %s24
    %p58 = scmp.eq.s32.totalorder %s57, 0
    %s60 = sadd.s32 %s59, 1
    %s61 = scalar_select %p58, %s59, %s60
    %p64 = pneg %p58
    %p65 = scmp.eq.s32.totalorder %s9, 7
    %p66 = por %p64, %p65
    %p67 = scmp.ne.s32.totalorder %s59, %s62
    %p68 = scmp.eq.s32.totalorder %s9, 0
    %p69 = por %p67, %p68
    %p70 = scmp.ne.s32.totalorder %s59, %s62
    %p71 = scmp.eq.s32.totalorder %s14, 7
    %p72 = por %p70, %p71
    %p73 = scmp.ne.s32.totalorder %s62, %s63
    %p74 = scmp.eq.s32.totalorder %s14, 0
    %p75 = por %p73, %p74
    %p76 = scmp.ne.s32.totalorder %s62, %s63
    %p77 = scmp.eq.s32.totalorder %s15, 7
    %p78 = por %p76, %p77
    %p80 = scmp.ne.s32.totalorder %s63, %s79
    %p81 = scmp.eq.s32.totalorder %s15, 0
    %p82 = por %p80, %p81
    %s83 = ssub.s32 %s16, %s28
    %p84 = scmp.eq.s32.totalorder %s83, 0
    %s86 = sadd.s32 %s85, 1
    %s87 = scalar_select %p84, %s85, %s86
    %p90 = pneg %p84
    %p91 = scmp.eq.s32.totalorder %s9, 7
    %p92 = por %p90, %p91
    %p93 = scmp.ne.s32.totalorder %s85, %s88
    %p94 = scmp.eq.s32.totalorder %s9, 0
    %p95 = por %p93, %p94
    %p96 = scmp.ne.s32.totalorder %s85, %s88
    %p97 = scmp.eq.s32.totalorder %s14, 7
    %p98 = por %p96, %p97
    %p99 = scmp.ne.s32.totalorder %s88, %s89
    %p100 = scmp.eq.s32.totalorder %s14, 0
    %p101 = por %p99, %p100
    %p102 = scmp.ne.s32.totalorder %s88, %s89
    %p103 = scmp.eq.s32.totalorder %s15, 7
    %p104 = por %p102, %p103
    %p106 = scmp.ne.s32.totalorder %s89, %s105
    %p107 = scmp.eq.s32.totalorder %s15, 0
    %p108 = por %p106, %p107
    %s109 = ssub.s32 %s16, %s28
    %p110 = scmp.eq.s32.totalorder %s109, 0
    %s112 = sadd.s32 %s111, 1
    %s113 = scalar_select %p110, %s111, %s112
    %p116 = pneg %p110
    %p117 = scmp.eq.s32.totalorder %s9, 7
    %p118 = por %p116, %p117
    %p119 = scmp.ne.s32.totalorder %s111, %s114
    %p120 = scmp.eq.s32.totalorder %s9, 0
    %p121 = por %p119, %p120
    %p122 = scmp.ne.s32.totalorder %s111, %s114
    %p123 = scmp.eq.s32.totalorder %s14, 7
    %p124 = por %p122, %p123
    %p125 = scmp.ne.s32.totalorder %s114, %s115
    %p126 = scmp.eq.s32.totalorder %s14, 0
    %p127 = por %p125, %p126
    %p128 = scmp.ne.s32.totalorder %s114, %s115
    %p129 = scmp.eq.s32.totalorder %s15, 7
    %p130 = por %p128, %p129
    %p132 = scmp.ne.s32.totalorder %s115, %s131
    %p133 = scmp.eq.s32.totalorder %s15, 0
    %p134 = por %p132, %p133
    %p135 = scmp.le.s32.totalorder 1, %s9
    %p136 = scmp.lt.s32.totalorder %s9, 9
    %p137 = pnand %p135, %p136
    %p138 = pneg %p137
    // Predicated region
    $region9: #{transformer_forward.11} parent=5 // pred_check
      _
    $region10: #{transformer_forward.11} parent=5 // pred_check_branch
      %140 = sbr.rel (%p137) target = $region12
    $region11: #{transformer_forward.11} parent=5 // pred_region
      %s141 = ssub.s32 %s9, 1
    $region12: #{transformer_forward.11} parent=5 // pred_fallthru
      _
    %p142 = scmp.lt.s32.totalorder %s9, 8
    // Predicated region
    $region13: #{transformer_forward.11} parent=5 // pred_check
      %p143 = pneg %p142
    $region14: #{transformer_forward.11} parent=5 // pred_check_branch
      %145 = sbr.rel (%p143) target = $region16
    $region15: #{transformer_forward.11} parent=5 // pred_region
      // Predicated region
      $region17: #{transformer_forward.11} parent=15 // pred_check
        %p146 = pneg %p43
      $region18: #{transformer_forward.11} parent=15 // pred_check_branch
        %148 = sbr.rel (%p146) target = $region20
      $region19: #{transformer_forward.11} parent=15 // pred_region
        %p149 = scmp.lt.s32.totalorder %s17, 3
        %s150 = scalar_select %p149, %s17, 3
        %p151 = scmp.lt.s32.totalorder %s16, 1
        %s152 = scalar_select %p151, %s16, 1
        %s153 = smul.addr %s150, 2
        %s154 = sadd.s32 %s152, %s153
        %s155 = smul.addr %s154, 4
        %s156 = scalar_lea.vmem %s0, %s155
      $region20: #{transformer_forward.11} parent=15 // pred_fallthru
        _
      // Predicated region
      $region21: #{transformer_forward.11} parent=15 // pred_check
        %p157 = pneg %p69
      $region22: #{transformer_forward.11} parent=15 // pred_check_branch
        %159 = sbr.rel (%p157) target = $region24
      $region23: #{transformer_forward.11} parent=15 // pred_region
        %p160 = scmp.lt.s32.totalorder %s17, 3
        %s161 = scalar_select %p160, %s17, 3
        %s162 = smul.addr %s161, 4
        %s163 = scalar_lea.vmem %s1, %s162
      $region24: #{transformer_forward.11} parent=15 // pred_fallthru
        _
      // Predicated region
      $region25: #{transformer_forward.11} parent=15 // pred_check
        %p164 = pneg %p95
      $region26: #{transformer_forward.11} parent=15 // pred_check_branch
        %166 = sbr.rel (%p164) target = $region28
      $region27: #{transformer_forward.11} parent=15 // pred_region
        %p167 = scmp.lt.s32.totalorder %s16, 1
        %s168 = scalar_select %p167, %s16, 1
        %s169 = smul.addr %s168, 8
        %s170 = scalar_lea.vmem %s2, %s169
      $region28: #{transformer_forward.11} parent=15 // pred_fallthru
        _
    $region16: #{transformer_forward.11} parent=5 // pred_fallthru
      _
    %p171 = scmp.le.s32.totalorder 1, %s9
    %p172 = scmp.lt.s32.totalorder %s9, 9
    %p173 = pnand %p171, %p172
    %p174 = pneg %p173
    // Predicated region
    $region29: #{transformer_forward.11} parent=5 // pred_check
      _
    $region30: #{transformer_forward.11} parent=5 // pred_check_branch
      %176 = sbr.rel (%p173) target = $region32
    $region31: #{transformer_forward.11} parent=5 // pred_region
      %s177 = ssub.s32 %s9, 1
      %p178 = scmp.lt.s32.totalorder %s19, 3
      %s179 = scalar_select %p178, %s19, 3
      %p180 = scmp.lt.s32.totalorder %s18, 1
      %s181 = scalar_select %p180, %s18, 1
      %s182 = smul.addr %s179, 2
      %s183 = sadd.s32 %s181, %s182
      %s184 = smul.addr %s183, 4
      %s185 = scalar_lea.vmem %s0, %s184
      %p186 = pneg %p49
      %p187 = pneg %p46
      %p188 = scmp.lt.s32.totalorder %s19, 3
      %s189 = scalar_select %p188, %s19, 3
      %s190 = smul.addr %s189, 4
      %s191 = scalar_lea.vmem %s1, %s190
      %p192 = pneg %p75
      %p193 = pneg %p72
      %p194 = scmp.lt.s32.totalorder %s18, 1
      %s195 = scalar_select %p194, %s18, 1
      %s196 = smul.addr %s195, 8
      %s197 = scalar_lea.vmem %s2, %s196
      %p198 = pneg %p101
      %p199 = pneg %p98
      %p200 = pneg %p127
      %p201 = pneg %p124
      %p202 = scmp.lt.s32.totalorder %s18, 1
      %s203 = scalar_select %p202, %s18, 1
      %s204 = smul.addr %s203, 8
      %s205 = scalar_lea.vmem %s3, %s204
      %p206 = scmp.lt.s32.totalorder %s19, 3
      %s207 = scalar_select %p206, %s19, 3
      %p208 = scmp.lt.s32.totalorder %s18, 1
      %s209 = scalar_select %p208, %s18, 1
      %s210 = smul.addr %s207, 2
      %s211 = sadd.s32 %s209, %s210
      %s212 = smul.addr %s211, 4
      %s213 = scalar_lea.vmem %s0, %s212
      %p214 = scmp.lt.s32.totalorder %s19, 3
      %s215 = scalar_select %p214, %s19, 3
      %s216 = smul.addr %s215, 4
      %s217 = scalar_lea.vmem %s1, %s216
      %p218 = scmp.lt.s32.totalorder %s18, 1
      %s219 = scalar_select %p218, %s18, 1
      %s220 = smul.addr %s219, 8
      %s221 = scalar_lea.vmem %s2, %s220
      %p222 = scmp.lt.s32.totalorder %s18, 1
      %s223 = scalar_select %p222, %s18, 1
      %s224 = smul.addr %s223, 8
      %s225 = scalar_lea.vmem %s3, %s224
      %p227 = scmp.eq.s32.totalorder %s19, 0
      // Predicated region
      $region33: #{transformer_forward.11} parent=31 // pred_check
        %p228 = pneg %p227
      $region34: #{transformer_forward.11} parent=31 // pred_check_branch
        %230 = sbr.rel (%p228) target = $region36
      $region35: #{transformer_forward.11} parent=31 // pred_region
        %vm231 = vcmask 261120
        %232 = vst.msk [vmem:[#allocation2] sm:$0xff] %vm231, 0.0
      $region36: #{transformer_forward.11} parent=31 // pred_fallthru
        _
      %v233 = vld [vmem:[#allocation2] sm:$0xff]
      %v234 = vld [vmem:[%s213] sm:$0xf]
      %v235 = vld [vmem:[%s217] sm:$0xf]
      %vm236 = vcmask 64512
      %v238 = vsel %vm236, %v234, 0
      %vm240 = vcmask 1043456
      %v242 = vsel %vm240, %v235, 0
      %244 = vmatprep.subr.bf16.mxu0 0
      %245 = vmatpush1.bf16.msra.mxu0 0
      %246 = vmatprep.subr.bf16.mxu0 0
      %247 = vmatpush1.bf16.msra.mxu0 0
      %248 = vmatprep.subr.bf16.mxu0 0
      %249 = vmatpush1.bf16.msra.mxu0 0
      %250 = vmatprep.subr.bf16.mxu0 0
      %251 = vmatpush1.bf16.msra.mxu0 0
      %252 = vmatprep.subr.bf16.mxu0 0
      %253 = vmatpush1.bf16.msra.mxu0 0
      %254 = vmatprep.subr.bf16.mxu0 0
      %255 = vmatpush1.bf16.msra.mxu0 0
      %256 = vmatprep.subr.bf16.mxu0 0
      %257 = vmatpush1.bf16.msra.mxu0 0
      %258 = vmatprep.subr.bf16.mxu0 0
      %259 = vmatpush1.bf16.msra.mxu0 %v242
      %260 = vmatprep.subr.bf16.mxu0 0
      %261 = vmatpush2.bf16.msra.mxu0 0
      %262 = vmatprep.subr.bf16.mxu0 0
      %263 = vmatpush2.bf16.msra.mxu0 0
      %264 = vmatprep.subr.bf16.mxu0 0
      %265 = vmatpush2.bf16.msra.mxu0 0
      %266 = vmatprep.subr.bf16.mxu0 0
      %267 = vmatpush2.bf16.msra.mxu0 0
      %268 = vmatprep.subr.bf16.mxu0 0
      %269 = vmatpush2.bf16.msra.mxu0 0
      %270 = vmatprep.subr.bf16.mxu0 0
      %271 = vmatpush2.bf16.msra.mxu0 0
      %272 = vmatprep.subr.bf16.mxu0 0
      %273 = vmatpush2.bf16.msra.mxu0 0
      %274 = vmatprep.subr.bf16.mxu0 0
      %275 = vmatpush2.bf16.msra.mxu0 0
      %276 = vmatprep.mubr.bf16.mxu0 0
      %277 = vmatmul.mubr.bf16.gmra.mxu0 %v238
      %v278 = vpop.f32.mrf.mxu0
      %v279 = vadd.f32 0.0, %v278
      %v280 = vpop.f32.mrf.mxu0
      %v281 = vpop.f32.mrf.mxu0
      %v282 = vpop.f32.mrf.mxu0
      %283 = vdwg.mxu0
      %v284 = vadd.f32 %v233, %v279
      %vm285 = vcmask 261120
      %286 = vst.msk [vmem:[#allocation2] sm:$0xff] %vm285, %v284
      %p287 = scmp.eq.s32.totalorder %s19, 3
      // Predicated region
      $region37: #{transformer_forward.11} parent=31 // pred_check
        %p288 = pneg %p287
      $region38: #{transformer_forward.11} parent=31 // pred_check_branch
        %290 = sbr.rel (%p288) target = $region40
      $region39: #{transformer_forward.11} parent=31 // pred_region
        %v291 = vld [vmem:[#allocation2] sm:$0xff]
        %v292 = vld [vmem:[%s221] sm:$0xff]
        %v293 = vadd.f32 %v291, %v292
        %294 = vst.msk [vmem:[%s225] sm:$0xff] %vm285, %v293
      $region40: #{transformer_forward.11} parent=31 // pred_fallthru
        _
      %p295 = scmp.lt.s32.totalorder %s18, 1
      %s296 = scalar_select %p295, %s18, 1
      %s297 = smul.addr %s296, 8
      %s298 = scalar_lea.vmem %s3, %s297
      // Predicated region
      $region41: #{transformer_forward.11} parent=31 // pred_check
        %p299 = pneg %p124
      $region42: #{transformer_forward.11} parent=31 // pred_check_branch
        %301 = sbr.rel (%p299) target = $region44
      $region43: #{transformer_forward.11} parent=31 // pred_region
        _
      $region44: #{transformer_forward.11} parent=31 // pred_fallthru
        _
    $region32: #{transformer_forward.11} parent=5 // pred_fallthru
      _
    %p302 = scmp.le.s32.totalorder 2, %s9
    // Predicated region
    $region45: #{transformer_forward.11} parent=5 // pred_check
      %p303 = pneg %p302
    $region46: #{transformer_forward.11} parent=5 // pred_check_branch
      %305 = sbr.rel (%p303) target = $region48
    $region47: #{transformer_forward.11} parent=5 // pred_region
      %s306 = ssub.s32 %s9, 2
      // Predicated region
      $region49: #{transformer_forward.11} parent=47 // pred_check
        %p307 = pneg %p130
      $region50: #{transformer_forward.11} parent=47 // pred_check_branch
        %309 = sbr.rel (%p307) target = $region52
      $region51: #{transformer_forward.11} parent=47 // pred_region
        %p310 = scmp.lt.s32.totalorder %s20, 1
        %s311 = scalar_select %p310, %s20, 1
        %s312 = smul.addr %s311, 8
        %s313 = scalar_lea.vmem %s3, %s312
      $region52: #{transformer_forward.11} parent=47 // pred_fallthru
        _
    $region48: #{transformer_forward.11} parent=5 // pred_fallthru
      _
  $region6: #{transformer_forward.11} parent=0 // loop_footer
    %s13 = sadd.s32 1, %s9
  $region7: #{transformer_forward.11} parent=0 // loop_footer_branch
    %8 = sbr.rel target = $region3
  $region8: #{transformer_forward.11} parent=0 // loop_exit
    _

// kernel: transformer_forward.9
$region0: #{transformer_forward.9}
  #allocation0 [shape = 'u32[]', space=smem, size = 0x4, offset = 0x4, fixed_abs, tag = 'smem constant byte address 0x4 - core index']
  #allocation1 [shape = 'u32[144,128]{1,0:T(1,128)}', space=vmem, size = 0x12000, scoped, tag = 'internal scratch']
  #allocation2 [shape = 'bf16[8,32]{1,0:T(8,128)(2,1)}', space=vmem, size = 0x800, scoped, tag = 'scratch operand']
  %s0 = inlined_call_operand.vmem [shape: f32[16,32], index: 0, kind: input, shape index: {}]
  %s1 = inlined_call_operand.vmem [shape: f32[1,32], index: 1, kind: input, shape index: {}]
  %s2 = inlined_call_operand.vmem [shape: bf16[4,32,24], index: 2, kind: input, shape index: {}]
  %s3 = inlined_call_operand.vmem [shape: bf16[4,16,8], index: 3, kind: output, shape index: {0}]
  %s4 = inlined_call_operand.vmem [shape: bf16[4,16,8], index: 4, kind: output, shape index: {1}]
  %s5 = inlined_call_operand.vmem [shape: bf16[4,16,8], index: 5, kind: output, shape index: {2}]
  %6 = xla_tuple %s3, %s4, %s5
  %s7 = sld [smem:[#allocation0]]
  $region65: #{transformer_forward.9} parent=0
    _
  %s9 = ssub.s32 1, %s7
  %s10 = scalar_select 0, %s9, %s7
  loop: start=0, step=1, limit=10
  $region2: #{transformer_forward.9} parent=0 // loop_pre_header
    _
  $region3: #{transformer_forward.9} parent=0 // loop_header
    %s12 = sphi 0, %s16
    %p13 = scmp.ge.s32.totalorder %s12, 10
    %s19 = sphi 0, %s31
    %s20 = sphi 0, %s27
    %s21 = sphi 0, %s19
    %s22 = sphi 0, %s20
    %s23 = sphi 0, %s21
    %s24 = sphi 0, %s22
    %s34 = sphi 0, %s36
    %s37 = sphi 0, %s34
    %s38 = sphi 0, %s37
    %s54 = sphi 0, %s38
    %s58 = sphi 0, %s58
    %s60 = sphi 0, %s58
    %s61 = sphi 0, %s60
    %s75 = sphi 0, %s61
    %s81 = sphi 0, %s83
    %s84 = sphi 0, %s81
    %s85 = sphi 0, %s84
    %s101 = sphi 0, %s85
    %s109 = sphi 0, %s111
    %s112 = sphi 0, %s109
    %s113 = sphi 0, %s112
    %s129 = sphi 0, %s113
    %s137 = sphi 0, %s139
    %s140 = sphi 0, %s137
    %s141 = sphi 0, %s140
    %s157 = sphi 0, %s141
    %s165 = sphi 0, %s167
    %s168 = sphi 0, %s165
    %s169 = sphi 0, %s168
    %s185 = sphi 0, %s169
  $region4: #{transformer_forward.9} parent=0 // loop_header_branch
    %15 = sbr.rel (%p13) target = $region8
  $region5: #{transformer_forward.9} parent=0 // loop_body
    %s17 = ssub.s32 %s12, 1
    %s18 = ssub.s32 %s12, 2
    %s25 = sadd.s32 1, %s20
    %p26 = scmp.ge.s32.totalorder %s25, 4
    %s27 = scalar_select %p26, 0, %s25
    %s28 = sadd.s32 1, %s19
    %s29 = scalar_select %p26, %s28, %s19
    %p30 = scmp.ge.s32.totalorder %s29, 2
    %s31 = scalar_select %p30, 0, %s29
    %s32 = ssub.s32 %s19, %s31
    %p33 = scmp.eq.s32.totalorder %s32, 0
    %s35 = sadd.s32 %s34, 1
    %s36 = scalar_select %p33, %s34, %s35
    %p39 = pneg %p33
    %p40 = scmp.eq.s32.totalorder %s12, 7
    %p41 = por %p39, %p40
    %p42 = scmp.ne.s32.totalorder %s34, %s37
    %p43 = scmp.eq.s32.totalorder %s12, 0
    %p44 = por %p42, %p43
    %p45 = scmp.ne.s32.totalorder %s34, %s37
    %p46 = scmp.eq.s32.totalorder %s17, 7
    %p47 = por %p45, %p46
    %p48 = scmp.ne.s32.totalorder %s37, %s38
    %p49 = scmp.eq.s32.totalorder %s17, 0
    %p50 = por %p48, %p49
    %p51 = scmp.ne.s32.totalorder %s37, %s38
    %p52 = scmp.eq.s32.totalorder %s18, 7
    %p53 = por %p51, %p52
    %p55 = scmp.ne.s32.totalorder %s38, %s54
    %p56 = scmp.eq.s32.totalorder %s18, 0
    %p57 = por %p55, %p56
    %s59 = sadd.s32 %s58, 1
    %p62 = scmp.eq.s32.totalorder %s12, 7
    %p63 = scmp.ne.s32.totalorder %s58, %s60
    %p64 = scmp.eq.s32.totalorder %s12, 0
    %p65 = por %p63, %p64
    %p66 = scmp.ne.s32.totalorder %s58, %s60
    %p67 = scmp.eq.s32.totalorder %s17, 7
    %p68 = por %p66, %p67
    %p69 = scmp.ne.s32.totalorder %s60, %s61
    %p70 = scmp.eq.s32.totalorder %s17, 0
    %p71 = por %p69, %p70
    %p72 = scmp.ne.s32.totalorder %s60, %s61
    %p73 = scmp.eq.s32.totalorder %s18, 7
    %p74 = por %p72, %p73
    %p76 = scmp.ne.s32.totalorder %s61, %s75
    %p77 = scmp.eq.s32.totalorder %s18, 0
    %p78 = por %p76, %p77
    %s79 = ssub.s32 %s20, %s27
    %p80 = scmp.eq.s32.totalorder %s79, 0
    %s82 = sadd.s32 %s81, 1
    %s83 = scalar_select %p80, %s81, %s82
    %p86 = pneg %p80
    %p87 = scmp.eq.s32.totalorder %s12, 7
    %p88 = por %p86, %p87
    %p89 = scmp.ne.s32.totalorder %s81, %s84
    %p90 = scmp.eq.s32.totalorder %s12, 0
    %p91 = por %p89, %p90
    %p92 = scmp.ne.s32.totalorder %s81, %s84
    %p93 = scmp.eq.s32.totalorder %s17, 7
    %p94 = por %p92, %p93
    %p95 = scmp.ne.s32.totalorder %s84, %s85
    %p96 = scmp.eq.s32.totalorder %s17, 0
    %p97 = por %p95, %p96
    %p98 = scmp.ne.s32.totalorder %s84, %s85
    %p99 = scmp.eq.s32.totalorder %s18, 7
    %p100 = por %p98, %p99
    %p102 = scmp.ne.s32.totalorder %s85, %s101
    %p103 = scmp.eq.s32.totalorder %s18, 0
    %p104 = por %p102, %p103
    %s105 = ssub.s32 %s20, %s27
    %s106 = ssub.s32 %s19, %s31
    %s107 = sor.u32 %s105, %s106
    %p108 = scmp.eq.s32.totalorder %s107, 0
    %s110 = sadd.s32 %s109, 1
    %s111 = scalar_select %p108, %s109, %s110
    %p114 = pneg %p108
    %p115 = scmp.eq.s32.totalorder %s12, 7
    %p116 = por %p114, %p115
    %p117 = scmp.ne.s32.totalorder %s109, %s112
    %p118 = scmp.eq.s32.totalorder %s12, 0
    %p119 = por %p117, %p118
    %p120 = scmp.ne.s32.totalorder %s109, %s112
    %p121 = scmp.eq.s32.totalorder %s17, 7
    %p122 = por %p120, %p121
    %p123 = scmp.ne.s32.totalorder %s112, %s113
    %p124 = scmp.eq.s32.totalorder %s17, 0
    %p125 = por %p123, %p124
    %p126 = scmp.ne.s32.totalorder %s112, %s113
    %p127 = scmp.eq.s32.totalorder %s18, 7
    %p128 = por %p126, %p127
    %p130 = scmp.ne.s32.totalorder %s113, %s129
    %p131 = scmp.eq.s32.totalorder %s18, 0
    %p132 = por %p130, %p131
    %s133 = ssub.s32 %s20, %s27
    %s134 = ssub.s32 %s19, %s31
    %s135 = sor.u32 %s133, %s134
    %p136 = scmp.eq.s32.totalorder %s135, 0
    %s138 = sadd.s32 %s137, 1
    %s139 = scalar_select %p136, %s137, %s138
    %p142 = pneg %p136
    %p143 = scmp.eq.s32.totalorder %s12, 7
    %p144 = por %p142, %p143
    %p145 = scmp.ne.s32.totalorder %s137, %s140
    %p146 = scmp.eq.s32.totalorder %s12, 0
    %p147 = por %p145, %p146
    %p148 = scmp.ne.s32.totalorder %s137, %s140
    %p149 = scmp.eq.s32.totalorder %s17, 7
    %p150 = por %p148, %p149
    %p151 = scmp.ne.s32.totalorder %s140, %s141
    %p152 = scmp.eq.s32.totalorder %s17, 0
    %p153 = por %p151, %p152
    %p154 = scmp.ne.s32.totalorder %s140, %s141
    %p155 = scmp.eq.s32.totalorder %s18, 7
    %p156 = por %p154, %p155
    %p158 = scmp.ne.s32.totalorder %s141, %s157
    %p159 = scmp.eq.s32.totalorder %s18, 0
    %p160 = por %p158, %p159
    %s161 = ssub.s32 %s20, %s27
    %s162 = ssub.s32 %s19, %s31
    %s163 = sor.u32 %s161, %s162
    %p164 = scmp.eq.s32.totalorder %s163, 0
    %s166 = sadd.s32 %s165, 1
    %s167 = scalar_select %p164, %s165, %s166
    %p170 = pneg %p164
    %p171 = scmp.eq.s32.totalorder %s12, 7
    %p172 = por %p170, %p171
    %p173 = scmp.ne.s32.totalorder %s165, %s168
    %p174 = scmp.eq.s32.totalorder %s12, 0
    %p175 = por %p173, %p174
    %p176 = scmp.ne.s32.totalorder %s165, %s168
    %p177 = scmp.eq.s32.totalorder %s17, 7
    %p178 = por %p176, %p177
    %p179 = scmp.ne.s32.totalorder %s168, %s169
    %p180 = scmp.eq.s32.totalorder %s17, 0
    %p181 = por %p179, %p180
    %p182 = scmp.ne.s32.totalorder %s168, %s169
    %p183 = scmp.eq.s32.totalorder %s18, 7
    %p184 = por %p182, %p183
    %p186 = scmp.ne.s32.totalorder %s169, %s185
    %p187 = scmp.eq.s32.totalorder %s18, 0
    %p188 = por %p186, %p187
    %p189 = scmp.le.s32.totalorder 1, %s12
    %p190 = scmp.lt.s32.totalorder %s12, 9
    %p191 = pnand %p189, %p190
    %p192 = pneg %p191
    // Predicated region
    $region9: #{transformer_forward.9} parent=5 // pred_check
      _
    $region10: #{transformer_forward.9} parent=5 // pred_check_branch
      %194 = sbr.rel (%p191) target = $region12
    $region11: #{transformer_forward.9} parent=5 // pred_region
      %s195 = ssub.s32 %s12, 1
      // Predicated region
      $region13: #{transformer_forward.9} parent=11 // pred_check
        %p196 = pneg %p71
      $region14: #{transformer_forward.9} parent=11 // pred_check_branch
        %198 = sbr.rel (%p196) target = $region16
      $region15: #{transformer_forward.9} parent=11 // pred_region
        _
      $region16: #{transformer_forward.9} parent=11 // pred_fallthru
        _
    $region12: #{transformer_forward.9} parent=5 // pred_fallthru
      _
    %p199 = scmp.lt.s32.totalorder %s12, 8
    // Predicated region
    $region17: #{transformer_forward.9} parent=5 // pred_check
      %p200 = pneg %p199
    $region18: #{transformer_forward.9} parent=5 // pred_check_branch
      %202 = sbr.rel (%p200) target = $region20
    $region19: #{transformer_forward.9} parent=5 // pred_region
      // Predicated region
      $region21: #{transformer_forward.9} parent=19 // pred_check
        %p203 = pneg %p44
      $region22: #{transformer_forward.9} parent=19 // pred_check_branch
        %205 = sbr.rel (%p203) target = $region24
      $region23: #{transformer_forward.9} parent=19 // pred_region
        %p206 = scmp.lt.s32.totalorder %s19, 1
        %s207 = scalar_select %p206, %s19, 1
        %s208 = smul.addr %s207, 8
        %s209 = scalar_lea.vmem %s0, %s208
      $region24: #{transformer_forward.9} parent=19 // pred_fallthru
        _
      // Predicated region
      $region25: #{transformer_forward.9} parent=19 // pred_check
        %p210 = pneg %p91
      $region26: #{transformer_forward.9} parent=19 // pred_check_branch
        %212 = sbr.rel (%p210) target = $region28
      $region27: #{transformer_forward.9} parent=19 // pred_region
        %p213 = scmp.lt.s32.totalorder %s20, 3
        %s214 = scalar_select %p213, %s20, 3
        %s215 = smul.addr %s214, 4
        %s216 = smul.addr %s215, 4
        %s217 = scalar_lea.vmem %s2, %s216
      $region28: #{transformer_forward.9} parent=19 // pred_fallthru
        _
    $region20: #{transformer_forward.9} parent=5 // pred_fallthru
      _
    %p218 = scmp.le.s32.totalorder 1, %s12
    %p219 = scmp.lt.s32.totalorder %s12, 9
    %p220 = pnand %p218, %p219
    %p221 = pneg %p220
    // Predicated region
    $region29: #{transformer_forward.9} parent=5 // pred_check
      _
    $region30: #{transformer_forward.9} parent=5 // pred_check_branch
      %223 = sbr.rel (%p220) target = $region32
    $region31: #{transformer_forward.9} parent=5 // pred_region
      %s224 = ssub.s32 %s12, 1
      %p225 = scmp.lt.s32.totalorder %s21, 1
      %s226 = scalar_select %p225, %s21, 1
      %s227 = smul.addr %s226, 8
      %s228 = scalar_lea.vmem %s0, %s227
      %p229 = pneg %p50
      %p230 = pneg %p47
      %p231 = pneg %p71
      %p232 = pneg %p68
      %p233 = scmp.lt.s32.totalorder %s22, 3
      %s234 = scalar_select %p233, %s22, 3
      %s235 = smul.addr %s234, 4
      %s236 = smul.addr %s235, 4
      %s237 = scalar_lea.vmem %s2, %s236
      %p238 = pneg %p97
      %p239 = pneg %p94
      %p240 = pneg %p125
      %p241 = pneg %p122
      %p242 = scmp.lt.s32.totalorder %s22, 3
      %s243 = scalar_select %p242, %s22, 3
      %p244 = scmp.lt.s32.totalorder %s21, 1
      %s245 = scalar_select %p244, %s21, 1
      %s246 = smul.addr %s243, 2
      %s247 = sadd.s32 %s245, %s246
      %s248 = smul.addr %s247, 4
      %s249 = scalar_lea.vmem %s3, %s248
      %p250 = pneg %p153
      %p251 = pneg %p150
      %p252 = scmp.lt.s32.totalorder %s22, 3
      %s253 = scalar_select %p252, %s22, 3
      %p254 = scmp.lt.s32.totalorder %s21, 1
      %s255 = scalar_select %p254, %s21, 1
      %s256 = smul.addr %s253, 2
      %s257 = sadd.s32 %s255, %s256
      %s258 = smul.addr %s257, 4
      %s259 = scalar_lea.vmem %s4, %s258
      %p260 = pneg %p181
      %p261 = pneg %p178
      %p262 = scmp.lt.s32.totalorder %s22, 3
      %s263 = scalar_select %p262, %s22, 3
      %p264 = scmp.lt.s32.totalorder %s21, 1
      %s265 = scalar_select %p264, %s21, 1
      %s266 = smul.addr %s263, 2
      %s267 = sadd.s32 %s265, %s266
      %s268 = smul.addr %s267, 4
      %s269 = scalar_lea.vmem %s5, %s268
      %p270 = scmp.lt.s32.totalorder %s21, 1
      %s271 = scalar_select %p270, %s21, 1
      %s272 = smul.addr %s271, 8
      %s273 = scalar_lea.vmem %s0, %s272
      %p274 = scmp.lt.s32.totalorder %s22, 3
      %s275 = scalar_select %p274, %s22, 3
      %s276 = smul.addr %s275, 4
      %s277 = smul.addr %s276, 4
      %s278 = scalar_lea.vmem %s2, %s277
      %p279 = scmp.lt.s32.totalorder %s22, 3
      %s280 = scalar_select %p279, %s22, 3
      %p281 = scmp.lt.s32.totalorder %s21, 1
      %s282 = scalar_select %p281, %s21, 1
      %s283 = smul.addr %s280, 2
      %s284 = sadd.s32 %s282, %s283
      %s285 = smul.addr %s284, 4
      %s286 = scalar_lea.vmem %s3, %s285
      %p287 = scmp.lt.s32.totalorder %s22, 3
      %s288 = scalar_select %p287, %s22, 3
      %p289 = scmp.lt.s32.totalorder %s21, 1
      %s290 = scalar_select %p289, %s21, 1
      %s291 = smul.addr %s288, 2
      %s292 = sadd.s32 %s290, %s291
      %s293 = smul.addr %s292, 4
      %s294 = scalar_lea.vmem %s4, %s293
      %p295 = scmp.lt.s32.totalorder %s22, 3
      %s296 = scalar_select %p295, %s22, 3
      %p297 = scmp.lt.s32.totalorder %s21, 1
      %s298 = scalar_select %p297, %s21, 1
      %s299 = smul.addr %s296, 2
      %s300 = sadd.s32 %s298, %s299
      %s301 = smul.addr %s300, 4
      %s302 = scalar_lea.vmem %s5, %s301
      %p304 = scmp.eq.s32.totalorder %s22, 0
      // Predicated region
      $region33: #{transformer_forward.9} parent=31 // pred_check
        %p305 = pneg %p304
      $region34: #{transformer_forward.9} parent=31 // pred_check_branch
        %307 = sbr.rel (%p305) target = $region36
      $region35: #{transformer_forward.9} parent=31 // pred_region
        %v308 = vld [vmem:[%s273] sm:$0xff]
        %v309 = vmul.f32 %v308, %v308
        %vm310 = vcmask 261120
        %v311 = vsel %vm310, %v309, 0.0
        %312 = vadd.xlane.f32.xlu0 %v311
        %v313 = vpop.xlane.xlu0 %312
        %v314 = vrcp.pop 32.0
        %v315 = vmul.f32 %v313, %v314
        %v316 = vadd.f32 %v315, 1e-06
        %v317 = vrsqrt.pop %v316
        %v318 = vmul.f32 %v308, %v317
        %v319 = vld [vmem:[%s1] sm:$0x1]
        %v321 = vlaneseq
        %v322 = vshrl.u32 %v321, 7
        %v323 = vsub.s32 0, %v322
        %v324 = vrot.slane %v319, %v323
        %v326 = vmul.f32 %v318, %v324
        %v327 = vpack.c.bf16 %v326, %v326
        %vm328 = vcmask 257024
        %329 = vst.msk [vmem:[#allocation2] sm:$0xf] %vm328, %v327
      $region36: #{transformer_forward.9} parent=31 // pred_fallthru
        _
      %v330 = vld [vmem:[#allocation2] sm:$0xf]
      %v331 = vld [vmem:[%s278] sm:$0xf]
      %v332 = vld [vmem:[%s278 + $0x4] sm:$0xf]
      %v333 = vld [vmem:[%s278 + $0x8] sm:$0xf]
      %v334 = vld [vmem:[%s278 + $0xc] sm:$0xf]
      %v339 = vunpack.c.l.b16 %v331
      %v340 = vunpack.c.l.b16 %v332
      %v341 = vunpack.c.l.b16 %v333
      %v342 = vunpack.c.l.b16 %v334
      %v343 = vpack.c.b16 %v340, %v339
      %v344 = vpack.c.b16 %v342, %v341
      %vm347 = vcmask 261120
      %v349 = vsel %vm347, %v330, 0
      %351 = vmatprep.subr.bf16.mxu0 0
      %352 = vmatpush1.bf16.msra.mxu0 0
      %353 = vmatprep.subr.bf16.mxu0 0
      %354 = vmatpush1.bf16.msra.mxu0 0
      %355 = vmatprep.subr.bf16.mxu0 0
      %356 = vmatpush1.bf16.msra.mxu0 0
      %357 = vmatprep.subr.bf16.mxu0 0
      %358 = vmatpush1.bf16.msra.mxu0 0
      %359 = vmatprep.subr.bf16.mxu0 0
      %360 = vmatpush1.bf16.msra.mxu0 0
      %361 = vmatprep.subr.bf16.mxu0 0
      %362 = vmatpush1.bf16.msra.mxu0 0
      %363 = vmatprep.subr.bf16.mxu0 0
      %364 = vmatpush1.bf16.msra.mxu0 %v344
      %365 = vmatprep.subr.bf16.mxu0 0
      %366 = vmatpush1.bf16.msra.mxu0 %v343
      %367 = vmatprep.subr.bf16.mxu0 0
      %368 = vmatpush2.bf16.msra.mxu0 0
      %369 = vmatprep.subr.bf16.mxu0 0
      %370 = vmatpush2.bf16.msra.mxu0 0
      %371 = vmatprep.subr.bf16.mxu0 0
      %372 = vmatpush2.bf16.msra.mxu0 0
      %373 = vmatprep.subr.bf16.mxu0 0
      %374 = vmatpush2.bf16.msra.mxu0 0
      %375 = vmatprep.subr.bf16.mxu0 0
      %376 = vmatpush2.bf16.msra.mxu0 0
      %377 = vmatprep.subr.bf16.mxu0 0
      %378 = vmatpush2.bf16.msra.mxu0 0
      %379 = vmatprep.subr.bf16.mxu0 0
      %380 = vmatpush2.bf16.msra.mxu0 0
      %381 = vmatprep.subr.bf16.mxu0 0
      %382 = vmatpush2.bf16.msra.mxu0 0
      %383 = vmatprep.mubr.bf16.mxu0 0
      %384 = vmatmul.mubr.bf16.gmra.mxu0 %v349
      %v385 = vpop.f32.mrf.mxu0
      %v386 = vadd.f32 0.0, %v385
      %v387 = vpop.f32.mrf.mxu0
      %v388 = vpop.f32.mrf.mxu0
      %v389 = vpop.f32.mrf.mxu0
      %390 = vdwg.mxu0
      %v391 = vpack.c.bf16 %v386, %v386
      %vm392 = vcmask 60416
      %393 = vst.msk [vmem:[%s286] sm:$0xf] %vm392, %v391
      %v395 = vunpack.c.l.b16 %v391
      %v396 = vpack.c.b16 %v395, %v395
      %397 = vrot.lane.b32.xlu0 %v396, 120
      %v398 = vpop.permute.xlu0 %397
      %400 = vst.msk [vmem:[%s294] sm:$0xf] %vm392, %v398
      %401 = vrot.lane.b32.xlu0 %v396, 112
      %v402 = vpop.permute.xlu0 %401
      %404 = vst.msk [vmem:[%s302] sm:$0xf] %vm392, %v402
      %p405 = scmp.lt.s32.totalorder %s22, 3
      %s406 = scalar_select %p405, %s22, 3
      %p407 = scmp.lt.s32.totalorder %s21, 1
      %s408 = scalar_select %p407, %s21, 1
      %s409 = smul.addr %s406, 2
      %s410 = sadd.s32 %s408, %s409
      %s411 = smul.addr %s410, 4
      %s412 = scalar_lea.vmem %s3, %s411
      %p413 = scmp.lt.s32.totalorder %s22, 3
      %s414 = scalar_select %p413, %s22, 3
      %p415 = scmp.lt.s32.totalorder %s21, 1
      %s416 = scalar_select %p415, %s21, 1
      %s417 = smul.addr %s414, 2
      %s418 = sadd.s32 %s416, %s417
      %s419 = smul.addr %s418, 4
      %s420 = scalar_lea.vmem %s4, %s419
      %p421 = scmp.lt.s32.totalorder %s22, 3
      %s422 = scalar_select %p421, %s22, 3
      %p423 = scmp.lt.s32.totalorder %s21, 1
      %s424 = scalar_select %p423, %s21, 1
      %s425 = smul.addr %s422, 2
      %s426 = sadd.s32 %s424, %s425
      %s427 = smul.addr %s426, 4
      %s428 = scalar_lea.vmem %s5, %s427
      // Predicated region
      $region37: #{transformer_forward.9} parent=31 // pred_check
        %p429 = pneg %p122
      $region38: #{transformer_forward.9} parent=31 // pred_check_branch
        %431 = sbr.rel (%p429) target = $region40
      $region39: #{transformer_forward.9} parent=31 // pred_region
        _
      $region40: #{transformer_forward.9} parent=31 // pred_fallthru
        _
      // Predicated region
      $region41: #{transformer_forward.9} parent=31 // pred_check
        %p432 = pneg %p150
      $region42: #{transformer_forward.9} parent=31 // pred_check_branch
        %434 = sbr.rel (%p432) target = $region44
      $region43: #{transformer_forward.9} parent=31 // pred_region
        _
      $region44: #{transformer_forward.9} parent=31 // pred_fallthru
        _
      // Predicated region
      $region45: #{transformer_forward.9} parent=31 // pred_check
        %p435 = pneg %p178
      $region46: #{transformer_forward.9} parent=31 // pred_check_branch
        %437 = sbr.rel (%p435) target = $region48
      $region47: #{transformer_forward.9} parent=31 // pred_region
        _
      $region48: #{transformer_forward.9} parent=31 // pred_fallthru
        _
    $region32: #{transformer_forward.9} parent=5 // pred_fallthru
      _
    %p438 = scmp.le.s32.totalorder 2, %s12
    // Predicated region
    $region49: #{transformer_forward.9} parent=5 // pred_check
      %p439 = pneg %p438
    $region50: #{transformer_forward.9} parent=5 // pred_check_branch
      %441 = sbr.rel (%p439) target = $region52
    $region51: #{transformer_forward.9} parent=5 // pred_region
      %s442 = ssub.s32 %s12, 2
      // Predicated region
      $region53: #{transformer_forward.9} parent=51 // pred_check
        %p443 = pneg %p128
      $region54: #{transformer_forward.9} parent=51 // pred_check_branch
        %445 = sbr.rel (%p443) target = $region56
      $region55: #{transformer_forward.9} parent=51 // pred_region
        %p446 = scmp.lt.s32.totalorder %s24, 3
        %s447 = scalar_select %p446, %s24, 3
        %p448 = scmp.lt.s32.totalorder %s23, 1
        %s449 = scalar_select %p448, %s23, 1
        %s450 = smul.addr %s447, 2
        %s451 = sadd.s32 %s449, %s450
        %s452 = smul.addr %s451, 4
        %s453 = scalar_lea.vmem %s3, %s452
      $region56: #{transformer_forward.9} parent=51 // pred_fallthru
        _
      // Predicated region
      $region57: #{transformer_forward.9} parent=51 // pred_check
        %p454 = pneg %p156
      $region58: #{transformer_forward.9} parent=51 // pred_check_branch
        %456 = sbr.rel (%p454) target = $region60
      $region59: #{transformer_forward.9} parent=51 // pred_region
        %p457 = scmp.lt.s32.totalorder %s24, 3
        %s458 = scalar_select %p457, %s24, 3
        %p459 = scmp.lt.s32.totalorder %s23, 1
        %s460 = scalar_select %p459, %s23, 1
        %s461 = smul.addr %s458, 2
        %s462 = sadd.s32 %s460, %s461
        %s463 = smul.addr %s462, 4
        %s464 = scalar_lea.vmem %s4, %s463
      $region60: #{transformer_forward.9} parent=51 // pred_fallthru
        _
      // Predicated region
      $region61: #{transformer_forward.9} parent=51 // pred_check
        %p465 = pneg %p184
      $region62: #{transformer_forward.9} parent=51 // pred_check_branch
        %467 = sbr.rel (%p465) target = $region64
      $region63: #{transformer_forward.9} parent=51 // pred_region
        %p468 = scmp.lt.s32.totalorder %s24, 3
        %s469 = scalar_select %p468, %s24, 3
        %p470 = scmp.lt.s32.totalorder %s23, 1
        %s471 = scalar_select %p470, %s23, 1
        %s472 = smul.addr %s469, 2
        %s473 = sadd.s32 %s471, %s472
        %s474 = smul.addr %s473, 4
        %s475 = scalar_lea.vmem %s5, %s474
      $region64: #{transformer_forward.9} parent=51 // pred_fallthru
        _
    $region52: #{transformer_forward.9} parent=5 // pred_fallthru
      _
  $region6: #{transformer_forward.9} parent=0 // loop_footer
    %s16 = sadd.s32 1, %s12
  $region7: #{transformer_forward.9} parent=0 // loop_footer_branch
    %11 = sbr.rel target = $region3
  $region8: #{transformer_forward.9} parent=0 // loop_exit
    _

// kernel: transformer_forward.10
$region0: #{transformer_forward.10}
  #allocation0 [shape = 'u32[]', space=smem, size = 0x4, offset = 0x4, fixed_abs, tag = 'smem constant byte address 0x4 - core index']
  #allocation1 [shape = 'u32[144,128]{1,0:T(1,128)}', space=vmem, size = 0x12000, scoped, tag = 'internal scratch']
  #allocation2 [shape = 'f32[8,1]{1,0:T(8,128)}', space=vmem, size = 0x1000, scoped, tag = 'scratch operand']
  #allocation3 [shape = 'f32[8,1]{1,0:T(8,128)}', space=vmem, size = 0x1000, scoped, tag = 'scratch operand']
  #allocation4 [shape = 'f32[8,8]{1,0:T(8,128)}', space=vmem, size = 0x1000, scoped, tag = 'scratch operand']
  %s0 = inlined_call_operand.vmem [shape: bf16[4,2,8,8], index: 0, kind: input, shape index: {}]
  %s1 = inlined_call_operand.vmem [shape: bf16[4,2,8,8], index: 1, kind: input, shape index: {}]
  %s2 = inlined_call_operand.vmem [shape: bf16[4,2,8,8], index: 2, kind: input, shape index: {}]
  %s3 = inlined_call_operand.vmem [shape: f32[8,4], index: 3, kind: input, shape index: {}, may-alias: {3,5}]
  %s4 = inlined_call_operand.vmem [shape: f32[8,4], index: 4, kind: input, shape index: {}, may-alias: {4,6}]
  %s5 = inlined_call_operand.vmem [shape: f32[8,4], index: 5, kind: input, shape index: {}, may-alias: {3,5}]
  %s6 = inlined_call_operand.vmem [shape: f32[8,4], index: 6, kind: input, shape index: {}, may-alias: {4,6}]
  %s7 = inlined_call_operand.vmem [shape: bf16[4,2,8,8], index: 7, kind: output, shape index: {}]
  %s8 = sld [smem:[#allocation0]]
  $region69: #{transformer_forward.10} parent=0
    _
  %s10 = ssub.s32 1, %s8
  %s11 = scalar_select 0, %s10, %s8
  loop: start=0, step=1, limit=10
  $region2: #{transformer_forward.10} parent=0 // loop_pre_header
    _
  $region3: #{transformer_forward.10} parent=0 // loop_header
    %s13 = sphi 0, %s17
    %p14 = scmp.ge.s32.totalorder %s13, 10
    %s20 = sphi 0, %s46
    %s21 = sphi 0, %s42
    %s22 = sphi 0, %s38
    %s23 = sphi 0, %s34
    %s24 = sphi 0, %s20
    %s25 = sphi 0, %s21
    %s26 = sphi 0, %s22
    %s27 = sphi 0, %s23
    %s28 = sphi 0, %s24
    %s29 = sphi 0, %s25
    %s30 = sphi 0, %s26
    %s31 = sphi 0, %s27
    %s53 = sphi 0, %s55
    %s56 = sphi 0, %s53
    %s57 = sphi 0, %s56
    %s73 = sphi 0, %s57
    %s83 = sphi 0, %s85
    %s86 = sphi 0, %s83
    %s87 = sphi 0, %s86
    %s103 = sphi 0, %s87
    %s113 = sphi 0, %s115
    %s116 = sphi 0, %s113
    %s117 = sphi 0, %s116
    %s133 = sphi 0, %s117
    %s139 = sphi 0, %s141
    %s142 = sphi 0, %s139
    %s143 = sphi 0, %s142
    %s159 = sphi 0, %s143
    %s165 = sphi 0, %s167
    %s168 = sphi 0, %s165
    %s169 = sphi 0, %s168
    %s185 = sphi 0, %s169
    %s191 = sphi 0, %s193
    %s194 = sphi 0, %s191
    %s195 = sphi 0, %s194
    %s211 = sphi 0, %s195
    %s217 = sphi 0, %s219
    %s220 = sphi 0, %s217
    %s221 = sphi 0, %s220
    %s237 = sphi 0, %s221
    %s247 = sphi 0, %s249
    %s250 = sphi 0, %s247
    %s251 = sphi 0, %s250
    %s267 = sphi 0, %s251
  $region4: #{transformer_forward.10} parent=0 // loop_header_branch
    %16 = sbr.rel (%p14) target = $region8
  $region5: #{transformer_forward.10} parent=0 // loop_body
    %s18 = ssub.s32 %s13, 1
    %s19 = ssub.s32 %s13, 2
    %s32 = sadd.s32 1, %s23
    %p33 = scmp.ge.s32.totalorder %s32, 1
    %s34 = scalar_select %p33, 0, %s32
    %s35 = sadd.s32 1, %s22
    %s36 = scalar_select %p33, %s35, %s22
    %p37 = scmp.ge.s32.totalorder %s36, 1
    %s38 = scalar_select %p37, 0, %s36
    %s39 = sadd.s32 1, %s21
    %s40 = scalar_select %p37, %s39, %s21
    %p41 = scmp.ge.s32.totalorder %s40, 4
    %s42 = scalar_select %p41, 0, %s40
    %s43 = sadd.s32 1, %s20
    %s44 = scalar_select %p41, %s43, %s20
    %p45 = scmp.ge.s32.totalorder %s44, 2
    %s46 = scalar_select %p45, 0, %s44
    %s47 = ssub.s32 %s21, %s42
    %s48 = ssub.s32 %s20, %s46
    %s49 = sor.u32 %s47, %s48
    %s50 = ssub.s32 %s22, %s38
    %s51 = sor.u32 %s49, %s50
    %p52 = scmp.eq.s32.totalorder %s51, 0
    %s54 = sadd.s32 %s53, 1
    %s55 = scalar_select %p52, %s53, %s54
    %p58 = pneg %p52
    %p59 = scmp.eq.s32.totalorder %s13, 7
    %p60 = por %p58, %p59
    %p61 = scmp.ne.s32.totalorder %s53, %s56
    %p62 = scmp.eq.s32.totalorder %s13, 0
    %p63 = por %p61, %p62
    %p64 = scmp.ne.s32.totalorder %s53, %s56
    %p65 = scmp.eq.s32.totalorder %s18, 7
    %p66 = por %p64, %p65
    %p67 = scmp.ne.s32.totalorder %s56, %s57
    %p68 = scmp.eq.s32.totalorder %s18, 0
    %p69 = por %p67, %p68
    %p70 = scmp.ne.s32.totalorder %s56, %s57
    %p71 = scmp.eq.s32.totalorder %s19, 7
    %p72 = por %p70, %p71
    %p74 = scmp.ne.s32.totalorder %s57, %s73
    %p75 = scmp.eq.s32.totalorder %s19, 0
    %p76 = por %p74, %p75
    %s77 = ssub.s32 %s21, %s42
    %s78 = ssub.s32 %s20, %s46
    %s79 = sor.u32 %s77, %s78
    %s80 = ssub.s32 %s23, %s34
    %s81 = sor.u32 %s79, %s80
    %p82 = scmp.eq.s32.totalorder %s81, 0
    %s84 = sadd.s32 %s83, 1
    %s85 = scalar_select %p82, %s83, %s84
    %p88 = pneg %p82
    %p89 = scmp.eq.s32.totalorder %s13, 7
    %p90 = por %p88, %p89
    %p91 = scmp.ne.s32.totalorder %s83, %s86
    %p92 = scmp.eq.s32.totalorder %s13, 0
    %p93 = por %p91, %p92
    %p94 = scmp.ne.s32.totalorder %s83, %s86
    %p95 = scmp.eq.s32.totalorder %s18, 7
    %p96 = por %p94, %p95
    %p97 = scmp.ne.s32.totalorder %s86, %s87
    %p98 = scmp.eq.s32.totalorder %s18, 0
    %p99 = por %p97, %p98
    %p100 = scmp.ne.s32.totalorder %s86, %s87
    %p101 = scmp.eq.s32.totalorder %s19, 7
    %p102 = por %p100, %p101
    %p104 = scmp.ne.s32.totalorder %s87, %s103
    %p105 = scmp.eq.s32.totalorder %s19, 0
    %p106 = por %p104, %p105
    %s107 = ssub.s32 %s21, %s42
    %s108 = ssub.s32 %s20, %s46
    %s109 = sor.u32 %s107, %s108
    %s110 = ssub.s32 %s23, %s34
    %s111 = sor.u32 %s109, %s110
    %p112 = scmp.eq.s32.totalorder %s111, 0
    %s114 = sadd.s32 %s113, 1
    %s115 = scalar_select %p112, %s113, %s114
    %p118 = pneg %p112
    %p119 = scmp.eq.s32.totalorder %s13, 7
    %p120 = por %p118, %p119
    %p121 = scmp.ne.s32.totalorder %s113, %s116
    %p122 = scmp.eq.s32.totalorder %s13, 0
    %p123 = por %p121, %p122
    %p124 = scmp.ne.s32.totalorder %s113, %s116
    %p125 = scmp.eq.s32.totalorder %s18, 7
    %p126 = por %p124, %p125
    %p127 = scmp.ne.s32.totalorder %s116, %s117
    %p128 = scmp.eq.s32.totalorder %s18, 0
    %p129 = por %p127, %p128
    %p130 = scmp.ne.s32.totalorder %s116, %s117
    %p131 = scmp.eq.s32.totalorder %s19, 7
    %p132 = por %p130, %p131
    %p134 = scmp.ne.s32.totalorder %s117, %s133
    %p135 = scmp.eq.s32.totalorder %s19, 0
    %p136 = por %p134, %p135
    %s137 = ssub.s32 %s22, %s38
    %p138 = scmp.eq.s32.totalorder %s137, 0
    %s140 = sadd.s32 %s139, 1
    %s141 = scalar_select %p138, %s139, %s140
    %p144 = pneg %p138
    %p145 = scmp.eq.s32.totalorder %s13, 7
    %p146 = por %p144, %p145
    %p147 = scmp.ne.s32.totalorder %s139, %s142
    %p148 = scmp.eq.s32.totalorder %s13, 0
    %p149 = por %p147, %p148
    %p150 = scmp.ne.s32.totalorder %s139, %s142
    %p151 = scmp.eq.s32.totalorder %s18, 7
    %p152 = por %p150, %p151
    %p153 = scmp.ne.s32.totalorder %s142, %s143
    %p154 = scmp.eq.s32.totalorder %s18, 0
    %p155 = por %p153, %p154
    %p156 = scmp.ne.s32.totalorder %s142, %s143
    %p157 = scmp.eq.s32.totalorder %s19, 7
    %p158 = por %p156, %p157
    %p160 = scmp.ne.s32.totalorder %s143, %s159
    %p161 = scmp.eq.s32.totalorder %s19, 0
    %p162 = por %p160, %p161
    %s163 = ssub.s32 %s22, %s38
    %p164 = scmp.eq.s32.totalorder %s163, 0
    %s166 = sadd.s32 %s165, 1
    %s167 = scalar_select %p164, %s165, %s166
    %p170 = pneg %p164
    %p171 = scmp.eq.s32.totalorder %s13, 7
    %p172 = por %p170, %p171
    %p173 = scmp.ne.s32.totalorder %s165, %s168
    %p174 = scmp.eq.s32.totalorder %s13, 0
    %p175 = por %p173, %p174
    %p176 = scmp.ne.s32.totalorder %s165, %s168
    %p177 = scmp.eq.s32.totalorder %s18, 7
    %p178 = por %p176, %p177
    %p179 = scmp.ne.s32.totalorder %s168, %s169
    %p180 = scmp.eq.s32.totalorder %s18, 0
    %p181 = por %p179, %p180
    %p182 = scmp.ne.s32.totalorder %s168, %s169
    %p183 = scmp.eq.s32.totalorder %s19, 7
    %p184 = por %p182, %p183
    %p186 = scmp.ne.s32.totalorder %s169, %s185
    %p187 = scmp.eq.s32.totalorder %s19, 0
    %p188 = por %p186, %p187
    %s189 = ssub.s32 %s23, %s34
    %p190 = scmp.eq.s32.totalorder %s189, 0
    %s192 = sadd.s32 %s191, 1
    %s193 = scalar_select %p190, %s191, %s192
    %p196 = pneg %p190
    %p197 = scmp.eq.s32.totalorder %s13, 7
    %p198 = por %p196, %p197
    %p199 = scmp.ne.s32.totalorder %s191, %s194
    %p200 = scmp.eq.s32.totalorder %s13, 0
    %p201 = por %p199, %p200
    %p202 = scmp.ne.s32.totalorder %s191, %s194
    %p203 = scmp.eq.s32.totalorder %s18, 7
    %p204 = por %p202, %p203
    %p205 = scmp.ne.s32.totalorder %s194, %s195
    %p206 = scmp.eq.s32.totalorder %s18, 0
    %p207 = por %p205, %p206
    %p208 = scmp.ne.s32.totalorder %s194, %s195
    %p209 = scmp.eq.s32.totalorder %s19, 7
    %p210 = por %p208, %p209
    %p212 = scmp.ne.s32.totalorder %s195, %s211
    %p213 = scmp.eq.s32.totalorder %s19, 0
    %p214 = por %p212, %p213
    %s215 = ssub.s32 %s23, %s34
    %p216 = scmp.eq.s32.totalorder %s215, 0
    %s218 = sadd.s32 %s217, 1
    %s219 = scalar_select %p216, %s217, %s218
    %p222 = pneg %p216
    %p223 = scmp.eq.s32.totalorder %s13, 7
    %p224 = por %p222, %p223
    %p225 = scmp.ne.s32.totalorder %s217, %s220
    %p226 = scmp.eq.s32.totalorder %s13, 0
    %p227 = por %p225, %p226
    %p228 = scmp.ne.s32.totalorder %s217, %s220
    %p229 = scmp.eq.s32.totalorder %s18, 7
    %p230 = por %p228, %p229
    %p231 = scmp.ne.s32.totalorder %s220, %s221
    %p232 = scmp.eq.s32.totalorder %s18, 0
    %p233 = por %p231, %p232
    %p234 = scmp.ne.s32.totalorder %s220, %s221
    %p235 = scmp.eq.s32.totalorder %s19, 7
    %p236 = por %p234, %p235
    %p238 = scmp.ne.s32.totalorder %s221, %s237
    %p239 = scmp.eq.s32.totalorder %s19, 0
    %p240 = por %p238, %p239
    %s241 = ssub.s32 %s21, %s42
    %s242 = ssub.s32 %s20, %s46
    %s243 = sor.u32 %s241, %s242
    %s244 = ssub.s32 %s22, %s38
    %s245 = sor.u32 %s243, %s244
    %p246 = scmp.eq.s32.totalorder %s245, 0
    %s248 = sadd.s32 %s247, 1
    %s249 = scalar_select %p246, %s247, %s248
    %p252 = pneg %p246
    %p253 = scmp.eq.s32.totalorder %s13, 7
    %p254 = por %p252, %p253
    %p255 = scmp.ne.s32.totalorder %s247, %s250
    %p256 = scmp.eq.s32.totalorder %s13, 0
    %p257 = por %p255, %p256
    %p258 = scmp.ne.s32.totalorder %s247, %s250
    %p259 = scmp.eq.s32.totalorder %s18, 7
    %p260 = por %p258, %p259
    %p261 = scmp.ne.s32.totalorder %s250, %s251
    %p262 = scmp.eq.s32.totalorder %s18, 0
    %p263 = por %p261, %p262
    %p264 = scmp.ne.s32.totalorder %s250, %s251
    %p265 = scmp.eq.s32.totalorder %s19, 7
    %p266 = por %p264, %p265
    %p268 = scmp.ne.s32.totalorder %s251, %s267
    %p269 = scmp.eq.s32.totalorder %s19, 0
    %p270 = por %p268, %p269
    %p271 = scmp.le.s32.totalorder 1, %s13
    %p272 = scmp.lt.s32.totalorder %s13, 9
    %p273 = pnand %p271, %p272
    %p274 = pneg %p273
    // Predicated region
    $region9: #{transformer_forward.10} parent=5 // pred_check
      _
    $region10: #{transformer_forward.10} parent=5 // pred_check_branch
      %276 = sbr.rel (%p273) target = $region12
    $region11: #{transformer_forward.10} parent=5 // pred_region
      %s277 = ssub.s32 %s13, 1
      // Predicated region
      $region13: #{transformer_forward.10} parent=11 // pred_check
        %p278 = pneg %p155
      $region14: #{transformer_forward.10} parent=11 // pred_check_branch
        %280 = sbr.rel (%p278) target = $region16
      $region15: #{transformer_forward.10} parent=11 // pred_region
        %p281 = scmp.lt.s32.totalorder %s26, 0
        %s282 = scalar_select %p281, %s26, 0
        %s283 = smul.addr %s282, 8
        %s284 = scalar_lea.vmem %s3, %s283
      $region16: #{transformer_forward.10} parent=11 // pred_fallthru
        _
      // Predicated region
      $region17: #{transformer_forward.10} parent=11 // pred_check
        %p285 = pneg %p181
      $region18: #{transformer_forward.10} parent=11 // pred_check_branch
        %287 = sbr.rel (%p285) target = $region20
      $region19: #{transformer_forward.10} parent=11 // pred_region
        %p288 = scmp.lt.s32.totalorder %s26, 0
        %s289 = scalar_select %p288, %s26, 0
        %s290 = smul.addr %s289, 8
        %s291 = scalar_lea.vmem %s4, %s290
      $region20: #{transformer_forward.10} parent=11 // pred_fallthru
        _
      // Predicated region
      $region21: #{transformer_forward.10} parent=11 // pred_check
        %p292 = pneg %p207
      $region22: #{transformer_forward.10} parent=11 // pred_check_branch
        %294 = sbr.rel (%p292) target = $region24
      $region23: #{transformer_forward.10} parent=11 // pred_region
        %p295 = scmp.lt.s32.totalorder %s27, 0
        %s296 = scalar_select %p295, %s27, 0
        %s297 = smul.addr %s296, 8
        %s298 = scalar_lea.vmem %s5, %s297
      $region24: #{transformer_forward.10} parent=11 // pred_fallthru
        _
      // Predicated region
      $region25: #{transformer_forward.10} parent=11 // pred_check
        %p299 = pneg %p233
      $region26: #{transformer_forward.10} parent=11 // pred_check_branch
        %301 = sbr.rel (%p299) target = $region28
      $region27: #{transformer_forward.10} parent=11 // pred_region
        %p302 = scmp.lt.s32.totalorder %s27, 0
        %s303 = scalar_select %p302, %s27, 0
        %s304 = smul.addr %s303, 8
        %s305 = scalar_lea.vmem %s6, %s304
      $region28: #{transformer_forward.10} parent=11 // pred_fallthru
        _
    $region12: #{transformer_forward.10} parent=5 // pred_fallthru
      _
    %p306 = scmp.lt.s32.totalorder %s13, 8
    // Predicated region
    $region29: #{transformer_forward.10} parent=5 // pred_check
      %p307 = pneg %p306
    $region30: #{transformer_forward.10} parent=5 // pred_check_branch
      %309 = sbr.rel (%p307) target = $region32
    $region31: #{transformer_forward.10} parent=5 // pred_region
      // Predicated region
      $region33: #{transformer_forward.10} parent=31 // pred_check
        %p310 = pneg %p63
      $region34: #{transformer_forward.10} parent=31 // pred_check_branch
        %312 = sbr.rel (%p310) target = $region36
      $region35: #{transformer_forward.10} parent=31 // pred_region
        %p313 = scmp.lt.s32.totalorder %s21, 3
        %s314 = scalar_select %p313, %s21, 3
        %p315 = scmp.lt.s32.totalorder %s20, 1
        %s316 = scalar_select %p315, %s20, 1
        %p317 = scmp.lt.s32.totalorder %s22, 0
        %s318 = scalar_select %p317, %s22, 0
        %s319 = sadd.s32 %s318, %s316
        %s320 = smul.addr %s314, 2
        %s321 = sadd.s32 %s319, %s320
        %s322 = smul.addr %s321, 4
        %s323 = scalar_lea.vmem %s0, %s322
      $region36: #{transformer_forward.10} parent=31 // pred_fallthru
        _
      // Predicated region
      $region37: #{transformer_forward.10} parent=31 // pred_check
        %p324 = pneg %p93
      $region38: #{transformer_forward.10} parent=31 // pred_check_branch
        %326 = sbr.rel (%p324) target = $region40
      $region39: #{transformer_forward.10} parent=31 // pred_region
        %p327 = scmp.lt.s32.totalorder %s21, 3
        %s328 = scalar_select %p327, %s21, 3
        %p329 = scmp.lt.s32.totalorder %s20, 1
        %s330 = scalar_select %p329, %s20, 1
        %p331 = scmp.lt.s32.totalorder %s23, 0
        %s332 = scalar_select %p331, %s23, 0
        %s333 = sadd.s32 %s332, %s330
        %s334 = smul.addr %s328, 2
        %s335 = sadd.s32 %s333, %s334
        %s336 = smul.addr %s335, 4
        %s337 = scalar_lea.vmem %s1, %s336
      $region40: #{transformer_forward.10} parent=31 // pred_fallthru
        _
      // Predicated region
      $region41: #{transformer_forward.10} parent=31 // pred_check
        %p338 = pneg %p123
      $region42: #{transformer_forward.10} parent=31 // pred_check_branch
        %340 = sbr.rel (%p338) target = $region44
      $region43: #{transformer_forward.10} parent=31 // pred_region
        %p341 = scmp.lt.s32.totalorder %s21, 3
        %s342 = scalar_select %p341, %s21, 3
        %p343 = scmp.lt.s32.totalorder %s20, 1
        %s344 = scalar_select %p343, %s20, 1
        %p345 = scmp.lt.s32.totalorder %s23, 0
        %s346 = scalar_select %p345, %s23, 0
        %s347 = sadd.s32 %s346, %s344
        %s348 = smul.addr %s342, 2
        %s349 = sadd.s32 %s347, %s348
        %s350 = smul.addr %s349, 4
        %s351 = scalar_lea.vmem %s2, %s350
      $region44: #{transformer_forward.10} parent=31 // pred_fallthru
        _
    $region32: #{transformer_forward.10} parent=5 // pred_fallthru
      _
    %p352 = scmp.le.s32.totalorder 1, %s13
    %p353 = scmp.lt.s32.totalorder %s13, 9
    %p354 = pnand %p352, %p353
    %p355 = pneg %p354
    // Predicated region
    $region45: #{transformer_forward.10} parent=5 // pred_check
      _
    $region46: #{transformer_forward.10} parent=5 // pred_check_branch
      %357 = sbr.rel (%p354) target = $region48
    $region47: #{transformer_forward.10} parent=5 // pred_region
      %s358 = ssub.s32 %s13, 1
      %p359 = scmp.lt.s32.totalorder %s25, 3
      %s360 = scalar_select %p359, %s25, 3
      %p361 = scmp.lt.s32.totalorder %s24, 1
      %s362 = scalar_select %p361, %s24, 1
      %p363 = scmp.lt.s32.totalorder %s26, 0
      %s364 = scalar_select %p363, %s26, 0
      %s365 = sadd.s32 %s364, %s362
      %s366 = smul.addr %s360, 2
      %s367 = sadd.s32 %s365, %s366
      %s368 = smul.addr %s367, 4
      %s369 = scalar_lea.vmem %s0, %s368
      %p370 = pneg %p69
      %p371 = pneg %p66
      %p372 = scmp.lt.s32.totalorder %s25, 3
      %s373 = scalar_select %p372, %s25, 3
      %p374 = scmp.lt.s32.totalorder %s24, 1
      %s375 = scalar_select %p374, %s24, 1
      %p376 = scmp.lt.s32.totalorder %s27, 0
      %s377 = scalar_select %p376, %s27, 0
      %s378 = sadd.s32 %s377, %s375
      %s379 = smul.addr %s373, 2
      %s380 = sadd.s32 %s378, %s379
      %s381 = smul.addr %s380, 4
      %s382 = scalar_lea.vmem %s1, %s381
      %p383 = pneg %p99
      %p384 = pneg %p96
      %p385 = scmp.lt.s32.totalorder %s25, 3
      %s386 = scalar_select %p385, %s25, 3
      %p387 = scmp.lt.s32.totalorder %s24, 1
      %s388 = scalar_select %p387, %s24, 1
      %p389 = scmp.lt.s32.totalorder %s27, 0
      %s390 = scalar_select %p389, %s27, 0
      %s391 = sadd.s32 %s390, %s388
      %s392 = smul.addr %s386, 2
      %s393 = sadd.s32 %s391, %s392
      %s394 = smul.addr %s393, 4
      %s395 = scalar_lea.vmem %s2, %s394
      %p396 = pneg %p129
      %p397 = pneg %p126
      %p398 = scmp.lt.s32.totalorder %s26, 0
      %s399 = scalar_select %p398, %s26, 0
      %s400 = smul.addr %s399, 8
      %s401 = scalar_lea.vmem %s3, %s400
      %p402 = pneg %p155
      %p403 = pneg %p152
      %p404 = scmp.lt.s32.totalorder %s26, 0
      %s405 = scalar_select %p404, %s26, 0
      %s406 = smul.addr %s405, 8
      %s407 = scalar_lea.vmem %s4, %s406
      %p408 = pneg %p181
      %p409 = pneg %p178
      %p410 = scmp.lt.s32.totalorder %s27, 0
      %s411 = scalar_select %p410, %s27, 0
      %s412 = smul.addr %s411, 8
      %s413 = scalar_lea.vmem %s5, %s412
      %p414 = pneg %p207
      %p415 = pneg %p204
      %p416 = scmp.lt.s32.totalorder %s27, 0
      %s417 = scalar_select %p416, %s27, 0
      %s418 = smul.addr %s417, 8
      %s419 = scalar_lea.vmem %s6, %s418
      %p420 = pneg %p233
      %p421 = pneg %p230
      %p422 = pneg %p263
      %p423 = pneg %p260
      %p424 = scmp.lt.s32.totalorder %s25, 3
      %s425 = scalar_select %p424, %s25, 3
      %p426 = scmp.lt.s32.totalorder %s24, 1
      %s427 = scalar_select %p426, %s24, 1
      %p428 = scmp.lt.s32.totalorder %s26, 0
      %s429 = scalar_select %p428, %s26, 0
      %s430 = sadd.s32 %s429, %s427
      %s431 = smul.addr %s425, 2
      %s432 = sadd.s32 %s430, %s431
      %s433 = smul.addr %s432, 4
      %s434 = scalar_lea.vmem %s7, %s433
      %p435 = scmp.lt.s32.totalorder %s25, 3
      %s436 = scalar_select %p435, %s25, 3
      %p437 = scmp.lt.s32.totalorder %s24, 1
      %s438 = scalar_select %p437, %s24, 1
      %p439 = scmp.lt.s32.totalorder %s26, 0
      %s440 = scalar_select %p439, %s26, 0
      %s441 = sadd.s32 %s440, %s438
      %s442 = smul.addr %s436, 2
      %s443 = sadd.s32 %s441, %s442
      %s444 = smul.addr %s443, 4
      %s445 = scalar_lea.vmem %s0, %s444
      %p446 = scmp.lt.s32.totalorder %s25, 3
      %s447 = scalar_select %p446, %s25, 3
      %p448 = scmp.lt.s32.totalorder %s24, 1
      %s449 = scalar_select %p448, %s24, 1
      %p450 = scmp.lt.s32.totalorder %s27, 0
      %s451 = scalar_select %p450, %s27, 0
      %s452 = sadd.s32 %s451, %s449
      %s453 = smul.addr %s447, 2
      %s454 = sadd.s32 %s452, %s453
      %s455 = smul.addr %s454, 4
      %s456 = scalar_lea.vmem %s1, %s455
      %p457 = scmp.lt.s32.totalorder %s25, 3
      %s458 = scalar_select %p457, %s25, 3
      %p459 = scmp.lt.s32.totalorder %s24, 1
      %s460 = scalar_select %p459, %s24, 1
      %p461 = scmp.lt.s32.totalorder %s27, 0
      %s462 = scalar_select %p461, %s27, 0
      %s463 = sadd.s32 %s462, %s460
      %s464 = smul.addr %s458, 2
      %s465 = sadd.s32 %s463, %s464
      %s466 = smul.addr %s465, 4
      %s467 = scalar_lea.vmem %s2, %s466
      %p468 = scmp.lt.s32.totalorder %s26, 0
      %s469 = scalar_select %p468, %s26, 0
      %s470 = smul.addr %s469, 8
      %s471 = scalar_lea.vmem %s3, %s470
      %p472 = scmp.lt.s32.totalorder %s26, 0
      %s473 = scalar_select %p472, %s26, 0
      %s474 = smul.addr %s473, 8
      %s475 = scalar_lea.vmem %s4, %s474
      %p476 = scmp.lt.s32.totalorder %s27, 0
      %s477 = scalar_select %p476, %s27, 0
      %s478 = smul.addr %s477, 8
      %s479 = scalar_lea.vmem %s5, %s478
      %p480 = scmp.lt.s32.totalorder %s27, 0
      %s481 = scalar_select %p480, %s27, 0
      %s482 = smul.addr %s481, 8
      %s483 = scalar_lea.vmem %s6, %s482
      %p484 = scmp.lt.s32.totalorder %s25, 3
      %s485 = scalar_select %p484, %s25, 3
      %p486 = scmp.lt.s32.totalorder %s24, 1
      %s487 = scalar_select %p486, %s24, 1
      %p488 = scmp.lt.s32.totalorder %s26, 0
      %s489 = scalar_select %p488, %s26, 0
      %s490 = sadd.s32 %s489, %s487
      %s491 = smul.addr %s485, 2
      %s492 = sadd.s32 %s490, %s491
      %s493 = smul.addr %s492, 4
      %s494 = scalar_lea.vmem %s7, %s493
      %p496 = scmp.eq.s32.totalorder %s27, 0
      // Predicated region
      $region49: #{transformer_forward.10} parent=47 // pred_check
        %p497 = pneg %p496
      $region50: #{transformer_forward.10} parent=47 // pred_check_branch
        %499 = sbr.rel (%p497) target = $region52
      $region51: #{transformer_forward.10} parent=47 // pred_region
        %vm500 = vcmask 7168
        %501 = vst.msk [vmem:[#allocation2] sm:$0xff] %vm500, -inf
        %502 = vst.msk [vmem:[#allocation3] sm:$0xff] %vm500, 0.0
        %vm503 = vcmask 64512
        %504 = vst.msk [vmem:[#allocation4] sm:$0xff] %vm503, 0.0
      $region52: #{transformer_forward.10} parent=47 // pred_fallthru
        _
      %v505 = vld [vmem:[%s445] sm:$0xf]
      %v506 = vunpack.c.l.bf16 %v505
      %v507 = vmul.f32 %v506, 0.35355338
      %v508 = vld [vmem:[%s456] sm:$0xf]
      %v509 = vunpack.c.l.bf16 %v508
      %v510 = vld [vmem:[%s471] sm:$0xff]
      %v511 = vld [vmem:[%s475] sm:$0xff]
      %v512 = vld [vmem:[%s479] sm:$0xff]
      %v513 = vld [vmem:[%s483] sm:$0xff]
      %v514 = vmul.f32 %v507, %v510
      %516 = vrot.lane.b32.xlu0 %v511, 4
      %v517 = vpop.permute.xlu0 %516
      %v519 = vmul.f32 %v507, %v517
      %521 = vrot.lane.b32.xlu0 %v519, 124
      %v522 = vpop.permute.xlu0 %521
      %v524 = vsub.f32 %v514, %v522
      %v525 = vmul.f32 %v507, %v511
      %527 = vrot.lane.b32.xlu0 %v510, 4
      %v528 = vpop.permute.xlu0 %527
      %v530 = vmul.f32 %v507, %v528
      %532 = vrot.lane.b32.xlu0 %v530, 124
      %v533 = vpop.permute.xlu0 %532
      %v535 = vadd.f32 %v525, %v533
      %537 = vrot.lane.b32.xlu0 %v535, 4
      %v538 = vpop.permute.xlu0 %537
      %vm540 = vcmask 31744
      %v541 = vsel %vm540, %v524, %v538
      %v542 = vmul.f32 %v509, %v512
      %544 = vrot.lane.b32.xlu0 %v513, 4
      %v545 = vpop.permute.xlu0 %544
      %v547 = vmul.f32 %v509, %v545
      %549 = vrot.lane.b32.xlu0 %v547, 124
      %v550 = vpop.permute.xlu0 %549
      %v552 = vsub.f32 %v542, %v550
      %v553 = vmul.f32 %v509, %v513
      %555 = vrot.lane.b32.xlu0 %v512, 4
      %v556 = vpop.permute.xlu0 %555
      %v558 = vmul.f32 %v509, %v556
      %560 = vrot.lane.b32.xlu0 %v558, 124
      %v561 = vpop.permute.xlu0 %560
      %v563 = vadd.f32 %v553, %v561
      %565 = vrot.lane.b32.xlu0 %v563, 4
      %v566 = vpop.permute.xlu0 %565
      %v568 = vsel %vm540, %v552, %v566
      %v569 = vpack.c.bf16 %v541, %v541
      %v570 = vpack.c.bf16 %v568, %v568
      %s571 = smul.u32 %s26, 8
      %v572 = vlaneseq
      %v573 = vshrl.u32 %v572, 7
      %v574 = vstv %s571
      %v575 = vadd.s32 %v574, %v573
      %s576 = smul.u32 %s27, 8
      %v577 = vlaneseq
      %v578 = vand.u32 %v577, 127
      %v579 = vstv %s576
      %v580 = vadd.s32 %v579, %v578
      %vm581 = vcmp.gt.s32.totalorder %v580, %v575
      %v582 = vsel %vm581, 1, 0
      %v583 = vcvt.s32.f32 %v582
      %vm584 = vcmask 64512
      %v586 = vsel %vm584, %v569, 0
      %v589 = vsel %vm584, %v570, 0
      %591 = vmatprep.subr.bf16.mxu0 0
      %592 = vmatpush1.bf16.xpose.msra.mxu0 0
      %593 = vmatprep.subr.bf16.mxu0 0
      %594 = vmatpush1.bf16.xpose.msra.mxu0 0
      %595 = vmatprep.subr.bf16.mxu0 0
      %596 = vmatpush1.bf16.xpose.msra.mxu0 0
      %597 = vmatprep.subr.bf16.mxu0 0
      %598 = vmatpush1.bf16.xpose.msra.mxu0 0
      %599 = vmatprep.subr.bf16.mxu0 0
      %600 = vmatpush1.bf16.xpose.msra.mxu0 0
      %601 = vmatprep.subr.bf16.mxu0 0
      %602 = vmatpush1.bf16.xpose.msra.mxu0 0
      %603 = vmatprep.subr.bf16.mxu0 0
      %604 = vmatpush1.bf16.xpose.msra.mxu0 0
      %605 = vmatprep.subr.bf16.mxu0 0
      %606 = vmatpush1.bf16.xpose.msra.mxu0 %v589
      %607 = vmatprep.subr.bf16.mxu0 0
      %608 = vmatpush2.bf16.xpose.msra.mxu0 0
      %609 = vmatprep.subr.bf16.mxu0 0
      %610 = vmatpush2.bf16.xpose.msra.mxu0 0
      %611 = vmatprep.subr.bf16.mxu0 0
      %612 = vmatpush2.bf16.xpose.msra.mxu0 0
      %613 = vmatprep.subr.bf16.mxu0 0
      %614 = vmatpush2.bf16.xpose.msra.mxu0 0
      %615 = vmatprep.subr.bf16.mxu0 0
      %616 = vmatpush2.bf16.xpose.msra.mxu0 0
      %617 = vmatprep.subr.bf16.mxu0 0
      %618 = vmatpush2.bf16.xpose.msra.mxu0 0
      %619 = vmatprep.subr.bf16.mxu0 0
      %620 = vmatpush2.bf16.xpose.msra.mxu0 0
      %621 = vmatprep.subr.bf16.mxu0 0
      %622 = vmatpush2.bf16.xpose.msra.mxu0 0
      %623 = vmatprep.mubr.bf16.mxu0 0
      %624 = vmatmul.mubr.bf16.gmra.mxu0 %v586
      %v625 = vpop.f32.mrf.mxu0
      %v626 = vadd.f32 %v583, %v625
      %v627 = vpop.f32.mrf.mxu0
      %v628 = vpop.f32.mrf.mxu0
      %v629 = vpop.f32.mrf.mxu0
      %630 = vdwg.mxu0
      %v631 = vld [vmem:[#allocation2] sm:$0xff]
      %v632 = vsel %vm584, %v626, -inf
      %633 = vmax.xlane.f32.xlu0 %v632
      %v634 = vpop.xlane.xlu0 %633
      %v635 = vmax.f32 %v631, %v634
      %v636 = vsub.f32 %v631, %v635
      %v637 = vmul.f32 %v636, 1.442695
      %v638 = vpow.pop %v637
      %640 = vset.pattern.permute.xlu0 0
      %641 = vperm.xlu0 %640, %v635
      %v642 = vpop.permute.xlu0 %641
      %v644 = vsub.f32 %v626, %v642
      %v645 = vmul.f32 %v644, 1.442695
      %v646 = vpow.pop %v645
      %v647 = vld [vmem:[#allocation3] sm:$0xff]
      %v648 = vmul.f32 %v638, %v647
      %v649 = vsel %vm584, %v646, 0.0
      %650 = vadd.xlane.f32.xlu0 %v649
      %v651 = vpop.xlane.xlu0 %650
      %v652 = vadd.f32 %v648, %v651
      %vm653 = vcmask 7168
      %654 = vst.msk [vmem:[#allocation3] sm:$0xff] %vm653, %v652
      %v655 = vld [vmem:[#allocation4] sm:$0xff]
      %657 = vset.pattern.permute.xlu0 0
      %658 = vperm.xlu0 %657, %v638
      %v659 = vpop.permute.xlu0 %658
      %v661 = vmul.f32 %v659, %v655
      %v662 = vpack.c.bf16 %v646, %v646
      %v663 = vld [vmem:[%s467] sm:$0xf]
      %v665 = vsel %vm584, %v662, 0
      %vm667 = vcmask 1043456
      %v669 = vsel %vm667, %v663, 0
      %671 = vmatprep.subr.bf16.mxu0 0
      %672 = vmatpush1.bf16.msra.mxu0 0
      %673 = vmatprep.subr.bf16.mxu0 0
      %674 = vmatpush1.bf16.msra.mxu0 0
      %675 = vmatprep.subr.bf16.mxu0 0
      %676 = vmatpush1.bf16.msra.mxu0 0
      %677 = vmatprep.subr.bf16.mxu0 0
      %678 = vmatpush1.bf16.msra.mxu0 0
      %679 = vmatprep.subr.bf16.mxu0 0
      %680 = vmatpush1.bf16.msra.mxu0 0
      %681 = vmatprep.subr.bf16.mxu0 0
      %682 = vmatpush1.bf16.msra.mxu0 0
      %683 = vmatprep.subr.bf16.mxu0 0
      %684 = vmatpush1.bf16.msra.mxu0 0
      %685 = vmatprep.subr.bf16.mxu0 0
      %686 = vmatpush1.bf16.msra.mxu0 %v669
      %687 = vmatprep.subr.bf16.mxu0 0
      %688 = vmatpush2.bf16.msra.mxu0 0
      %689 = vmatprep.subr.bf16.mxu0 0
      %690 = vmatpush2.bf16.msra.mxu0 0
      %691 = vmatprep.subr.bf16.mxu0 0
      %692 = vmatpush2.bf16.msra.mxu0 0
      %693 = vmatprep.subr.bf16.mxu0 0
      %694 = vmatpush2.bf16.msra.mxu0 0
      %695 = vmatprep.subr.bf16.mxu0 0
      %696 = vmatpush2.bf16.msra.mxu0 0
      %697 = vmatprep.subr.bf16.mxu0 0
      %698 = vmatpush2.bf16.msra.mxu0 0
      %699 = vmatprep.subr.bf16.mxu0 0
      %700 = vmatpush2.bf16.msra.mxu0 0
      %701 = vmatprep.subr.bf16.mxu0 0
      %702 = vmatpush2.bf16.msra.mxu0 0
      %703 = vmatprep.mubr.bf16.mxu0 0
      %704 = vmatmul.mubr.bf16.gmra.mxu0 %v665
      %v705 = vpop.f32.mrf.mxu0
      %v706 = vadd.f32 0.0, %v705
      %v707 = vpop.f32.mrf.mxu0
      %v708 = vpop.f32.mrf.mxu0
      %v709 = vpop.f32.mrf.mxu0
      %710 = vdwg.mxu0
      %v711 = vadd.f32 %v661, %v706
      %712 = vst.msk [vmem:[#allocation4] sm:$0xff] %vm584, %v711
      %713 = vst.msk [vmem:[#allocation2] sm:$0xff] %vm653, %v635
      // Predicated region
      $region53: #{transformer_forward.10} parent=47 // pred_check
        %p714 = pneg %p496
      $region54: #{transformer_forward.10} parent=47 // pred_check_branch
        %716 = sbr.rel (%p714) target = $region56
      $region55: #{transformer_forward.10} parent=47 // pred_region
        %v717 = vld [vmem:[#allocation4] sm:$0xff]
        %v718 = vld [vmem:[#allocation3] sm:$0xff]
        %v719 = vrcp.pop %v718
        %721 = vset.pattern.permute.xlu0 0
        %722 = vperm.xlu0 %721, %v719
        %v723 = vpop.permute.xlu0 %722
        %v725 = vmul.f32 %v717, %v723
        %v726 = vpack.c.bf16 %v725, %v725
        %vm727 = vcmask 60416
        %728 = vst.msk [vmem:[%s494] sm:$0xf] %vm727, %v726
      $region56: #{transformer_forward.10} parent=47 // pred_fallthru
        _
      %p729 = scmp.lt.s32.totalorder %s25, 3
      %s730 = scalar_select %p729, %s25, 3
      %p731 = scmp.lt.s32.totalorder %s24, 1
      %s732 = scalar_select %p731, %s24, 1
      %p733 = scmp.lt.s32.totalorder %s26, 0
      %s734 = scalar_select %p733, %s26, 0
      %s735 = sadd.s32 %s734, %s732
      %s736 = smul.addr %s730, 2
      %s737 = sadd.s32 %s735, %s736
      %s738 = smul.addr %s737, 4
      %s739 = scalar_lea.vmem %s7, %s738
      // Predicated region
      $region57: #{transformer_forward.10} parent=47 // pred_check
        %p740 = pneg %p260
      $region58: #{transformer_forward.10} parent=47 // pred_check_branch
        %742 = sbr.rel (%p740) target = $region60
      $region59: #{transformer_forward.10} parent=47 // pred_region
        _
      $region60: #{transformer_forward.10} parent=47 // pred_fallthru
        _
    $region48: #{transformer_forward.10} parent=5 // pred_fallthru
      _
    %p743 = scmp.le.s32.totalorder 2, %s13
    // Predicated region
    $region61: #{transformer_forward.10} parent=5 // pred_check
      %p744 = pneg %p743
    $region62: #{transformer_forward.10} parent=5 // pred_check_branch
      %746 = sbr.rel (%p744) target = $region64
    $region63: #{transformer_forward.10} parent=5 // pred_region
      %s747 = ssub.s32 %s13, 2
      // Predicated region
      $region65: #{transformer_forward.10} parent=63 // pred_check
        %p748 = pneg %p266
      $region66: #{transformer_forward.10} parent=63 // pred_check_branch
        %750 = sbr.rel (%p748) target = $region68
      $region67: #{transformer_forward.10} parent=63 // pred_region
        %p751 = scmp.lt.s32.totalorder %s29, 3
        %s752 = scalar_select %p751, %s29, 3
        %p753 = scmp.lt.s32.totalorder %s28, 1
        %s754 = scalar_select %p753, %s28, 1
        %p755 = scmp.lt.s32.totalorder %s30, 0
        %s756 = scalar_select %p755, %s30, 0
        %s757 = sadd.s32 %s756, %s754
        %s758 = smul.addr %s752, 2
        %s759 = sadd.s32 %s757, %s758
        %s760 = smul.addr %s759, 4
        %s761 = scalar_lea.vmem %s7, %s760
      $region68: #{transformer_forward.10} parent=63 // pred_fallthru
        _
    $region64: #{transformer_forward.10} parent=5 // pred_fallthru
      _
  $region6: #{transformer_forward.10} parent=0 // loop_footer
    %s17 = sadd.s32 1, %s13
  $region7: #{transformer_forward.10} parent=0 // loop_footer_branch
    %12 = sbr.rel target = $region3
  $region8: #{transformer_forward.10} parent=0 // loop_exit
    _

// kernel: transformer_forward.12
$region0: #{transformer_forward.12}
  #allocation0 [shape = 'u32[]', space=smem, size = 0x4, offset = 0x4, fixed_abs, tag = 'smem constant byte address 0x4 - core index']
  #allocation1 [shape = 'u32[144,128]{1,0:T(1,128)}', space=vmem, size = 0x12000, scoped, tag = 'internal scratch']
  #allocation2 [shape = 'bf16[8,32]{1,0:T(8,128)(2,1)}', space=vmem, size = 0x800, scoped, tag = 'scratch operand']
  #allocation3 [shape = 'f32[8,32]{1,0:T(8,128)}', space=vmem, size = 0x1000, scoped, tag = 'scratch operand']
  %s0 = inlined_call_operand.vmem [shape: f32[16,32], index: 0, kind: input, shape index: {}]
  %s1 = inlined_call_operand.vmem [shape: f32[1,32], index: 1, kind: input, shape index: {}]
  %s2 = inlined_call_operand.vmem [shape: bf16[32,64], index: 2, kind: input, shape index: {}]
  %s3 = inlined_call_operand.vmem [shape: bf16[32,64], index: 3, kind: input, shape index: {}]
  %s4 = inlined_call_operand.vmem [shape: bf16[64,32], index: 4, kind: input, shape index: {}]
  %s5 = inlined_call_operand.vmem [shape: f32[16,32], index: 5, kind: output, shape index: {}]
  %s6 = sld [smem:[#allocation0]]
  $region61: #{transformer_forward.12} parent=0
    _
  %s8 = ssub.s32 1, %s6
  %s9 = scalar_select 0, %s8, %s6
  loop: start=0, step=1, limit=4
  $region2: #{transformer_forward.12} parent=0 // loop_pre_header
    _
  $region3: #{transformer_forward.12} parent=0 // loop_header
    %s11 = sphi 0, %s15
    %p12 = scmp.ge.s32.totalorder %s11, 4
    %s18 = sphi 0, %s30
    %s19 = sphi 0, %s26
    %s20 = sphi 0, %s18
    %s21 = sphi 0, %s19
    %s22 = sphi 0, %s20
    %s23 = sphi 0, %s21
    %s33 = sphi 0, %s35
    %s36 = sphi 0, %s33
    %s37 = sphi 0, %s36
    %s53 = sphi 0, %s37
    %s57 = sphi 0, %s57
    %s59 = sphi 0, %s57
    %s60 = sphi 0, %s59
    %s74 = sphi 0, %s60
    %s80 = sphi 0, %s82
    %s83 = sphi 0, %s80
    %s84 = sphi 0, %s83
    %s100 = sphi 0, %s84
    %s106 = sphi 0, %s108
    %s109 = sphi 0, %s106
    %s110 = sphi 0, %s109
    %s126 = sphi 0, %s110
    %s132 = sphi 0, %s134
    %s135 = sphi 0, %s132
    %s136 = sphi 0, %s135
    %s152 = sphi 0, %s136
    %s158 = sphi 0, %s160
    %s161 = sphi 0, %s158
    %s162 = sphi 0, %s161
    %s178 = sphi 0, %s162
  $region4: #{transformer_forward.12} parent=0 // loop_header_branch
    %14 = sbr.rel (%p12) target = $region8
  $region5: #{transformer_forward.12} parent=0 // loop_body
    %s16 = ssub.s32 %s11, 1
    %s17 = ssub.s32 %s11, 2
    %s24 = sadd.s32 1, %s19
    %p25 = scmp.ge.s32.totalorder %s24, 1
    %s26 = scalar_select %p25, 0, %s24
    %s27 = sadd.s32 1, %s18
    %s28 = scalar_select %p25, %s27, %s18
    %p29 = scmp.ge.s32.totalorder %s28, 2
    %s30 = scalar_select %p29, 0, %s28
    %s31 = ssub.s32 %s18, %s30
    %p32 = scmp.eq.s32.totalorder %s31, 0
    %s34 = sadd.s32 %s33, 1
    %s35 = scalar_select %p32, %s33, %s34
    %p38 = pneg %p32
    %p39 = scmp.eq.s32.totalorder %s11, 1
    %p40 = por %p38, %p39
    %p41 = scmp.ne.s32.totalorder %s33, %s36
    %p42 = scmp.eq.s32.totalorder %s11, 0
    %p43 = por %p41, %p42
    %p44 = scmp.ne.s32.totalorder %s33, %s36
    %p45 = scmp.eq.s32.totalorder %s16, 1
    %p46 = por %p44, %p45
    %p47 = scmp.ne.s32.totalorder %s36, %s37
    %p48 = scmp.eq.s32.totalorder %s16, 0
    %p49 = por %p47, %p48
    %p50 = scmp.ne.s32.totalorder %s36, %s37
    %p51 = scmp.eq.s32.totalorder %s17, 1
    %p52 = por %p50, %p51
    %p54 = scmp.ne.s32.totalorder %s37, %s53
    %p55 = scmp.eq.s32.totalorder %s17, 0
    %p56 = por %p54, %p55
    %s58 = sadd.s32 %s57, 1
    %p61 = scmp.eq.s32.totalorder %s11, 1
    %p62 = scmp.ne.s32.totalorder %s57, %s59
    %p63 = scmp.eq.s32.totalorder %s11, 0
    %p64 = por %p62, %p63
    %p65 = scmp.ne.s32.totalorder %s57, %s59
    %p66 = scmp.eq.s32.totalorder %s16, 1
    %p67 = por %p65, %p66
    %p68 = scmp.ne.s32.totalorder %s59, %s60
    %p69 = scmp.eq.s32.totalorder %s16, 0
    %p70 = por %p68, %p69
    %p71 = scmp.ne.s32.totalorder %s59, %s60
    %p72 = scmp.eq.s32.totalorder %s17, 1
    %p73 = por %p71, %p72
    %p75 = scmp.ne.s32.totalorder %s60, %s74
    %p76 = scmp.eq.s32.totalorder %s17, 0
    %p77 = por %p75, %p76
    %s78 = ssub.s32 %s19, %s26
    %p79 = scmp.eq.s32.totalorder %s78, 0
    %s81 = sadd.s32 %s80, 1
    %s82 = scalar_select %p79, %s80, %s81
    %p85 = pneg %p79
    %p86 = scmp.eq.s32.totalorder %s11, 1
    %p87 = por %p85, %p86
    %p88 = scmp.ne.s32.totalorder %s80, %s83
    %p89 = scmp.eq.s32.totalorder %s11, 0
    %p90 = por %p88, %p89
    %p91 = scmp.ne.s32.totalorder %s80, %s83
    %p92 = scmp.eq.s32.totalorder %s16, 1
    %p93 = por %p91, %p92
    %p94 = scmp.ne.s32.totalorder %s83, %s84
    %p95 = scmp.eq.s32.totalorder %s16, 0
    %p96 = por %p94, %p95
    %p97 = scmp.ne.s32.totalorder %s83, %s84
    %p98 = scmp.eq.s32.totalorder %s17, 1
    %p99 = por %p97, %p98
    %p101 = scmp.ne.s32.totalorder %s84, %s100
    %p102 = scmp.eq.s32.totalorder %s17, 0
    %p103 = por %p101, %p102
    %s104 = ssub.s32 %s19, %s26
    %p105 = scmp.eq.s32.totalorder %s104, 0
    %s107 = sadd.s32 %s106, 1
    %s108 = scalar_select %p105, %s106, %s107
    %p111 = pneg %p105
    %p112 = scmp.eq.s32.totalorder %s11, 1
    %p113 = por %p111, %p112
    %p114 = scmp.ne.s32.totalorder %s106, %s109
    %p115 = scmp.eq.s32.totalorder %s11, 0
    %p116 = por %p114, %p115
    %p117 = scmp.ne.s32.totalorder %s106, %s109
    %p118 = scmp.eq.s32.totalorder %s16, 1
    %p119 = por %p117, %p118
    %p120 = scmp.ne.s32.totalorder %s109, %s110
    %p121 = scmp.eq.s32.totalorder %s16, 0
    %p122 = por %p120, %p121
    %p123 = scmp.ne.s32.totalorder %s109, %s110
    %p124 = scmp.eq.s32.totalorder %s17, 1
    %p125 = por %p123, %p124
    %p127 = scmp.ne.s32.totalorder %s110, %s126
    %p128 = scmp.eq.s32.totalorder %s17, 0
    %p129 = por %p127, %p128
    %s130 = ssub.s32 %s19, %s26
    %p131 = scmp.eq.s32.totalorder %s130, 0
    %s133 = sadd.s32 %s132, 1
    %s134 = scalar_select %p131, %s132, %s133
    %p137 = pneg %p131
    %p138 = scmp.eq.s32.totalorder %s11, 1
    %p139 = por %p137, %p138
    %p140 = scmp.ne.s32.totalorder %s132, %s135
    %p141 = scmp.eq.s32.totalorder %s11, 0
    %p142 = por %p140, %p141
    %p143 = scmp.ne.s32.totalorder %s132, %s135
    %p144 = scmp.eq.s32.totalorder %s16, 1
    %p145 = por %p143, %p144
    %p146 = scmp.ne.s32.totalorder %s135, %s136
    %p147 = scmp.eq.s32.totalorder %s16, 0
    %p148 = por %p146, %p147
    %p149 = scmp.ne.s32.totalorder %s135, %s136
    %p150 = scmp.eq.s32.totalorder %s17, 1
    %p151 = por %p149, %p150
    %p153 = scmp.ne.s32.totalorder %s136, %s152
    %p154 = scmp.eq.s32.totalorder %s17, 0
    %p155 = por %p153, %p154
    %s156 = ssub.s32 %s18, %s30
    %p157 = scmp.eq.s32.totalorder %s156, 0
    %s159 = sadd.s32 %s158, 1
    %s160 = scalar_select %p157, %s158, %s159
    %p163 = pneg %p157
    %p164 = scmp.eq.s32.totalorder %s11, 1
    %p165 = por %p163, %p164
    %p166 = scmp.ne.s32.totalorder %s158, %s161
    %p167 = scmp.eq.s32.totalorder %s11, 0
    %p168 = por %p166, %p167
    %p169 = scmp.ne.s32.totalorder %s158, %s161
    %p170 = scmp.eq.s32.totalorder %s16, 1
    %p171 = por %p169, %p170
    %p172 = scmp.ne.s32.totalorder %s161, %s162
    %p173 = scmp.eq.s32.totalorder %s16, 0
    %p174 = por %p172, %p173
    %p175 = scmp.ne.s32.totalorder %s161, %s162
    %p176 = scmp.eq.s32.totalorder %s17, 1
    %p177 = por %p175, %p176
    %p179 = scmp.ne.s32.totalorder %s162, %s178
    %p180 = scmp.eq.s32.totalorder %s17, 0
    %p181 = por %p179, %p180
    %p182 = scmp.le.s32.totalorder 1, %s11
    %p183 = scmp.lt.s32.totalorder %s11, 3
    %p184 = pnand %p182, %p183
    %p185 = pneg %p184
    // Predicated region
    $region9: #{transformer_forward.12} parent=5 // pred_check
      _
    $region10: #{transformer_forward.12} parent=5 // pred_check_branch
      %187 = sbr.rel (%p184) target = $region12
    $region11: #{transformer_forward.12} parent=5 // pred_region
      %s188 = ssub.s32 %s11, 1
      // Predicated region
      $region13: #{transformer_forward.12} parent=11 // pred_check
        %p189 = pneg %p70
      $region14: #{transformer_forward.12} parent=11 // pred_check_branch
        %191 = sbr.rel (%p189) target = $region16
      $region15: #{transformer_forward.12} parent=11 // pred_region
        _
      $region16: #{transformer_forward.12} parent=11 // pred_fallthru
        _
      // Predicated region
      $region17: #{transformer_forward.12} parent=11 // pred_check
        %p192 = pneg %p96
      $region18: #{transformer_forward.12} parent=11 // pred_check_branch
        %194 = sbr.rel (%p192) target = $region20
      $region19: #{transformer_forward.12} parent=11 // pred_region
        %p195 = scmp.lt.s32.totalorder %s21, 0
        %s196 = scalar_select %p195, %s21, 0
        %s197 = smul.addr %s196, 4
        %s198 = scalar_lea.vmem %s2, %s197
      $region20: #{transformer_forward.12} parent=11 // pred_fallthru
        _
      // Predicated region
      $region21: #{transformer_forward.12} parent=11 // pred_check
        %p199 = pneg %p122
      $region22: #{transformer_forward.12} parent=11 // pred_check_branch
        %201 = sbr.rel (%p199) target = $region24
      $region23: #{transformer_forward.12} parent=11 // pred_region
        %p202 = scmp.lt.s32.totalorder %s21, 0
        %s203 = scalar_select %p202, %s21, 0
        %s204 = smul.addr %s203, 4
        %s205 = scalar_lea.vmem %s3, %s204
      $region24: #{transformer_forward.12} parent=11 // pred_fallthru
        _
      // Predicated region
      $region25: #{transformer_forward.12} parent=11 // pred_check
        %p206 = pneg %p148
      $region26: #{transformer_forward.12} parent=11 // pred_check_branch
        %208 = sbr.rel (%p206) target = $region28
      $region27: #{transformer_forward.12} parent=11 // pred_region
        %s209 = smul.u32 8, %s21
        %p210 = scmp.lt.s32.totalorder %s209, 7
        %s211 = scalar_select %p210, %s209, 7
        %s212 = smul.addr %s211, 4
        %s213 = scalar_lea.vmem %s4, %s212
        %s214 = smul.u32 8, %s21
      $region28: #{transformer_forward.12} parent=11 // pred_fallthru
        _
    $region12: #{transformer_forward.12} parent=5 // pred_fallthru
      _
    %p215 = scmp.lt.s32.totalorder %s11, 2
    // Predicated region
    $region29: #{transformer_forward.12} parent=5 // pred_check
      %p216 = pneg %p215
    $region30: #{transformer_forward.12} parent=5 // pred_check_branch
      %218 = sbr.rel (%p216) target = $region32
    $region31: #{transformer_forward.12} parent=5 // pred_region
      // Predicated region
      $region33: #{transformer_forward.12} parent=31 // pred_check
        %p219 = pneg %p43
      $region34: #{transformer_forward.12} parent=31 // pred_check_branch
        %221 = sbr.rel (%p219) target = $region36
      $region35: #{transformer_forward.12} parent=31 // pred_region
        %p222 = scmp.lt.s32.totalorder %s18, 1
        %s223 = scalar_select %p222, %s18, 1
        %s224 = smul.addr %s223, 8
        %s225 = scalar_lea.vmem %s0, %s224
      $region36: #{transformer_forward.12} parent=31 // pred_fallthru
        _
    $region32: #{transformer_forward.12} parent=5 // pred_fallthru
      _
    %p226 = scmp.le.s32.totalorder 1, %s11
    %p227 = scmp.lt.s32.totalorder %s11, 3
    %p228 = pnand %p226, %p227
    %p229 = pneg %p228
    // Predicated region
    $region37: #{transformer_forward.12} parent=5 // pred_check
      _
    $region38: #{transformer_forward.12} parent=5 // pred_check_branch
      %231 = sbr.rel (%p228) target = $region40
    $region39: #{transformer_forward.12} parent=5 // pred_region
      %s232 = ssub.s32 %s11, 1
      %p233 = scmp.lt.s32.totalorder %s20, 1
      %s234 = scalar_select %p233, %s20, 1
      %s235 = smul.addr %s234, 8
      %s236 = scalar_lea.vmem %s0, %s235
      %p237 = pneg %p49
      %p238 = pneg %p46
      %p239 = pneg %p70
      %p240 = pneg %p67
      %p241 = scmp.lt.s32.totalorder %s21, 0
      %s242 = scalar_select %p241, %s21, 0
      %s243 = smul.addr %s242, 4
      %s244 = scalar_lea.vmem %s2, %s243
      %p245 = pneg %p96
      %p246 = pneg %p93
      %p247 = scmp.lt.s32.totalorder %s21, 0
      %s248 = scalar_select %p247, %s21, 0
      %s249 = smul.addr %s248, 4
      %s250 = scalar_lea.vmem %s3, %s249
      %p251 = pneg %p122
      %p252 = pneg %p119
      %s253 = smul.u32 8, %s21
      %p254 = scmp.lt.s32.totalorder %s253, 7
      %s255 = scalar_select %p254, %s253, 7
      %s256 = smul.addr %s255, 4
      %s257 = scalar_lea.vmem %s4, %s256
      %p258 = pneg %p148
      %p259 = pneg %p145
      %p260 = pneg %p174
      %p261 = pneg %p171
      %p262 = scmp.lt.s32.totalorder %s20, 1
      %s263 = scalar_select %p262, %s20, 1
      %s264 = smul.addr %s263, 8
      %s265 = scalar_lea.vmem %s5, %s264
      %p266 = scmp.lt.s32.totalorder %s20, 1
      %s267 = scalar_select %p266, %s20, 1
      %s268 = smul.addr %s267, 8
      %s269 = scalar_lea.vmem %s0, %s268
      %p270 = scmp.lt.s32.totalorder %s21, 0
      %s271 = scalar_select %p270, %s21, 0
      %s272 = smul.addr %s271, 4
      %s273 = scalar_lea.vmem %s2, %s272
      %p274 = scmp.lt.s32.totalorder %s21, 0
      %s275 = scalar_select %p274, %s21, 0
      %s276 = smul.addr %s275, 4
      %s277 = scalar_lea.vmem %s3, %s276
      %s278 = smul.u32 8, %s21
      %p279 = scmp.lt.s32.totalorder %s278, 7
      %s280 = scalar_select %p279, %s278, 7
      %s281 = smul.addr %s280, 4
      %s282 = scalar_lea.vmem %s4, %s281
      %s283 = smul.u32 8, %s21
      %p284 = scmp.lt.s32.totalorder %s20, 1
      %s285 = scalar_select %p284, %s20, 1
      %s286 = smul.addr %s285, 8
      %s287 = scalar_lea.vmem %s5, %s286
      %p289 = scmp.eq.s32.totalorder %s21, 0
      // Predicated region
      $region41: #{transformer_forward.12} parent=39 // pred_check
        %p290 = pneg %p289
      $region42: #{transformer_forward.12} parent=39 // pred_check_branch
        %292 = sbr.rel (%p290) target = $region44
      $region43: #{transformer_forward.12} parent=39 // pred_region
        %v293 = vld [vmem:[%s269] sm:$0xff]
        %v294 = vmul.f32 %v293, %v293
        %vm295 = vcmask 261120
        %v296 = vsel %vm295, %v294, 0.0
        %297 = vadd.xlane.f32.xlu0 %v296
        %v298 = vpop.xlane.xlu0 %297
        %v299 = vrcp.pop 32.0
        %v300 = vmul.f32 %v298, %v299
        %v301 = vadd.f32 %v300, 1e-06
        %v302 = vrsqrt.pop %v301
        %v303 = vmul.f32 %v293, %v302
        %v304 = vld [vmem:[%s1] sm:$0x1]
        %v306 = vlaneseq
        %v307 = vshrl.u32 %v306, 7
        %v308 = vsub.s32 0, %v307
        %v309 = vrot.slane %v304, %v308
        %v311 = vmul.f32 %v303, %v309
        %v312 = vpack.c.bf16 %v311, %v311
        %vm313 = vcmask 257024
        %314 = vst.msk [vmem:[#allocation2] sm:$0xf] %vm313, %v312
        %315 = vst.msk [vmem:[#allocation3] sm:$0xff] %vm295, 0.0
      $region44: #{transformer_forward.12} parent=39 // pred_fallthru
        _
      %v316 = vld [vmem:[#allocation2] sm:$0xf]
      %v317 = vld [vmem:[%s273] sm:$0xf]
      %v318 = vld [vmem:[%s273 + $0x4] sm:$0xf]
      %v319 = vld [vmem:[%s273 + $0x8] sm:$0xf]
      %v320 = vld [vmem:[%s273 + $0xc] sm:$0xf]
      %v325 = vunpack.c.l.b16 %v317
      %v326 = vunpack.c.l.b16 %v318
      %v327 = vunpack.c.l.b16 %v319
      %v328 = vunpack.c.l.b16 %v320
      %v329 = vpack.c.b16 %v326, %v325
      %v330 = vpack.c.b16 %v328, %v327
      %vm333 = vcmask 261120
      %v335 = vsel %vm333, %v316, 0
      %337 = vmatprep.subr.bf16.mxu0 0
      %338 = vmatpush1.bf16.msra.mxu0 0
      %339 = vmatprep.subr.bf16.mxu0 0
      %340 = vmatpush1.bf16.msra.mxu0 0
      %341 = vmatprep.subr.bf16.mxu0 0
      %342 = vmatpush1.bf16.msra.mxu0 0
      %343 = vmatprep.subr.bf16.mxu0 0
      %344 = vmatpush1.bf16.msra.mxu0 0
      %345 = vmatprep.subr.bf16.mxu0 0
      %346 = vmatpush1.bf16.msra.mxu0 0
      %347 = vmatprep.subr.bf16.mxu0 0
      %348 = vmatpush1.bf16.msra.mxu0 0
      %349 = vmatprep.subr.bf16.mxu0 0
      %350 = vmatpush1.bf16.msra.mxu0 %v330
      %351 = vmatprep.subr.bf16.mxu0 0
      %352 = vmatpush1.bf16.msra.mxu0 %v329
      %353 = vmatprep.subr.bf16.mxu0 0
      %354 = vmatpush2.bf16.msra.mxu0 0
      %355 = vmatprep.subr.bf16.mxu0 0
      %356 = vmatpush2.bf16.msra.mxu0 0
      %357 = vmatprep.subr.bf16.mxu0 0
      %358 = vmatpush2.bf16.msra.mxu0 0
      %359 = vmatprep.subr.bf16.mxu0 0
      %360 = vmatpush2.bf16.msra.mxu0 0
      %361 = vmatprep.subr.bf16.mxu0 0
      %362 = vmatpush2.bf16.msra.mxu0 0
      %363 = vmatprep.subr.bf16.mxu0 0
      %364 = vmatpush2.bf16.msra.mxu0 0
      %365 = vmatprep.subr.bf16.mxu0 0
      %366 = vmatpush2.bf16.msra.mxu0 0
      %367 = vmatprep.subr.bf16.mxu0 0
      %368 = vmatpush2.bf16.msra.mxu0 0
      %369 = vmatprep.mubr.bf16.mxu0 0
      %370 = vmatmul.mubr.bf16.gmra.mxu0 %v335
      %v371 = vpop.f32.mrf.mxu0
      %v372 = vadd.f32 0.0, %v371
      %v373 = vpop.f32.mrf.mxu0
      %v374 = vpop.f32.mrf.mxu0
      %v375 = vpop.f32.mrf.mxu0
      %376 = vdwg.mxu0
      %v377 = vld [vmem:[%s277] sm:$0xf]
      %v378 = vld [vmem:[%s277 + $0x4] sm:$0xf]
      %v379 = vld [vmem:[%s277 + $0x8] sm:$0xf]
      %v380 = vld [vmem:[%s277 + $0xc] sm:$0xf]
      %v385 = vunpack.c.l.b16 %v377
      %v386 = vunpack.c.l.b16 %v378
      %v387 = vunpack.c.l.b16 %v379
      %v388 = vunpack.c.l.b16 %v380
      %v389 = vpack.c.b16 %v386, %v385
      %v390 = vpack.c.b16 %v388, %v387
      %393 = vmatprep.subr.bf16.mxu0 0
      %394 = vmatpush1.bf16.msra.mxu0 0
      %395 = vmatprep.subr.bf16.mxu0 0
      %396 = vmatpush1.bf16.msra.mxu0 0
      %397 = vmatprep.subr.bf16.mxu0 0
      %398 = vmatpush1.bf16.msra.mxu0 0
      %399 = vmatprep.subr.bf16.mxu0 0
      %400 = vmatpush1.bf16.msra.mxu0 0
      %401 = vmatprep.subr.bf16.mxu0 0
      %402 = vmatpush1.bf16.msra.mxu0 0
      %403 = vmatprep.subr.bf16.mxu0 0
      %404 = vmatpush1.bf16.msra.mxu0 0
      %405 = vmatprep.subr.bf16.mxu0 0
      %406 = vmatpush1.bf16.msra.mxu0 %v390
      %407 = vmatprep.subr.bf16.mxu0 0
      %408 = vmatpush1.bf16.msra.mxu0 %v389
      %409 = vmatprep.subr.bf16.mxu0 0
      %410 = vmatpush2.bf16.msra.mxu0 0
      %411 = vmatprep.subr.bf16.mxu0 0
      %412 = vmatpush2.bf16.msra.mxu0 0
      %413 = vmatprep.subr.bf16.mxu0 0
      %414 = vmatpush2.bf16.msra.mxu0 0
      %415 = vmatprep.subr.bf16.mxu0 0
      %416 = vmatpush2.bf16.msra.mxu0 0
      %417 = vmatprep.subr.bf16.mxu0 0
      %418 = vmatpush2.bf16.msra.mxu0 0
      %419 = vmatprep.subr.bf16.mxu0 0
      %420 = vmatpush2.bf16.msra.mxu0 0
      %421 = vmatprep.subr.bf16.mxu0 0
      %422 = vmatpush2.bf16.msra.mxu0 0
      %423 = vmatprep.subr.bf16.mxu0 0
      %424 = vmatpush2.bf16.msra.mxu0 0
      %425 = vmatprep.mubr.bf16.mxu0 0
      %426 = vmatmul.mubr.bf16.gmra.mxu0 %v335
      %v427 = vpop.f32.mrf.mxu0
      %v428 = vadd.f32 0.0, %v427
      %v429 = vpop.f32.mrf.mxu0
      %v430 = vpop.f32.mrf.mxu0
      %v431 = vpop.f32.mrf.mxu0
      %432 = vdwg.mxu0
      %v433 = vxor.u32 %v372, 2147483648
      %v434 = vmul.f32 %v433, 1.442695
      %v435 = vpow.pop %v434
      %v436 = vadd.f32 %v435, 1.0
      %v437 = vrcp.pop %v436
      %v438 = vmul.f32 1.0, %v437
      %v439 = vmul.f32 %v372, %v438
      %v440 = vmul.f32 %v439, %v428
      %v441 = vpack.c.bf16 %v440, %v440
      %v442 = vld [vmem:[#allocation3] sm:$0xff]
      %v443 = vld [vmem:[%s282] sm:$0xf]
      %v444 = vld [vmem:[%s282 + $0x4] sm:$0xf]
      %v445 = vld [vmem:[%s282 + $0x8] sm:$0xf]
      %v446 = vld [vmem:[%s282 + $0xc] sm:$0xf]
      %v447 = vld [vmem:[%s282 + $0x10] sm:$0xf]
      %v448 = vld [vmem:[%s282 + $0x14] sm:$0xf]
      %v449 = vld [vmem:[%s282 + $0x18] sm:$0xf]
      %v450 = vld [vmem:[%s282 + $0x1c] sm:$0xf]
      %v459 = vunpack.c.l.b16 %v443
      %v460 = vunpack.c.l.b16 %v444
      %v461 = vunpack.c.l.b16 %v445
      %v462 = vunpack.c.l.b16 %v446
      %v463 = vunpack.c.l.b16 %v447
      %v464 = vunpack.c.l.b16 %v448
      %v465 = vunpack.c.l.b16 %v449
      %v466 = vunpack.c.l.b16 %v450
      %v467 = vpack.c.b16 %v460, %v459
      %v468 = vpack.c.b16 %v462, %v461
      %v469 = vpack.c.b16 %v464, %v463
      %v470 = vpack.c.b16 %v466, %v465
      %vm475 = vcmask 523264
      %v477 = vsel %vm475, %v441, 0
      %479 = vmatprep.subr.bf16.mxu0 0
      %480 = vmatpush1.bf16.msra.mxu0 0
      %481 = vmatprep.subr.bf16.mxu0 0
      %482 = vmatpush1.bf16.msra.mxu0 0
      %483 = vmatprep.subr.bf16.mxu0 0
      %484 = vmatpush1.bf16.msra.mxu0 0
      %485 = vmatprep.subr.bf16.mxu0 0
      %486 = vmatpush1.bf16.msra.mxu0 0
      %487 = vmatprep.subr.bf16.mxu0 0
      %488 = vmatpush1.bf16.msra.mxu0 %v470
      %489 = vmatprep.subr.bf16.mxu0 0
      %490 = vmatpush1.bf16.msra.mxu0 %v469
      %491 = vmatprep.subr.bf16.mxu0 0
      %492 = vmatpush1.bf16.msra.mxu0 %v468
      %493 = vmatprep.subr.bf16.mxu0 0
      %494 = vmatpush1.bf16.msra.mxu0 %v467
      %495 = vmatprep.subr.bf16.mxu0 0
      %496 = vmatpush2.bf16.msra.mxu0 0
      %497 = vmatprep.subr.bf16.mxu0 0
      %498 = vmatpush2.bf16.msra.mxu0 0
      %499 = vmatprep.subr.bf16.mxu0 0
      %500 = vmatpush2.bf16.msra.mxu0 0
      %501 = vmatprep.subr.bf16.mxu0 0
      %502 = vmatpush2.bf16.msra.mxu0 0
      %503 = vmatprep.subr.bf16.mxu0 0
      %504 = vmatpush2.bf16.msra.mxu0 0
      %505 = vmatprep.subr.bf16.mxu0 0
      %506 = vmatpush2.bf16.msra.mxu0 0
      %507 = vmatprep.subr.bf16.mxu0 0
      %508 = vmatpush2.bf16.msra.mxu0 0
      %509 = vmatprep.subr.bf16.mxu0 0
      %510 = vmatpush2.bf16.msra.mxu0 0
      %511 = vmatprep.mubr.bf16.mxu0 0
      %512 = vmatmul.mubr.bf16.gmra.mxu0 %v477
      %v513 = vpop.f32.mrf.mxu0
      %v514 = vadd.f32 0.0, %v513
      %v515 = vpop.f32.mrf.mxu0
      %v516 = vpop.f32.mrf.mxu0
      %v517 = vpop.f32.mrf.mxu0
      %518 = vdwg.mxu0
      %v519 = vadd.f32 %v442, %v514
      %520 = vst.msk [vmem:[#allocation3] sm:$0xff] %vm333, %v519
      // Predicated region
      $region45: #{transformer_forward.12} parent=39 // pred_check
        %p521 = pneg %p289
      $region46: #{transformer_forward.12} parent=39 // pred_check_branch
        %523 = sbr.rel (%p521) target = $region48
      $region47: #{transformer_forward.12} parent=39 // pred_region
        %v524 = vld [vmem:[#allocation3] sm:$0xff]
        %v525 = vld [vmem:[%s269] sm:$0xff]
        %v526 = vadd.f32 %v524, %v525
        %527 = vst.msk [vmem:[%s287] sm:$0xff] %vm333, %v526
      $region48: #{transformer_forward.12} parent=39 // pred_fallthru
        _
      %p528 = scmp.lt.s32.totalorder %s20, 1
      %s529 = scalar_select %p528, %s20, 1
      %s530 = smul.addr %s529, 8
      %s531 = scalar_lea.vmem %s5, %s530
      // Predicated region
      $region49: #{transformer_forward.12} parent=39 // pred_check
        %p532 = pneg %p171
      $region50: #{transformer_forward.12} parent=39 // pred_check_branch
        %534 = sbr.rel (%p532) target = $region52
      $region51: #{transformer_forward.12} parent=39 // pred_region
        _
      $region52: #{transformer_forward.12} parent=39 // pred_fallthru
        _
    $region40: #{transformer_forward.12} parent=5 // pred_fallthru
      _
    %p535 = scmp.le.s32.totalorder 2, %s11
    // Predicated region
    $region53: #{transformer_forward.12} parent=5 // pred_check
      %p536 = pneg %p535
    $region54: #{transformer_forward.12} parent=5 // pred_check_branch
      %538 = sbr.rel (%p536) target = $region56
    $region55: #{transformer_forward.12} parent=5 // pred_region
      %s539 = ssub.s32 %s11, 2
      // Predicated region
      $region57: #{transformer_forward.12} parent=55 // pred_check
        %p540 = pneg %p177
      $region58: #{transformer_forward.12} parent=55 // pred_check_branch
        %542 = sbr.rel (%p540) target = $region60
      $region59: #{transformer_forward.12} parent=55 // pred_region
        %p543 = scmp.lt.s32.totalorder %s22, 1
        %s544 = scalar_select %p543, %s22, 1
        %s545 = smul.addr %s544, 8
        %s546 = scalar_lea.vmem %s5, %s545
      $region60: #{transformer_forward.12} parent=55 // pred_fallthru
        _
    $region56: #{transformer_forward.12} parent=5 // pred_fallthru
      _
  $region6: #{transformer_forward.12} parent=0 // loop_footer
    %s15 = sadd.s32 1, %s11
  $region7: #{transformer_forward.12} parent=0 // loop_footer_branch
    %10 = sbr.rel target = $region3
  $region8: #{transformer_forward.12} parent=0 // loop_exit
    _

// kernel: transformer_forward.17
$region0: #{transformer_forward.17}
  #allocation0 [shape = 'u32[]', space=smem, size = 0x4, offset = 0x4, fixed_abs, tag = 'smem constant byte address 0x4 - core index']
  #allocation1 [shape = 'u32[144,128]{1,0:T(1,128)}', space=vmem, size = 0x12000, scoped, tag = 'internal scratch']
  #allocation2 [shape = 'bf16[8,32]{1,0:T(8,128)(2,1)}', space=vmem, size = 0x800, scoped, tag = 'scratch operand']
  %s0 = inlined_call_operand.vmem [shape: f32[16,32], index: 0, kind: input, shape index: {}]
  %s1 = inlined_call_operand.vmem [shape: f32[1,32], index: 1, kind: input, shape index: {}]
  %s2 = inlined_call_operand.vmem [shape: bf16[32,64], index: 2, kind: input, shape index: {}]
  %s3 = inlined_call_operand.vmem [shape: f32[1,64], index: 3, kind: input, shape index: {}]
  %s4 = inlined_call_operand.hbm [shape: f32[16,64], index: 4, kind: output, shape index: {}]
  %s5 = sld [smem:[#allocation0]]
  $region53: #{transformer_forward.17} parent=0
    _
  %s7 = ssub.s32 1, %s5
  %s8 = scalar_select 0, %s7, %s5
  $region1: #{transformer_forward.17} parent=0
    #allocation3 [shape = 'u8[8192]{0}', space=vmem, size = 0x2000, scoped, tag = 'output window, operand 0']
    #allocation4 [shape = 's32[2]{0}', space=sflag, size = 0x8, scoped, tag = 'scoped memory for transformer_forward.17']
    %9 = vsyncpa [#allocation4], 0
    %s10 = scalar_lea.sflag [#allocation4], 1
    %11 = vsyncpa %s10, 0
    loop: start=0, step=1, limit=4
    $region2: #{transformer_forward.17} parent=1 // loop_pre_header
      _
    $region3: #{transformer_forward.17} parent=1 // loop_header
      %s13 = sphi 0, %s17
      %p14 = scmp.ge.s32.totalorder %s13, 4
      %s20 = sphi 0, %s32
      %s21 = sphi 0, %s28
      %s22 = sphi 0, %s20
      %s23 = sphi 0, %s21
      %s24 = sphi 0, %s22
      %s25 = sphi 0, %s23
      %s35 = sphi 0, %s37
      %s38 = sphi 0, %s35
      %s39 = sphi 0, %s38
      %s55 = sphi 0, %s39
      %s59 = sphi 0, %s59
      %s61 = sphi 0, %s59
      %s62 = sphi 0, %s61
      %s76 = sphi 0, %s62
      %s82 = sphi 0, %s84
      %s85 = sphi 0, %s82
      %s86 = sphi 0, %s85
      %s102 = sphi 0, %s86
      %s108 = sphi 0, %s110
      %s111 = sphi 0, %s108
      %s112 = sphi 0, %s111
      %s128 = sphi 0, %s112
      %s136 = sphi 0, %s138
      %s139 = sphi 0, %s136
      %s140 = sphi 0, %s139
      %s156 = sphi 0, %s140
    $region4: #{transformer_forward.17} parent=1 // loop_header_branch
      %16 = sbr.rel (%p14) target = $region8
    $region5: #{transformer_forward.17} parent=1 // loop_body
      %s18 = ssub.s32 %s13, 1
      %s19 = ssub.s32 %s13, 2
      %s26 = sadd.s32 1, %s21
      %p27 = scmp.ge.s32.totalorder %s26, 1
      %s28 = scalar_select %p27, 0, %s26
      %s29 = sadd.s32 1, %s20
      %s30 = scalar_select %p27, %s29, %s20
      %p31 = scmp.ge.s32.totalorder %s30, 2
      %s32 = scalar_select %p31, 0, %s30
      %s33 = ssub.s32 %s20, %s32
      %p34 = scmp.eq.s32.totalorder %s33, 0
      %s36 = sadd.s32 %s35, 1
      %s37 = scalar_select %p34, %s35, %s36
      %p40 = pneg %p34
      %p41 = scmp.eq.s32.totalorder %s13, 1
      %p42 = por %p40, %p41
      %p43 = scmp.ne.s32.totalorder %s35, %s38
      %p44 = scmp.eq.s32.totalorder %s13, 0
      %p45 = por %p43, %p44
      %p46 = scmp.ne.s32.totalorder %s35, %s38
      %p47 = scmp.eq.s32.totalorder %s18, 1
      %p48 = por %p46, %p47
      %p49 = scmp.ne.s32.totalorder %s38, %s39
      %p50 = scmp.eq.s32.totalorder %s18, 0
      %p51 = por %p49, %p50
      %p52 = scmp.ne.s32.totalorder %s38, %s39
      %p53 = scmp.eq.s32.totalorder %s19, 1
      %p54 = por %p52, %p53
      %p56 = scmp.ne.s32.totalorder %s39, %s55
      %p57 = scmp.eq.s32.totalorder %s19, 0
      %p58 = por %p56, %p57
      %s60 = sadd.s32 %s59, 1
      %p63 = scmp.eq.s32.totalorder %s13, 1
      %p64 = scmp.ne.s32.totalorder %s59, %s61
      %p65 = scmp.eq.s32.totalorder %s13, 0
      %p66 = por %p64, %p65
      %p67 = scmp.ne.s32.totalorder %s59, %s61
      %p68 = scmp.eq.s32.totalorder %s18, 1
      %p69 = por %p67, %p68
      %p70 = scmp.ne.s32.totalorder %s61, %s62
      %p71 = scmp.eq.s32.totalorder %s18, 0
      %p72 = por %p70, %p71
      %p73 = scmp.ne.s32.totalorder %s61, %s62
      %p74 = scmp.eq.s32.totalorder %s19, 1
      %p75 = por %p73, %p74
      %p77 = scmp.ne.s32.totalorder %s62, %s76
      %p78 = scmp.eq.s32.totalorder %s19, 0
      %p79 = por %p77, %p78
      %s80 = ssub.s32 %s21, %s28
      %p81 = scmp.eq.s32.totalorder %s80, 0
      %s83 = sadd.s32 %s82, 1
      %s84 = scalar_select %p81, %s82, %s83
      %p87 = pneg %p81
      %p88 = scmp.eq.s32.totalorder %s13, 1
      %p89 = por %p87, %p88
      %p90 = scmp.ne.s32.totalorder %s82, %s85
      %p91 = scmp.eq.s32.totalorder %s13, 0
      %p92 = por %p90, %p91
      %p93 = scmp.ne.s32.totalorder %s82, %s85
      %p94 = scmp.eq.s32.totalorder %s18, 1
      %p95 = por %p93, %p94
      %p96 = scmp.ne.s32.totalorder %s85, %s86
      %p97 = scmp.eq.s32.totalorder %s18, 0
      %p98 = por %p96, %p97
      %p99 = scmp.ne.s32.totalorder %s85, %s86
      %p100 = scmp.eq.s32.totalorder %s19, 1
      %p101 = por %p99, %p100
      %p103 = scmp.ne.s32.totalorder %s86, %s102
      %p104 = scmp.eq.s32.totalorder %s19, 0
      %p105 = por %p103, %p104
      %s106 = ssub.s32 %s21, %s28
      %p107 = scmp.eq.s32.totalorder %s106, 0
      %s109 = sadd.s32 %s108, 1
      %s110 = scalar_select %p107, %s108, %s109
      %p113 = pneg %p107
      %p114 = scmp.eq.s32.totalorder %s13, 1
      %p115 = por %p113, %p114
      %p116 = scmp.ne.s32.totalorder %s108, %s111
      %p117 = scmp.eq.s32.totalorder %s13, 0
      %p118 = por %p116, %p117
      %p119 = scmp.ne.s32.totalorder %s108, %s111
      %p120 = scmp.eq.s32.totalorder %s18, 1
      %p121 = por %p119, %p120
      %p122 = scmp.ne.s32.totalorder %s111, %s112
      %p123 = scmp.eq.s32.totalorder %s18, 0
      %p124 = por %p122, %p123
      %p125 = scmp.ne.s32.totalorder %s111, %s112
      %p126 = scmp.eq.s32.totalorder %s19, 1
      %p127 = por %p125, %p126
      %p129 = scmp.ne.s32.totalorder %s112, %s128
      %p130 = scmp.eq.s32.totalorder %s19, 0
      %p131 = por %p129, %p130
      %s132 = ssub.s32 %s20, %s32
      %s133 = ssub.s32 %s21, %s28
      %s134 = sor.u32 %s132, %s133
      %p135 = scmp.eq.s32.totalorder %s134, 0
      %s137 = sadd.s32 %s136, 1
      %s138 = scalar_select %p135, %s136, %s137
      %p141 = pneg %p135
      %p142 = scmp.eq.s32.totalorder %s13, 1
      %p143 = por %p141, %p142
      %p144 = scmp.ne.s32.totalorder %s136, %s139
      %p145 = scmp.eq.s32.totalorder %s13, 0
      %p146 = por %p144, %p145
      %p147 = scmp.ne.s32.totalorder %s136, %s139
      %p148 = scmp.eq.s32.totalorder %s18, 1
      %p149 = por %p147, %p148
      %p150 = scmp.ne.s32.totalorder %s139, %s140
      %p151 = scmp.eq.s32.totalorder %s18, 0
      %p152 = por %p150, %p151
      %p153 = scmp.ne.s32.totalorder %s139, %s140
      %p154 = scmp.eq.s32.totalorder %s19, 1
      %p155 = por %p153, %p154
      %p157 = scmp.ne.s32.totalorder %s140, %s156
      %p158 = scmp.eq.s32.totalorder %s19, 0
      %p159 = por %p157, %p158
      %p160 = scmp.le.s32.totalorder 1, %s13
      %p161 = scmp.lt.s32.totalorder %s13, 3
      %p162 = pnand %p160, %p161
      %p163 = pneg %p162
      // Predicated region
      $region9: #{transformer_forward.17} parent=5 // pred_check
        _
      $region10: #{transformer_forward.17} parent=5 // pred_check_branch
        %165 = sbr.rel (%p162) target = $region12
      $region11: #{transformer_forward.17} parent=5 // pred_region
        %s166 = ssub.s32 %s13, 1
        // Predicated region
        $region13: #{transformer_forward.17} parent=11 // pred_check
          %p167 = pneg %p72
        $region14: #{transformer_forward.17} parent=11 // pred_check_branch
          %169 = sbr.rel (%p167) target = $region16
        $region15: #{transformer_forward.17} parent=11 // pred_region
          _
        $region16: #{transformer_forward.17} parent=11 // pred_fallthru
          _
        // Predicated region
        $region17: #{transformer_forward.17} parent=11 // pred_check
          %p170 = pneg %p98
        $region18: #{transformer_forward.17} parent=11 // pred_check_branch
          %172 = sbr.rel (%p170) target = $region20
        $region19: #{transformer_forward.17} parent=11 // pred_region
          %p173 = scmp.lt.s32.totalorder %s23, 0
          %s174 = scalar_select %p173, %s23, 0
          %s175 = smul.addr %s174, 4
          %s176 = scalar_lea.vmem %s2, %s175
        $region20: #{transformer_forward.17} parent=11 // pred_fallthru
          _
        // Predicated region
        $region21: #{transformer_forward.17} parent=11 // pred_check
          %p177 = pneg %p124
        $region22: #{transformer_forward.17} parent=11 // pred_check_branch
          %179 = sbr.rel (%p177) target = $region24
        $region23: #{transformer_forward.17} parent=11 // pred_region
          %p180 = scmp.lt.s32.totalorder %s23, 0
          %s181 = scalar_select %p180, %s23, 0
          %s182 = scalar_lea.vmem %s3, %s181
        $region24: #{transformer_forward.17} parent=11 // pred_fallthru
          _
      $region12: #{transformer_forward.17} parent=5 // pred_fallthru
        _
      %p183 = scmp.lt.s32.totalorder %s13, 2
      // Predicated region
      $region25: #{transformer_forward.17} parent=5 // pred_check
        %p184 = pneg %p183
      $region26: #{transformer_forward.17} parent=5 // pred_check_branch
        %186 = sbr.rel (%p184) target = $region28
      $region27: #{transformer_forward.17} parent=5 // pred_region
        // Predicated region
        $region29: #{transformer_forward.17} parent=27 // pred_check
          %p187 = pneg %p45
        $region30: #{transformer_forward.17} parent=27 // pred_check_branch
          %189 = sbr.rel (%p187) target = $region32
        $region31: #{transformer_forward.17} parent=27 // pred_region
          %p190 = scmp.lt.s32.totalorder %s20, 1
          %s191 = scalar_select %p190, %s20, 1
          %s192 = smul.addr %s191, 8
          %s193 = scalar_lea.vmem %s0, %s192
        $region32: #{transformer_forward.17} parent=27 // pred_fallthru
          _
      $region28: #{transformer_forward.17} parent=5 // pred_fallthru
        _
      %p194 = scmp.le.s32.totalorder 1, %s13
      %p195 = scmp.lt.s32.totalorder %s13, 3
      %p196 = pnand %p194, %p195
      %p197 = pneg %p196
      // Predicated region
      $region33: #{transformer_forward.17} parent=5 // pred_check
        _
      $region34: #{transformer_forward.17} parent=5 // pred_check_branch
        %199 = sbr.rel (%p196) target = $region36
      $region35: #{transformer_forward.17} parent=5 // pred_region
        %s200 = ssub.s32 %s13, 1
        %p201 = scmp.lt.s32.totalorder %s22, 1
        %s202 = scalar_select %p201, %s22, 1
        %s203 = smul.addr %s202, 8
        %s204 = scalar_lea.vmem %s0, %s203
        %p205 = pneg %p51
        %p206 = pneg %p48
        %p207 = pneg %p72
        %p208 = pneg %p69
        %p209 = scmp.lt.s32.totalorder %s23, 0
        %s210 = scalar_select %p209, %s23, 0
        %s211 = smul.addr %s210, 4
        %s212 = scalar_lea.vmem %s2, %s211
        %p213 = pneg %p98
        %p214 = pneg %p95
        %p215 = scmp.lt.s32.totalorder %s23, 0
        %s216 = scalar_select %p215, %s23, 0
        %s217 = scalar_lea.vmem %s3, %s216
        %p218 = pneg %p124
        %p219 = pneg %p121
        %p220 = pneg %p152
        %p221 = pneg %p149
        %s222 = sand.u32 %s139, 1
        %s223 = scalar_lea.sflag [#allocation4], %s222
        %s224 = sand.u32 %s139, 1
        %s225 = smul.addr %s224, 8
        %s226 = scalar_lea.vmem [#allocation3], %s225
        %p227 = scmp.lt.s32.totalorder %s22, 1
        %s228 = scalar_select %p227, %s22, 1
        %s229 = smul.addr %s228, 8
        %s230 = scalar_lea.vmem %s0, %s229
        %p231 = scmp.lt.s32.totalorder %s23, 0
        %s232 = scalar_select %p231, %s23, 0
        %s233 = smul.addr %s232, 4
        %s234 = scalar_lea.vmem %s2, %s233
        %p235 = scmp.lt.s32.totalorder %s23, 0
        %s236 = scalar_select %p235, %s23, 0
        %s237 = scalar_lea.vmem %s3, %s236
        %p239 = scmp.eq.s32.totalorder %s23, 0
        // Predicated region
        $region37: #{transformer_forward.17} parent=35 // pred_check
          %p240 = pneg %p239
        $region38: #{transformer_forward.17} parent=35 // pred_check_branch
          %242 = sbr.rel (%p240) target = $region40
        $region39: #{transformer_forward.17} parent=35 // pred_region
          %v243 = vld [vmem:[%s230] sm:$0xff]
          %v244 = vmul.f32 %v243, %v243
          %vm245 = vcmask 261120
          %v246 = vsel %vm245, %v244, 0.0
          %247 = vadd.xlane.f32.xlu0 %v246
          %v248 = vpop.xlane.xlu0 %247
          %v249 = vrcp.pop 32.0
          %v250 = vmul.f32 %v248, %v249
          %v251 = vadd.f32 %v250, 1e-06
          %v252 = vrsqrt.pop %v251
          %v253 = vmul.f32 %v243, %v252
          %v254 = vld [vmem:[%s1] sm:$0x1]
          %v256 = vlaneseq
          %v257 = vshrl.u32 %v256, 7
          %v258 = vsub.s32 0, %v257
          %v259 = vrot.slane %v254, %v258
          %v261 = vmul.f32 %v253, %v259
          %v262 = vpack.c.bf16 %v261, %v261
          %vm263 = vcmask 257024
          %264 = vst.msk [vmem:[#allocation2] sm:$0xf] %vm263, %v262
        $region40: #{transformer_forward.17} parent=35 // pred_fallthru
          _
        %v265 = vld [vmem:[#allocation2] sm:$0xf]
        %v266 = vld [vmem:[%s234] sm:$0xf]
        %v267 = vld [vmem:[%s234 + $0x4] sm:$0xf]
        %v268 = vld [vmem:[%s234 + $0x8] sm:$0xf]
        %v269 = vld [vmem:[%s234 + $0xc] sm:$0xf]
        %v270 = vld [vmem:[%s237] sm:$0x1]
        %v272 = vlaneseq
        %v273 = vshrl.u32 %v272, 7
        %v274 = vsub.s32 0, %v273
        %v275 = vrot.slane %v270, %v274
        %v281 = vunpack.c.l.b16 %v266
        %v282 = vunpack.c.l.b16 %v267
        %v283 = vunpack.c.l.b16 %v268
        %v284 = vunpack.c.l.b16 %v269
        %v285 = vpack.c.b16 %v282, %v281
        %v286 = vpack.c.b16 %v284, %v283
        %vm289 = vcmask 261120
        %v291 = vsel %vm289, %v265, 0
        %293 = vmatprep.subr.bf16.mxu0 0
        %294 = vmatpush1.bf16.msra.mxu0 0
        %295 = vmatprep.subr.bf16.mxu0 0
        %296 = vmatpush1.bf16.msra.mxu0 0
        %297 = vmatprep.subr.bf16.mxu0 0
        %298 = vmatpush1.bf16.msra.mxu0 0
        %299 = vmatprep.subr.bf16.mxu0 0
        %300 = vmatpush1.bf16.msra.mxu0 0
        %301 = vmatprep.subr.bf16.mxu0 0
        %302 = vmatpush1.bf16.msra.mxu0 0
        %303 = vmatprep.subr.bf16.mxu0 0
        %304 = vmatpush1.bf16.msra.mxu0 0
        %305 = vmatprep.subr.bf16.mxu0 0
        %306 = vmatpush1.bf16.msra.mxu0 %v286
        %307 = vmatprep.subr.bf16.mxu0 0
        %308 = vmatpush1.bf16.msra.mxu0 %v285
        %309 = vmatprep.subr.bf16.mxu0 0
        %310 = vmatpush2.bf16.msra.mxu0 0
        %311 = vmatprep.subr.bf16.mxu0 0
        %312 = vmatpush2.bf16.msra.mxu0 0
        %313 = vmatprep.subr.bf16.mxu0 0
        %314 = vmatpush2.bf16.msra.mxu0 0
        %315 = vmatprep.subr.bf16.mxu0 0
        %316 = vmatpush2.bf16.msra.mxu0 0
        %317 = vmatprep.subr.bf16.mxu0 0
        %318 = vmatpush2.bf16.msra.mxu0 0
        %319 = vmatprep.subr.bf16.mxu0 0
        %320 = vmatpush2.bf16.msra.mxu0 0
        %321 = vmatprep.subr.bf16.mxu0 0
        %322 = vmatpush2.bf16.msra.mxu0 0
        %323 = vmatprep.subr.bf16.mxu0 0
        %324 = vmatpush2.bf16.msra.mxu0 0
        %325 = vmatprep.mubr.bf16.mxu0 0
        %326 = vmatmul.mubr.bf16.gmra.mxu0 %v291
        %v327 = vpop.f32.mrf.mxu0
        %v328 = vadd.f32 %v275, %v327
        %v329 = vpop.f32.mrf.mxu0
        %v330 = vpop.f32.mrf.mxu0
        %v331 = vpop.f32.mrf.mxu0
        %332 = vdwg.mxu0
        %vm333 = vcmask 523264
        %334 = vst.msk [vmem:[%s226] sm:$0xff] %vm333, %v328
        %s335 = sand.u32 %s139, 1
        %s336 = scalar_lea.sflag [#allocation4], %s335
        %s337 = sand.u32 %s139, 1
        %s338 = smul.addr %s337, 8
        %s339 = scalar_lea.vmem [#allocation3], %s338
        // Predicated region
        $region41: #{transformer_forward.17} parent=35 // pred_check
          %p340 = pneg %p149
        $region42: #{transformer_forward.17} parent=35 // pred_check_branch
          %342 = sbr.rel (%p340) target = $region44
        $region43: #{transformer_forward.17} parent=35 // pred_region
          %s344 = ssub.s32 128, 128
          %345 = vsyncadd %s336, %s344
          %s346 = sadd.s32 %s23, %s22
          %s347 = smul.addr %s346, 128
          %s348 = scalar_lea.hbm %s4, %s347
          %s350 = sshll.u32 %s339, 4
          %s351 = int_to_ptr.vmem [resolvable:$true] %s350
          %353 = dma.vmem_to_hbm [thread:$0]  %s351, 128, %s348, %s336
        $region44: #{transformer_forward.17} parent=35 // pred_fallthru
          _
      $region36: #{transformer_forward.17} parent=5 // pred_fallthru
        _
      %p354 = scmp.le.s32.totalorder 2, %s13
      // Predicated region
      $region45: #{transformer_forward.17} parent=5 // pred_check
        %p355 = pneg %p354
      $region46: #{transformer_forward.17} parent=5 // pred_check_branch
        %357 = sbr.rel (%p355) target = $region48
      $region47: #{transformer_forward.17} parent=5 // pred_region
        %s358 = ssub.s32 %s13, 2
        // Predicated region
        $region49: #{transformer_forward.17} parent=47 // pred_check
          %p359 = pneg %p155
        $region50: #{transformer_forward.17} parent=47 // pred_check_branch
          %361 = sbr.rel (%p359) target = $region52
        $region51: #{transformer_forward.17} parent=47 // pred_region
          %s362 = sand.u32 %s140, 1
          %s363 = scalar_lea.sflag [#allocation4], %s362
          %s364 = sand.u32 %s140, 1
          %s365 = smul.addr %s364, 8
          %s366 = scalar_lea.vmem [#allocation3], %s365
          %367 = dma.done %s363, 128
        $region52: #{transformer_forward.17} parent=47 // pred_fallthru
          _
      $region48: #{transformer_forward.17} parent=5 // pred_fallthru
        _
    $region6: #{transformer_forward.17} parent=1 // loop_footer
      %s17 = sadd.s32 1, %s13
    $region7: #{transformer_forward.17} parent=1 // loop_footer_branch
      %12 = sbr.rel target = $region3
    $region8: #{transformer_forward.17} parent=1 // loop_exit
      _
    %368 = vsyncpa [#allocation4], 1
    %s369 = scalar_lea.sflag [#allocation4], 1
    %370 = vsyncpa %s369, 1

</llo_original>
